<compile_context>
chip_gen: v6e
topology: v6e:2x2x1
jax: 0.10.0
libtpu: 0.0.40
codegen_flags: <defaults>
</compile_context>

<pallas_src>
import functools

import jax
import jax.numpy as jnp
from jax import lax
from jax.experimental import pallas as pl
from jax.experimental.pallas import tpu as pltpu

LN_EPS = 1e-5  # torch.nn.LayerNorm default eps


def _layernorm(x, w, b):
    mu = jnp.mean(x, axis=-1, keepdims=True)
    var = jnp.mean((x - mu) ** 2, axis=-1, keepdims=True)
    return (x - mu) * lax.rsqrt(var + LN_EPS) * w + b


def _gelu_exact(x):
    # nn.GELU() default = exact erf-based GELU.
    return 0.5 * x * (1.0 + lax.erf(x * 0.7071067811865476))


# --------------------------------------------------------------------------
# Fused transformer-block kernel: one batch element per grid step, full
# (padded) sequence resident in VMEM, all weights resident (grid-invariant).
# --------------------------------------------------------------------------
def _transformer_block_kernel(*refs, num_heads, head_dim, seq_len, true_len, has_mask):
    if has_mask:
        (x_ref, bias_ref, ln1w, ln1b, qkvw, qkvb, projw, projb,
         ln2w, ln2b, w1, b1, w2, b2, o_ref) = refs
    else:
        bias_ref = None
        (x_ref, ln1w, ln1b, qkvw, qkvb, projw, projb,
         ln2w, ln2b, w1, b1, w2, b2, o_ref) = refs

    D = num_heads * head_dim
    f32 = jnp.float32
    bf16 = jnp.bfloat16

    x = x_ref[0].astype(f32)                               # (L, D)

    # ------------------------- attention branch -------------------------
    h_ln = _layernorm(x, ln1w[...], ln1b[...])
    h_bf = h_ln.astype(bf16)

    # Fused, lane-dense QKV projection: (L, D) @ (D, 3D) on the MXU.
    # The 1/sqrt(head_dim) scale is already baked into the Q columns host-side.
    qkv = jnp.dot(h_bf, qkvw[...], preferred_element_type=f32) + qkvb[...]   # (L, 3D)
    q_all = qkv[:, :D].astype(bf16)
    k_all = qkv[:, D:2 * D].astype(bf16)
    v_all = qkv[:, 2 * D:].astype(bf16)

    # Single additive score bias (mask and/or key-column padding), built once.
    if has_mask:
        bias = bias_ref[...].astype(f32)                   # (L, L): 0 / -inf / -1e30
    elif true_len < seq_len:
        col = lax.broadcasted_iota(jnp.int32, (1, seq_len), 1)
        bias = jnp.where(col < true_len, 0.0, -1e30).astype(f32)   # (1, L), broadcast add
    else:
        bias = None

    # TODO(synk): for num_heads > ~8, switch this static unroll to lax.fori_loop (or a
    # head grid axis) so per-head live ranges are bounded and don't spill.
    ctx_heads = []
    for h in range(num_heads):
        lo = h * head_dim
        q = q_all[:, lo:lo + head_dim]
        k = k_all[:, lo:lo + head_dim]
        v = v_all[:, lo:lo + head_dim]

        # scores: contract head_dim of q with head_dim of k (scale pre-folded into q)
        s = lax.dot_general(q, k, (((1,), (1,)), ((), ())),
                            preferred_element_type=f32)            # (L, L) f32
        if bias is not None:
            s = s + bias

        m = jnp.max(s, axis=-1, keepdims=True)
        p = jnp.exp(s - m)
        denom = jnp.sum(p, axis=-1, keepdims=True)
        p = p * pl.reciprocal(denom, approx=True)          # EUP slot instead of VALU divide

        ctx_heads.append(jnp.dot(p.astype(bf16), v, preferred_element_type=f32))  # (L, hd)

    # Head-major concat -> one lane-dense K=D output projection.
    ctx = jnp.concatenate(ctx_heads, axis=-1).astype(bf16)                 # (L, D)
    attn_out = jnp.dot(ctx, projw[...], preferred_element_type=f32) + projb[...]

    x = x + attn_out

    # ---------------------------- MLP branch ----------------------------
    # TODO(synk): on v6e/v7x the GELU path could run in bf16; kept f32 for v5e + accuracy.
    h2 = _layernorm(x, ln2w[...], ln2b[...])
    m1 = jnp.dot(h2.astype(bf16), w1[...], preferred_element_type=f32) + b1[...]
    g = _gelu_exact(m1)                                    # f32 elementwise
    m2 = jnp.dot(g.astype(bf16), w2[...], preferred_element_type=f32) + b2[...]

    o_ref[0] = (x + m2).astype(o_ref.dtype)


# --------------------------------------------------------------------------
# Wrapper: PyTorch-layout params -> kernel layouts, padding, pallas_call.
# --------------------------------------------------------------------------
def _pack_weights(p, *, num_heads):
    """PyTorch (out, in) weights -> fused lane-dense kernel layouts; matmul weights bf16.

    The attention scale 1/sqrt(head_dim) is folded into the Q projection (first D output
    columns of the fused QKV weight and bias)."""
    D = p["proj_w"].shape[0]
    hd = D // num_heads
    scale = hd ** -0.5
    bf16, f32 = jnp.bfloat16, jnp.float32

    row_scale = jnp.where(jnp.arange(3 * D) < D, scale, 1.0).astype(f32)   # scale Q rows
    qkv_w = (p["qkv_w"].astype(f32) * row_scale[:, None]).T.astype(bf16)   # (D, 3D)
    qkv_b = (p["qkv_b"].astype(f32) * row_scale).reshape(1, 3 * D)

    proj_w = p["proj_w"].T.astype(bf16)                           # (D, D)
    proj_b = p["proj_b"].reshape(1, D).astype(f32)
    mlp1_w = p["mlp1_w"].T.astype(bf16)                           # (D, 4D)
    mlp1_b = p["mlp1_b"].reshape(1, -1).astype(f32)
    mlp2_w = p["mlp2_w"].T.astype(bf16)                           # (4D, D)
    mlp2_b = p["mlp2_b"].reshape(1, -1).astype(f32)
    return [
        p["ln1_w"].reshape(1, D).astype(f32), p["ln1_b"].reshape(1, D).astype(f32),
        qkv_w, qkv_b, proj_w, proj_b,
        p["ln2_w"].reshape(1, D).astype(f32), p["ln2_b"].reshape(1, D).astype(f32),
        mlp1_w, mlp1_b, mlp2_w, mlp2_b,
    ]


def transformer_block(x, params, *, num_heads, mask=None):
    """Pallas forward of the PyTorch TransformerBlock. x: (B, L, D) float32."""
    B, L, D = x.shape
    assert D % num_heads == 0
    head_dim = D // num_heads
    Lp = ((L + 127) // 128) * 128             # pad sequence to a LANE multiple (not just 8)

    weights = _pack_weights(params, num_heads=num_heads)

    xp = x if Lp == L else jnp.pad(x, ((0, 0), (0, Lp - L), (0, 0)))
    inputs = [xp]
    in_specs = [pl.BlockSpec((1, Lp, D), lambda b: (b, 0, 0))]

    has_mask = mask is not None
    if has_mask:
        # Additive score bias (bf16, half the DMA of an int32 mask):
        #   0 where attended, -inf where masked (exact torch masked_fill semantics),
        #   -1e30 on padded key columns (finite -> no NaN leakage into valid rows).
        bias = jnp.where(mask == 0, -jnp.inf, 0.0).astype(jnp.float32)   # (L, L)
        if Lp != L:
            bias = jnp.pad(bias, ((0, Lp - L), (0, Lp - L)))
            col = jnp.arange(Lp)
            bias = jnp.where(col[None, :] >= L, jnp.float32(-1e30), bias)
        inputs.append(bias.astype(jnp.bfloat16))
        in_specs.append(pl.BlockSpec((Lp, Lp), lambda b: (0, 0)))

    inputs += weights
    # Grid-invariant (replicated) weight blocks.
    # TODO(synk): mark these pipeline_mode=pl.Buffered(1) (single-buffered) once that path
    # is exercised for the target jax version; at D>=1024 on v7x also add a query-tile
    # grid axis (flash-style online softmax) and tile the 4D MLP hidden dim so the
    # resident set fits the 64 MiB VMEM.
    in_specs += [pl.BlockSpec(w.shape, lambda b, _n=w.ndim: (0,) * _n) for w in weights]

    # Explicit scoped-VMEM budget: resident weights (double-buffered by the pipeline),
    # activation blocks, score/softmax/MLP working set, ~40% headroom; clamp to what is
    # physically safe on every generation (64 MiB, v7x's per-core capacity).
    weight_bytes = sum(int(w.size) * w.dtype.itemsize for w in weights)
    bias_bytes = 2 * Lp * Lp if has_mask else 0
    work_bytes = 4 * (3 * Lp * D + 2 * Lp * Lp + 4 * Lp * D + 2 * Lp * D)
    need = 2 * weight_bytes + 2 * bias_bytes + 4 * (4 * Lp * D) + work_bytes
    vmem_limit = int(min(max(1.4 * need, 32 << 20), 64 << 20))

    kernel = functools.partial(
        _transformer_block_kernel, num_heads=num_heads, head_dim=head_dim,
        seq_len=Lp, true_len=L, has_mask=has_mask)

    out = pl.pallas_call(
        kernel,
        out_shape=jax.ShapeDtypeStruct((B, Lp, D), x.dtype),
        grid=(B,),
        in_specs=in_specs,
        out_specs=pl.BlockSpec((1, Lp, D), lambda b: (b, 0, 0)),
        input_output_aliases={0: 0},          # reuse the activation HBM buffer
        compiler_params=pltpu.CompilerParams(
            dimension_semantics=("parallel",),
            vmem_limit_bytes=vmem_limit),
    )(*inputs)
    return out if Lp == L else out[:, :L]


# --------------------------------------------------------------------------
# Pure-JAX f32 reference (matches the PyTorch module) and parameter init.
# --------------------------------------------------------------------------
def transformer_block_reference(x, p, *, num_heads, mask=None):
    B, L, D = x.shape
    H = num_heads
    hd = D // H
    h = _layernorm(x, p["ln1_w"], p["ln1_b"])
    qkv = h @ p["qkv_w"].T + p["qkv_b"]
    qkv = qkv.reshape(B, L, 3, H, hd).transpose(2, 0, 3, 1, 4)
    q, k, v = qkv[0], qkv[1], qkv[2]
    attn = jnp.einsum("bhqd,bhkd->bhqk", q, k) * (hd ** -0.5)
    if mask is not None:
        attn = jnp.where(mask == 0, -jnp.inf, attn)
    attn = jax.nn.softmax(attn, axis=-1)
    ctx = jnp.einsum("bhqk,bhkd->bhqd", attn, v).transpose(0, 2, 1, 3).reshape(B, L, D)
    x = x + ctx @ p["proj_w"].T + p["proj_b"]
    h2 = _layernorm(x, p["ln2_w"], p["ln2_b"])
    m1 = h2 @ p["mlp1_w"].T + p["mlp1_b"]
    return x + _gelu_exact(m1) @ p["mlp2_w"].T + p["mlp2_b"]


def init_transformer_block_params(key, *, embed_dim):
    """Parameters in PyTorch layout: Linear weight (out, in), bias (out,)."""
    D = embed_dim
    ks = jax.random.split(key, 8)

    def nrm(k, shape, scale=0.02):
        return jax.random.normal(k, shape, jnp.float32) * scale

    return {
        "ln1_w": jnp.ones((D,), jnp.float32), "ln1_b": jnp.zeros((D,), jnp.float32),
        "qkv_w": nrm(ks[0], (3 * D, D)),      "qkv_b": nrm(ks[1], (3 * D,)),
        "proj_w": nrm(ks[2], (D, D)),         "proj_b": nrm(ks[3], (D,)),
        "ln2_w": jnp.ones((D,), jnp.float32), "ln2_b": jnp.zeros((D,), jnp.float32),
        "mlp1_w": nrm(ks[4], (4 * D, D)),     "mlp1_b": nrm(ks[5], (4 * D,)),
        "mlp2_w": nrm(ks[6], (D, 4 * D)),     "mlp2_b": nrm(ks[7], (D,)),
    }


if __name__ == "__main__":
    B, L, D, H = 2, 128, 128, 4               # head_dim = 32; (8,128)-aligned demo shapes
    key = jax.random.PRNGKey(0)
    kx, kp = jax.random.split(key)
    params = init_transformer_block_params(kp, embed_dim=D)
    x = jax.random.normal(kx, (B, L, D), jnp.float32)

    # 1) reference default path: mask=None (full bidirectional attention)
    y = transformer_block(x, params, num_heads=H)
    jax.block_until_ready(y)
    y_ref = transformer_block_reference(x, params, num_heads=H)
    assert y.shape == (B, L, D)
    assert bool(jnp.all(jnp.isfinite(y)))
    assert float(jnp.max(jnp.abs(y - y_ref))) < 5e-2      # bf16-matmul tolerance

    # 2) explicit causal mask + non-multiple-of-128 L (exercises padding + mask-bias paths)
    L2 = 84
    x2 = x[:, :L2]
    causal = jnp.tril(jnp.ones((L2, L2), jnp.int32))
    y2 = transformer_block(x2, params, num_heads=H, mask=causal)
    jax.block_until_ready(y2)
    y2_ref = transformer_block_reference(x2, params, num_heads=H, mask=causal)
    assert y2.shape == (B, L2, D)
    assert bool(jnp.all(jnp.isfinite(y2)))
    assert float(jnp.max(jnp.abs(y2 - y2_ref))) < 5e-2

    print("KERNEL_OK")
</pallas_src>

<mosaic_0001>
module attributes {stable_mosaic.version = 11 : i64} {
  func.func @_transformer_block_kernel(%arg0: i32, %arg1: memref<1x128x128xf32, #tpu.memory_space<vmem>>, %arg2: memref<1x128xf32, #tpu.memory_space<vmem>>, %arg3: memref<1x128xf32, #tpu.memory_space<vmem>>, %arg4: memref<128x384xbf16, #tpu.memory_space<vmem>>, %arg5: memref<1x384xf32, #tpu.memory_space<vmem>>, %arg6: memref<128x128xbf16, #tpu.memory_space<vmem>>, %arg7: memref<1x128xf32, #tpu.memory_space<vmem>>, %arg8: memref<1x128xf32, #tpu.memory_space<vmem>>, %arg9: memref<1x128xf32, #tpu.memory_space<vmem>>, %arg10: memref<128x512xbf16, #tpu.memory_space<vmem>>, %arg11: memref<1x512xf32, #tpu.memory_space<vmem>>, %arg12: memref<512x128xbf16, #tpu.memory_space<vmem>>, %arg13: memref<1x128xf32, #tpu.memory_space<vmem>>, %arg14: memref<1x128x128xf32, #tpu.memory_space<vmem>>) attributes {dimension_semantics = [#tpu.dimension_semantics<parallel>], iteration_bounds = array<i64: 2>, scalar_prefetch = 0 : i64, scratch_operands = 0 : i64, tpu.core_type = #tpu.core_type<tc>, window_params = [{transform_indices = @transform_0, window_bounds = array<i64: 1, 128, 128>}, {pipeline_mode = #tpu.pipeline_mode<synchronous>, transform_indices = @transform_1, window_bounds = array<i64: 1, 128>}, {pipeline_mode = #tpu.pipeline_mode<synchronous>, transform_indices = @transform_2, window_bounds = array<i64: 1, 128>}, {pipeline_mode = #tpu.pipeline_mode<synchronous>, transform_indices = @transform_3, window_bounds = array<i64: 128, 384>}, {pipeline_mode = #tpu.pipeline_mode<synchronous>, transform_indices = @transform_4, window_bounds = array<i64: 1, 384>}, {pipeline_mode = #tpu.pipeline_mode<synchronous>, transform_indices = @transform_5, window_bounds = array<i64: 128, 128>}, {pipeline_mode = #tpu.pipeline_mode<synchronous>, transform_indices = @transform_6, window_bounds = array<i64: 1, 128>}, {pipeline_mode = #tpu.pipeline_mode<synchronous>, transform_indices = @transform_7, window_bounds = array<i64: 1, 128>}, {pipeline_mode = #tpu.pipeline_mode<synchronous>, transform_indices = @transform_8, window_bounds = array<i64: 1, 128>}, {pipeline_mode = #tpu.pipeline_mode<synchronous>, transform_indices = @transform_9, window_bounds = array<i64: 128, 512>}, {pipeline_mode = #tpu.pipeline_mode<synchronous>, transform_indices = @transform_10, window_bounds = array<i64: 1, 512>}, {pipeline_mode = #tpu.pipeline_mode<synchronous>, transform_indices = @transform_11, window_bounds = array<i64: 512, 128>}, {pipeline_mode = #tpu.pipeline_mode<synchronous>, transform_indices = @transform_12, window_bounds = array<i64: 1, 128>}, {transform_indices = @transform_13, window_bounds = array<i64: 1, 128, 128>}]} {
    %c0 = arith.constant 0 : index
    %c0_0 = arith.constant 0 : index
    %c0_1 = arith.constant 0 : index
    %0 = vector.load %arg1[%c0, %c0_0, %c0_1] : memref<1x128x128xf32, #tpu.memory_space<vmem>>, vector<1x128x128xf32>
    %1 = vector.shape_cast %0 : vector<1x128x128xf32> to vector<128x128xf32>
    %c0_2 = arith.constant 0 : index
    %c0_3 = arith.constant 0 : index
    %2 = vector.load %arg2[%c0_2, %c0_3] : memref<1x128xf32, #tpu.memory_space<vmem>>, vector<1x128xf32>
    %c0_4 = arith.constant 0 : index
    %c0_5 = arith.constant 0 : index
    %3 = vector.load %arg3[%c0_4, %c0_5] : memref<1x128xf32, #tpu.memory_space<vmem>>, vector<1x128xf32>
    %cst = arith.constant dense<0.000000e+00> : vector<128xf32>
    %4 = vector.multi_reduction <add>, %1, %cst [1] : vector<128x128xf32> to vector<128xf32>
    %5 = vector.shape_cast %4 : vector<128xf32> to vector<128x1xf32>
    %cst_6 = arith.constant 1.280000e+02 : f32
    %6 = vector.broadcast %cst_6 : f32 to vector<128x1xf32>
    %7 = arith.divf %5, %6 : vector<128x1xf32>
    %8 = vector.broadcast %7 : vector<128x1xf32> to vector<128x128xf32>
    %9 = arith.subf %1, %8 : vector<128x128xf32>
    %10 = arith.mulf %9, %9 : vector<128x128xf32>
    %cst_7 = arith.constant dense<0.000000e+00> : vector<128xf32>
    %11 = vector.multi_reduction <add>, %10, %cst_7 [1] : vector<128x128xf32> to vector<128xf32>
    %12 = vector.shape_cast %11 : vector<128xf32> to vector<128x1xf32>
    %cst_8 = arith.constant 1.280000e+02 : f32
    %13 = vector.broadcast %cst_8 : f32 to vector<128x1xf32>
    %14 = arith.divf %12, %13 : vector<128x1xf32>
    %15 = vector.broadcast %7 : vector<128x1xf32> to vector<128x128xf32>
    %16 = arith.subf %1, %15 : vector<128x128xf32>
    %cst_9 = arith.constant 9.99999974E-6 : f32
    %17 = vector.broadcast %cst_9 : f32 to vector<128x1xf32>
    %18 = arith.addf %14, %17 : vector<128x1xf32>
    %19 = math.rsqrt %18 : vector<128x1xf32>
    %20 = vector.broadcast %19 : vector<128x1xf32> to vector<128x128xf32>
    %21 = arith.mulf %16, %20 : vector<128x128xf32>
    %22 = vector.broadcast %2 : vector<1x128xf32> to vector<128x128xf32>
    %23 = arith.mulf %21, %22 : vector<128x128xf32>
    %24 = vector.broadcast %3 : vector<1x128xf32> to vector<128x128xf32>
    %25 = arith.addf %23, %24 : vector<128x128xf32>
    %26 = arith.truncf %25 : vector<128x128xf32> to vector<128x128xbf16>
    %c0_10 = arith.constant 0 : index
    %c0_11 = arith.constant 0 : index
    %27 = vector.load %arg4[%c0_10, %c0_11] : memref<128x384xbf16, #tpu.memory_space<vmem>>, vector<128x384xbf16>
    %cst_12 = arith.constant dense<0.000000e+00> : vector<128x384xf32>
    %28 = tpu.matmul %26, %27, %cst_12 {dimension_numbers = #tpu.dot_dimension_numbers<[1], [0], [0], [1], [0, 0, 1, 1], [], []>} : vector<128x128xbf16>, vector<128x384xbf16>, vector<128x384xf32> -> vector<128x384xf32>
    %c0_13 = arith.constant 0 : index
    %c0_14 = arith.constant 0 : index
    %29 = vector.load %arg5[%c0_13, %c0_14] : memref<1x384xf32, #tpu.memory_space<vmem>>, vector<1x384xf32>
    %30 = vector.broadcast %29 : vector<1x384xf32> to vector<128x384xf32>
    %31 = arith.addf %28, %30 : vector<128x384xf32>
    %32 = vector.extract_strided_slice %31 {offsets = [0, 0], sizes = [128, 128], strides = [1, 1]} : vector<128x384xf32> to vector<128x128xf32>
    %33 = arith.truncf %32 : vector<128x128xf32> to vector<128x128xbf16>
    %34 = vector.extract_strided_slice %31 {offsets = [0, 128], sizes = [128, 128], strides = [1, 1]} : vector<128x384xf32> to vector<128x128xf32>
    %35 = arith.truncf %34 : vector<128x128xf32> to vector<128x128xbf16>
    %36 = vector.extract_strided_slice %31 {offsets = [0, 256], sizes = [128, 128], strides = [1, 1]} : vector<128x384xf32> to vector<128x128xf32>
    %37 = arith.truncf %36 : vector<128x128xf32> to vector<128x128xbf16>
    %38 = vector.extract_strided_slice %33 {offsets = [0, 0], sizes = [128, 32], strides = [1, 1]} : vector<128x128xbf16> to vector<128x32xbf16>
    %39 = vector.extract_strided_slice %35 {offsets = [0, 0], sizes = [128, 32], strides = [1, 1]} : vector<128x128xbf16> to vector<128x32xbf16>
    %40 = vector.extract_strided_slice %37 {offsets = [0, 0], sizes = [128, 32], strides = [1, 1]} : vector<128x128xbf16> to vector<128x32xbf16>
    %cst_15 = arith.constant dense<0.000000e+00> : vector<128x128xf32>
    %41 = tpu.matmul %38, %39, %cst_15 {dimension_numbers = #tpu.dot_dimension_numbers<[1], [1], [0], [0], [0, 0, 1, 0], [], []>} : vector<128x32xbf16>, vector<128x32xbf16>, vector<128x128xf32> -> vector<128x128xf32>
    %cst_16 = arith.constant dense<0xFF800000> : vector<128xf32>
    %42 = vector.multi_reduction <maximumf>, %41, %cst_16 [1] : vector<128x128xf32> to vector<128xf32>
    %43 = vector.shape_cast %42 : vector<128xf32> to vector<128x1xf32>
    %44 = vector.broadcast %43 : vector<128x1xf32> to vector<128x128xf32>
    %45 = arith.subf %41, %44 : vector<128x128xf32>
    %46 = math.exp %45 : vector<128x128xf32>
    %cst_17 = arith.constant dense<0.000000e+00> : vector<128xf32>
    %47 = vector.multi_reduction <add>, %46, %cst_17 [1] : vector<128x128xf32> to vector<128xf32>
    %48 = vector.shape_cast %47 : vector<128xf32> to vector<128x1xf32>
    %49 = tpu.reciprocal %48 {approx = true} : vector<128x1xf32> -> vector<128x1xf32>
    %50 = vector.broadcast %49 : vector<128x1xf32> to vector<128x128xf32>
    %51 = arith.mulf %46, %50 : vector<128x128xf32>
    %52 = arith.truncf %51 : vector<128x128xf32> to vector<128x128xbf16>
    %cst_18 = arith.constant dense<0.000000e+00> : vector<128x32xf32>
    %53 = tpu.matmul %52, %40, %cst_18 {dimension_numbers = #tpu.dot_dimension_numbers<[1], [0], [0], [1], [0, 0, 1, 1], [], []>} : vector<128x128xbf16>, vector<128x32xbf16>, vector<128x32xf32> -> vector<128x32xf32>
    %54 = vector.extract_strided_slice %33 {offsets = [0, 32], sizes = [128, 32], strides = [1, 1]} : vector<128x128xbf16> to vector<128x32xbf16>
    %55 = vector.extract_strided_slice %35 {offsets = [0, 32], sizes = [128, 32], strides = [1, 1]} : vector<128x128xbf16> to vector<128x32xbf16>
    %56 = vector.extract_strided_slice %37 {offsets = [0, 32], sizes = [128, 32], strides = [1, 1]} : vector<128x128xbf16> to vector<128x32xbf16>
    %cst_19 = arith.constant dense<0.000000e+00> : vector<128x128xf32>
    %57 = tpu.matmul %54, %55, %cst_19 {dimension_numbers = #tpu.dot_dimension_numbers<[1], [1], [0], [0], [0, 0, 1, 0], [], []>} : vector<128x32xbf16>, vector<128x32xbf16>, vector<128x128xf32> -> vector<128x128xf32>
    %cst_20 = arith.constant dense<0xFF800000> : vector<128xf32>
    %58 = vector.multi_reduction <maximumf>, %57, %cst_20 [1] : vector<128x128xf32> to vector<128xf32>
    %59 = vector.shape_cast %58 : vector<128xf32> to vector<128x1xf32>
    %60 = vector.broadcast %59 : vector<128x1xf32> to vector<128x128xf32>
    %61 = arith.subf %57, %60 : vector<128x128xf32>
    %62 = math.exp %61 : vector<128x128xf32>
    %cst_21 = arith.constant dense<0.000000e+00> : vector<128xf32>
    %63 = vector.multi_reduction <add>, %62, %cst_21 [1] : vector<128x128xf32> to vector<128xf32>
    %64 = vector.shape_cast %63 : vector<128xf32> to vector<128x1xf32>
    %65 = tpu.reciprocal %64 {approx = true} : vector<128x1xf32> -> vector<128x1xf32>
    %66 = vector.broadcast %65 : vector<128x1xf32> to vector<128x128xf32>
    %67 = arith.mulf %62, %66 : vector<128x128xf32>
    %68 = arith.truncf %67 : vector<128x128xf32> to vector<128x128xbf16>
    %cst_22 = arith.constant dense<0.000000e+00> : vector<128x32xf32>
    %69 = tpu.matmul %68, %56, %cst_22 {dimension_numbers = #tpu.dot_dimension_numbers<[1], [0], [0], [1], [0, 0, 1, 1], [], []>} : vector<128x128xbf16>, vector<128x32xbf16>, vector<128x32xf32> -> vector<128x32xf32>
    %70 = vector.extract_strided_slice %33 {offsets = [0, 64], sizes = [128, 32], strides = [1, 1]} : vector<128x128xbf16> to vector<128x32xbf16>
    %71 = vector.extract_strided_slice %35 {offsets = [0, 64], sizes = [128, 32], strides = [1, 1]} : vector<128x128xbf16> to vector<128x32xbf16>
    %72 = vector.extract_strided_slice %37 {offsets = [0, 64], sizes = [128, 32], strides = [1, 1]} : vector<128x128xbf16> to vector<128x32xbf16>
    %cst_23 = arith.constant dense<0.000000e+00> : vector<128x128xf32>
    %73 = tpu.matmul %70, %71, %cst_23 {dimension_numbers = #tpu.dot_dimension_numbers<[1], [1], [0], [0], [0, 0, 1, 0], [], []>} : vector<128x32xbf16>, vector<128x32xbf16>, vector<128x128xf32> -> vector<128x128xf32>
    %cst_24 = arith.constant dense<0xFF800000> : vector<128xf32>
    %74 = vector.multi_reduction <maximumf>, %73, %cst_24 [1] : vector<128x128xf32> to vector<128xf32>
    %75 = vector.shape_cast %74 : vector<128xf32> to vector<128x1xf32>
    %76 = vector.broadcast %75 : vector<128x1xf32> to vector<128x128xf32>
    %77 = arith.subf %73, %76 : vector<128x128xf32>
    %78 = math.exp %77 : vector<128x128xf32>
    %cst_25 = arith.constant dense<0.000000e+00> : vector<128xf32>
    %79 = vector.multi_reduction <add>, %78, %cst_25 [1] : vector<128x128xf32> to vector<128xf32>
    %80 = vector.shape_cast %79 : vector<128xf32> to vector<128x1xf32>
    %81 = tpu.reciprocal %80 {approx = true} : vector<128x1xf32> -> vector<128x1xf32>
    %82 = vector.broadcast %81 : vector<128x1xf32> to vector<128x128xf32>
    %83 = arith.mulf %78, %82 : vector<128x128xf32>
    %84 = arith.truncf %83 : vector<128x128xf32> to vector<128x128xbf16>
    %cst_26 = arith.constant dense<0.000000e+00> : vector<128x32xf32>
    %85 = tpu.matmul %84, %72, %cst_26 {dimension_numbers = #tpu.dot_dimension_numbers<[1], [0], [0], [1], [0, 0, 1, 1], [], []>} : vector<128x128xbf16>, vector<128x32xbf16>, vector<128x32xf32> -> vector<128x32xf32>
    %86 = vector.extract_strided_slice %33 {offsets = [0, 96], sizes = [128, 32], strides = [1, 1]} : vector<128x128xbf16> to vector<128x32xbf16>
    %87 = vector.extract_strided_slice %35 {offsets = [0, 96], sizes = [128, 32], strides = [1, 1]} : vector<128x128xbf16> to vector<128x32xbf16>
    %88 = vector.extract_strided_slice %37 {offsets = [0, 96], sizes = [128, 32], strides = [1, 1]} : vector<128x128xbf16> to vector<128x32xbf16>
    %cst_27 = arith.constant dense<0.000000e+00> : vector<128x128xf32>
    %89 = tpu.matmul %86, %87, %cst_27 {dimension_numbers = #tpu.dot_dimension_numbers<[1], [1], [0], [0], [0, 0, 1, 0], [], []>} : vector<128x32xbf16>, vector<128x32xbf16>, vector<128x128xf32> -> vector<128x128xf32>
    %cst_28 = arith.constant dense<0xFF800000> : vector<128xf32>
    %90 = vector.multi_reduction <maximumf>, %89, %cst_28 [1] : vector<128x128xf32> to vector<128xf32>
    %91 = vector.shape_cast %90 : vector<128xf32> to vector<128x1xf32>
    %92 = vector.broadcast %91 : vector<128x1xf32> to vector<128x128xf32>
    %93 = arith.subf %89, %92 : vector<128x128xf32>
    %94 = math.exp %93 : vector<128x128xf32>
    %cst_29 = arith.constant dense<0.000000e+00> : vector<128xf32>
    %95 = vector.multi_reduction <add>, %94, %cst_29 [1] : vector<128x128xf32> to vector<128xf32>
    %96 = vector.shape_cast %95 : vector<128xf32> to vector<128x1xf32>
    %97 = tpu.reciprocal %96 {approx = true} : vector<128x1xf32> -> vector<128x1xf32>
    %98 = vector.broadcast %97 : vector<128x1xf32> to vector<128x128xf32>
    %99 = arith.mulf %94, %98 : vector<128x128xf32>
    %100 = arith.truncf %99 : vector<128x128xf32> to vector<128x128xbf16>
    %cst_30 = arith.constant dense<0.000000e+00> : vector<128x32xf32>
    %101 = tpu.matmul %100, %88, %cst_30 {dimension_numbers = #tpu.dot_dimension_numbers<[1], [0], [0], [1], [0, 0, 1, 1], [], []>} : vector<128x128xbf16>, vector<128x32xbf16>, vector<128x32xf32> -> vector<128x32xf32>
    %102 = tpu.concatenate %53, %69, %85, %101 in 1 : vector<128x32xf32>, vector<128x32xf32>, vector<128x32xf32>, vector<128x32xf32> -> vector<128x128xf32>
    %103 = arith.truncf %102 : vector<128x128xf32> to vector<128x128xbf16>
    %c0_31 = arith.constant 0 : index
    %c0_32 = arith.constant 0 : index
    %104 = vector.load %arg6[%c0_31, %c0_32] : memref<128x128xbf16, #tpu.memory_space<vmem>>, vector<128x128xbf16>
    %cst_33 = arith.constant dense<0.000000e+00> : vector<128x128xf32>
    %105 = tpu.matmul %103, %104, %cst_33 {dimension_numbers = #tpu.dot_dimension_numbers<[1], [0], [0], [1], [0, 0, 1, 1], [], []>} : vector<128x128xbf16>, vector<128x128xbf16>, vector<128x128xf32> -> vector<128x128xf32>
    %c0_34 = arith.constant 0 : index
    %c0_35 = arith.constant 0 : index
    %106 = vector.load %arg7[%c0_34, %c0_35] : memref<1x128xf32, #tpu.memory_space<vmem>>, vector<1x128xf32>
    %107 = vector.broadcast %106 : vector<1x128xf32> to vector<128x128xf32>
    %108 = arith.addf %105, %107 : vector<128x128xf32>
    %109 = arith.addf %1, %108 : vector<128x128xf32>
    %c0_36 = arith.constant 0 : index
    %c0_37 = arith.constant 0 : index
    %110 = vector.load %arg8[%c0_36, %c0_37] : memref<1x128xf32, #tpu.memory_space<vmem>>, vector<1x128xf32>
    %c0_38 = arith.constant 0 : index
    %c0_39 = arith.constant 0 : index
    %111 = vector.load %arg9[%c0_38, %c0_39] : memref<1x128xf32, #tpu.memory_space<vmem>>, vector<1x128xf32>
    %cst_40 = arith.constant dense<0.000000e+00> : vector<128xf32>
    %112 = vector.multi_reduction <add>, %109, %cst_40 [1] : vector<128x128xf32> to vector<128xf32>
    %113 = vector.shape_cast %112 : vector<128xf32> to vector<128x1xf32>
    %cst_41 = arith.constant 1.280000e+02 : f32
    %114 = vector.broadcast %cst_41 : f32 to vector<128x1xf32>
    %115 = arith.divf %113, %114 : vector<128x1xf32>
    %116 = vector.broadcast %115 : vector<128x1xf32> to vector<128x128xf32>
    %117 = arith.subf %109, %116 : vector<128x128xf32>
    %118 = arith.mulf %117, %117 : vector<128x128xf32>
    %cst_42 = arith.constant dense<0.000000e+00> : vector<128xf32>
    %119 = vector.multi_reduction <add>, %118, %cst_42 [1] : vector<128x128xf32> to vector<128xf32>
    %120 = vector.shape_cast %119 : vector<128xf32> to vector<128x1xf32>
    %cst_43 = arith.constant 1.280000e+02 : f32
    %121 = vector.broadcast %cst_43 : f32 to vector<128x1xf32>
    %122 = arith.divf %120, %121 : vector<128x1xf32>
    %123 = vector.broadcast %115 : vector<128x1xf32> to vector<128x128xf32>
    %124 = arith.subf %109, %123 : vector<128x128xf32>
    %cst_44 = arith.constant 9.99999974E-6 : f32
    %125 = vector.broadcast %cst_44 : f32 to vector<128x1xf32>
    %126 = arith.addf %122, %125 : vector<128x1xf32>
    %127 = math.rsqrt %126 : vector<128x1xf32>
    %128 = vector.broadcast %127 : vector<128x1xf32> to vector<128x128xf32>
    %129 = arith.mulf %124, %128 : vector<128x128xf32>
    %130 = vector.broadcast %110 : vector<1x128xf32> to vector<128x128xf32>
    %131 = arith.mulf %129, %130 : vector<128x128xf32>
    %132 = vector.broadcast %111 : vector<1x128xf32> to vector<128x128xf32>
    %133 = arith.addf %131, %132 : vector<128x128xf32>
    %134 = arith.truncf %133 : vector<128x128xf32> to vector<128x128xbf16>
    %c0_45 = arith.constant 0 : index
    %c0_46 = arith.constant 0 : index
    %135 = vector.load %arg10[%c0_45, %c0_46] : memref<128x512xbf16, #tpu.memory_space<vmem>>, vector<128x512xbf16>
    %cst_47 = arith.constant dense<0.000000e+00> : vector<128x512xf32>
    %136 = tpu.matmul %134, %135, %cst_47 {dimension_numbers = #tpu.dot_dimension_numbers<[1], [0], [0], [1], [0, 0, 1, 1], [], []>} : vector<128x128xbf16>, vector<128x512xbf16>, vector<128x512xf32> -> vector<128x512xf32>
    %c0_48 = arith.constant 0 : index
    %c0_49 = arith.constant 0 : index
    %137 = vector.load %arg11[%c0_48, %c0_49] : memref<1x512xf32, #tpu.memory_space<vmem>>, vector<1x512xf32>
    %138 = vector.broadcast %137 : vector<1x512xf32> to vector<128x512xf32>
    %139 = arith.addf %136, %138 : vector<128x512xf32>
    %cst_50 = arith.constant 5.000000e-01 : f32
    %140 = vector.broadcast %cst_50 : f32 to vector<128x512xf32>
    %141 = arith.mulf %140, %139 : vector<128x512xf32>
    %cst_51 = arith.constant 0.707106769 : f32
    %142 = vector.broadcast %cst_51 : f32 to vector<128x512xf32>
    %143 = arith.mulf %139, %142 : vector<128x512xf32>
    %144 = math.erf %143 : vector<128x512xf32>
    %cst_52 = arith.constant 1.000000e+00 : f32
    %145 = vector.broadcast %cst_52 : f32 to vector<128x512xf32>
    %146 = arith.addf %145, %144 : vector<128x512xf32>
    %147 = arith.mulf %141, %146 : vector<128x512xf32>
    %148 = arith.truncf %147 : vector<128x512xf32> to vector<128x512xbf16>
    %c0_53 = arith.constant 0 : index
    %c0_54 = arith.constant 0 : index
    %149 = vector.load %arg12[%c0_53, %c0_54] : memref<512x128xbf16, #tpu.memory_space<vmem>>, vector<512x128xbf16>
    %cst_55 = arith.constant dense<0.000000e+00> : vector<128x128xf32>
    %150 = tpu.matmul %148, %149, %cst_55 {dimension_numbers = #tpu.dot_dimension_numbers<[1], [0], [0], [1], [0, 0, 1, 1], [], []>} : vector<128x512xbf16>, vector<512x128xbf16>, vector<128x128xf32> -> vector<128x128xf32>
    %c0_56 = arith.constant 0 : index
    %c0_57 = arith.constant 0 : index
    %151 = vector.load %arg13[%c0_56, %c0_57] : memref<1x128xf32, #tpu.memory_space<vmem>>, vector<1x128xf32>
    %152 = vector.broadcast %151 : vector<1x128xf32> to vector<128x128xf32>
    %153 = arith.addf %150, %152 : vector<128x128xf32>
    %154 = arith.addf %109, %153 : vector<128x128xf32>
    %c0_58 = arith.constant 0 : index
    %c0_59 = arith.constant 0 : index
    %c0_60 = arith.constant 0 : index
    %155 = vector.load %arg14[%c0_58, %c0_59, %c0_60] : memref<1x128x128xf32, #tpu.memory_space<vmem>>, vector<1x128x128xf32>
    %156 = vector.shape_cast %155 : vector<1x128x128xf32> to vector<128x128xf32>
    %157 = vector.shape_cast %154 : vector<128x128xf32> to vector<1x128x128xf32>
    tpu.vector_store %arg14[%c0_58, %c0_59, %c0_60], %157 {strides = array<i32>} : memref<1x128x128xf32, #tpu.memory_space<vmem>>, vector<1x128x128xf32>,
    return
  }
  func.func @transform_0(%arg0: i32) -> (i32, i32, i32) {
    %c0_i32 = arith.constant 0 : i32
    %c0_i32_0 = arith.constant 0 : i32
    %c0_i32_1 = arith.constant 0 : i32
    return %arg0, %c0_i32, %c0_i32_0 : i32, i32, i32
  }
  func.func @transform_1(%arg0: i32) -> (i32, i32) {
    %c0_i32 = arith.constant 0 : i32
    %c0_i32_0 = arith.constant 0 : i32
    %c0_i32_1 = arith.constant 0 : i32
    return %c0_i32, %c0_i32_0 : i32, i32
  }
  func.func @transform_2(%arg0: i32) -> (i32, i32) {
    %c0_i32 = arith.constant 0 : i32
    %c0_i32_0 = arith.constant 0 : i32
    %c0_i32_1 = arith.constant 0 : i32
    return %c0_i32, %c0_i32_0 : i32, i32
  }
  func.func @transform_3(%arg0: i32) -> (i32, i32) {
    %c0_i32 = arith.constant 0 : i32
    %c0_i32_0 = arith.constant 0 : i32
    %c0_i32_1 = arith.constant 0 : i32
    return %c0_i32, %c0_i32_0 : i32, i32
  }
  func.func @transform_4(%arg0: i32) -> (i32, i32) {
    %c0_i32 = arith.constant 0 : i32
    %c0_i32_0 = arith.constant 0 : i32
    %c0_i32_1 = arith.constant 0 : i32
    return %c0_i32, %c0_i32_0 : i32, i32
  }
  func.func @transform_5(%arg0: i32) -> (i32, i32) {
    %c0_i32 = arith.constant 0 : i32
    %c0_i32_0 = arith.constant 0 : i32
    %c0_i32_1 = arith.constant 0 : i32
    return %c0_i32, %c0_i32_0 : i32, i32
  }
  func.func @transform_6(%arg0: i32) -> (i32, i32) {
    %c0_i32 = arith.constant 0 : i32
    %c0_i32_0 = arith.constant 0 : i32
    %c0_i32_1 = arith.constant 0 : i32
    return %c0_i32, %c0_i32_0 : i32, i32
  }
  func.func @transform_7(%arg0: i32) -> (i32, i32) {
    %c0_i32 = arith.constant 0 : i32
    %c0_i32_0 = arith.constant 0 : i32
    %c0_i32_1 = arith.constant 0 : i32
    return %c0_i32, %c0_i32_0 : i32, i32
  }
  func.func @transform_8(%arg0: i32) -> (i32, i32) {
    %c0_i32 = arith.constant 0 : i32
    %c0_i32_0 = arith.constant 0 : i32
    %c0_i32_1 = arith.constant 0 : i32
    return %c0_i32, %c0_i32_0 : i32, i32
  }
  func.func @transform_9(%arg0: i32) -> (i32, i32) {
    %c0_i32 = arith.constant 0 : i32
    %c0_i32_0 = arith.constant 0 : i32
    %c0_i32_1 = arith.constant 0 : i32
    return %c0_i32, %c0_i32_0 : i32, i32
  }
  func.func @transform_10(%arg0: i32) -> (i32, i32) {
    %c0_i32 = arith.constant 0 : i32
    %c0_i32_0 = arith.constant 0 : i32
    %c0_i32_1 = arith.constant 0 : i32
    return %c0_i32, %c0_i32_0 : i32, i32
  }
  func.func @transform_11(%arg0: i32) -> (i32, i32) {
    %c0_i32 = arith.constant 0 : i32
    %c0_i32_0 = arith.constant 0 : i32
    %c0_i32_1 = arith.constant 0 : i32
    return %c0_i32, %c0_i32_0 : i32, i32
  }
  func.func @transform_12(%arg0: i32) -> (i32, i32) {
    %c0_i32 = arith.constant 0 : i32
    %c0_i32_0 = arith.constant 0 : i32
    %c0_i32_1 = arith.constant 0 : i32
    return %c0_i32, %c0_i32_0 : i32, i32
  }
  func.func @transform_13(%arg0: i32) -> (i32, i32, i32) {
    %c0_i32 = arith.constant 0 : i32
    %c0_i32_0 = arith.constant 0 : i32
    %c0_i32_1 = arith.constant 0 : i32
    return %arg0, %c0_i32, %c0_i32_0 : i32, i32, i32
  }
}

</mosaic_0001>

<llo_original>
// kernel: tpu_custom_call.1
$region0: #{tpu_custom_call.1}
  #allocation0 [shape = 'u32[]', space=smem, size = 0x4, offset = 0x4, fixed_abs, tag = 'smem constant byte address 0x4 - core index']
  #allocation1 [shape = 'u32[144,128]{1,0:T(1,128)}', space=vmem, size = 0x12000, scoped, tag = 'internal scratch']
  %s0 = inlined_call_operand.hbm [shape: f32[2,128,128], index: 0, kind: input, shape index: {}, may-alias: {0,13}]
  %s1 = inlined_call_operand.hbm [shape: f32[1,128], index: 1, kind: input, shape index: {}]
  %s2 = inlined_call_operand.hbm [shape: f32[1,128], index: 2, kind: input, shape index: {}]
  %s3 = inlined_call_operand.hbm [shape: bf16[128,384], index: 3, kind: input, shape index: {}]
  %s4 = inlined_call_operand.hbm [shape: f32[1,384], index: 4, kind: input, shape index: {}]
  %s5 = inlined_call_operand.hbm [shape: bf16[128,128], index: 5, kind: input, shape index: {}]
  %s6 = inlined_call_operand.vmem [shape: f32[1,128], index: 6, kind: input, shape index: {}]
  %s7 = inlined_call_operand.vmem [shape: f32[1,128], index: 7, kind: input, shape index: {}]
  %s8 = inlined_call_operand.vmem [shape: f32[1,128], index: 8, kind: input, shape index: {}]
  %s9 = inlined_call_operand.vmem [shape: bf16[128,512], index: 9, kind: input, shape index: {}]
  %s10 = inlined_call_operand.vmem [shape: f32[1,512], index: 10, kind: input, shape index: {}]
  %s11 = inlined_call_operand.vmem [shape: bf16[512,128], index: 11, kind: input, shape index: {}]
  %s12 = inlined_call_operand.vmem [shape: f32[1,128], index: 12, kind: input, shape index: {}]
  %s13 = inlined_call_operand.hbm [shape: f32[2,128,128], index: 13, kind: output, shape index: {}, may-alias: {0,13}]
  %s14 = sld [smem:[#allocation0]]
  $region109: #{tpu_custom_call.1} parent=0
    _
  %s16 = ssub.s32 1, %s14
  %s17 = scalar_select 0, %s16, %s14
  $region1: #{tpu_custom_call.1} parent=0
    #allocation2 [shape = 'u8[131072]{0}', space=vmem, size = 0x20000, scoped, tag = 'input window, operand 0']
    #allocation3 [shape = 's32[2]{0}', space=sflag, size = 0x8, scoped, tag = 'scoped memory for tpu_custom_call.1']
    #allocation4 [shape = 's32[2]{0}', space=sflag, size = 0x8, scoped, tag = 'scoped memory for tpu_custom_call.1']
    #allocation5 [shape = 'u8[512]{0}', space=vmem, size = 0x400, scoped, tag = 'input window, operand 1, single buffered']
    #allocation6 [shape = 's32[1]{0}', space=sflag, size = 0x4, scoped, tag = 'scoped memory for tpu_custom_call.1']
    #allocation7 [shape = 'u8[512]{0}', space=vmem, size = 0x400, scoped, tag = 'input window, operand 2, single buffered']
    #allocation8 [shape = 'u8[98304]{0}', space=vmem, size = 0x18000, scoped, tag = 'input window, operand 3, single buffered']
    #allocation9 [shape = 's32[1]{0}', space=sflag, size = 0x4, scoped, tag = 'scoped memory for tpu_custom_call.1']
    #allocation10 [shape = 'u8[1536]{0}', space=vmem, size = 0x800, scoped, tag = 'input window, operand 4, single buffered']
    #allocation11 [shape = 'u8[32768]{0}', space=vmem, size = 0x8000, scoped, tag = 'input window, operand 5, single buffered']
    #allocation12 [shape = 's32[1]{0}', space=sflag, size = 0x4, scoped, tag = 'scoped memory for tpu_custom_call.1']
    #allocation13 [shape = 'u8[131072]{0}', space=vmem, size = 0x20000, scoped, tag = 'output window, operand 0']
    %18 = vsyncpa [#allocation3], 0
    %s19 = scalar_lea.sflag [#allocation3], 1
    %20 = vsyncpa %s19, 0
    %21 = vsyncpa [#allocation6], 0
    %22 = vsyncpa [#allocation9], 0
    %23 = vsyncpa [#allocation12], 0
    %24 = vsyncpa [#allocation4], 0
    %s25 = scalar_lea.sflag [#allocation4], 1
    %26 = vsyncpa %s25, 0
    loop: start=0, step=1, limit=4
    $region2: #{tpu_custom_call.1} parent=1 // loop_pre_header
      _
    $region3: #{tpu_custom_call.1} parent=1 // loop_header
      %s28 = sphi 0, %s32
      %p29 = scmp.ge.s32.totalorder %s28, 4
      %s38 = sphi 0, %s40
      %s41 = sphi 0, %s38
      %s42 = sphi 0, %s41
      %s58 = sphi 0, %s42
      %s62 = sphi 0, %s62
      %s64 = sphi 0, %s62
      %s65 = sphi 0, %s64
      %s79 = sphi 0, %s65
      %s83 = sphi 0, %s83
      %s85 = sphi 0, %s83
      %s86 = sphi 0, %s85
      %s100 = sphi 0, %s86
      %s104 = sphi 0, %s104
      %s106 = sphi 0, %s104
      %s107 = sphi 0, %s106
      %s121 = sphi 0, %s107
      %s125 = sphi 0, %s125
      %s127 = sphi 0, %s125
      %s128 = sphi 0, %s127
      %s142 = sphi 0, %s128
      %s146 = sphi 0, %s146
      %s148 = sphi 0, %s146
      %s149 = sphi 0, %s148
      %s163 = sphi 0, %s149
      %s167 = sphi 0, %s167
      %s169 = sphi 0, %s167
      %s170 = sphi 0, %s169
      %s184 = sphi 0, %s170
      %s188 = sphi 0, %s188
      %s190 = sphi 0, %s188
      %s191 = sphi 0, %s190
      %s205 = sphi 0, %s191
      %s209 = sphi 0, %s209
      %s211 = sphi 0, %s209
      %s212 = sphi 0, %s211
      %s226 = sphi 0, %s212
      %s230 = sphi 0, %s230
      %s232 = sphi 0, %s230
      %s233 = sphi 0, %s232
      %s247 = sphi 0, %s233
      %s251 = sphi 0, %s251
      %s253 = sphi 0, %s251
      %s254 = sphi 0, %s253
      %s268 = sphi 0, %s254
      %s272 = sphi 0, %s272
      %s274 = sphi 0, %s272
      %s275 = sphi 0, %s274
      %s289 = sphi 0, %s275
      %s293 = sphi 0, %s293
      %s295 = sphi 0, %s293
      %s296 = sphi 0, %s295
      %s310 = sphi 0, %s296
      %s316 = sphi 0, %s318
      %s319 = sphi 0, %s316
      %s320 = sphi 0, %s319
      %s336 = sphi 0, %s320
    $region4: #{tpu_custom_call.1} parent=1 // loop_header_branch
      %31 = sbr.rel (%p29) target = $region8
    $region5: #{tpu_custom_call.1} parent=1 // loop_body
      %s33 = ssub.s32 %s28, 1
      %s34 = ssub.s32 %s28, 2
      %s35 = sadd.s32 %s28, 1
      %s36 = ssub.s32 %s28, %s35
      %p37 = scmp.eq.s32.totalorder %s36, 0
      %s39 = sadd.s32 %s38, 1
      %s40 = scalar_select %p37, %s38, %s39
      %p43 = pneg %p37
      %p44 = scmp.eq.s32.totalorder %s28, 1
      %p45 = por %p43, %p44
      %p46 = scmp.ne.s32.totalorder %s38, %s41
      %p47 = scmp.eq.s32.totalorder %s28, 0
      %p48 = por %p46, %p47
      %p49 = scmp.ne.s32.totalorder %s38, %s41
      %p50 = scmp.eq.s32.totalorder %s33, 1
      %p51 = por %p49, %p50
      %p52 = scmp.ne.s32.totalorder %s41, %s42
      %p53 = scmp.eq.s32.totalorder %s33, 0
      %p54 = por %p52, %p53
      %p55 = scmp.ne.s32.totalorder %s41, %s42
      %p56 = scmp.eq.s32.totalorder %s34, 1
      %p57 = por %p55, %p56
      %p59 = scmp.ne.s32.totalorder %s42, %s58
      %p60 = scmp.eq.s32.totalorder %s34, 0
      %p61 = por %p59, %p60
      %s63 = sadd.s32 %s62, 1
      %p66 = scmp.eq.s32.totalorder %s28, 1
      %p67 = scmp.ne.s32.totalorder %s62, %s64
      %p68 = scmp.eq.s32.totalorder %s28, 0
      %p69 = por %p67, %p68
      %p70 = scmp.ne.s32.totalorder %s62, %s64
      %p71 = scmp.eq.s32.totalorder %s33, 1
      %p72 = por %p70, %p71
      %p73 = scmp.ne.s32.totalorder %s64, %s65
      %p74 = scmp.eq.s32.totalorder %s33, 0
      %p75 = por %p73, %p74
      %p76 = scmp.ne.s32.totalorder %s64, %s65
      %p77 = scmp.eq.s32.totalorder %s34, 1
      %p78 = por %p76, %p77
      %p80 = scmp.ne.s32.totalorder %s65, %s79
      %p81 = scmp.eq.s32.totalorder %s34, 0
      %p82 = por %p80, %p81
      %s84 = sadd.s32 %s83, 1
      %p87 = scmp.eq.s32.totalorder %s28, 1
      %p88 = scmp.ne.s32.totalorder %s83, %s85
      %p89 = scmp.eq.s32.totalorder %s28, 0
      %p90 = por %p88, %p89
      %p91 = scmp.ne.s32.totalorder %s83, %s85
      %p92 = scmp.eq.s32.totalorder %s33, 1
      %p93 = por %p91, %p92
      %p94 = scmp.ne.s32.totalorder %s85, %s86
      %p95 = scmp.eq.s32.totalorder %s33, 0
      %p96 = por %p94, %p95
      %p97 = scmp.ne.s32.totalorder %s85, %s86
      %p98 = scmp.eq.s32.totalorder %s34, 1
      %p99 = por %p97, %p98
      %p101 = scmp.ne.s32.totalorder %s86, %s100
      %p102 = scmp.eq.s32.totalorder %s34, 0
      %p103 = por %p101, %p102
      %s105 = sadd.s32 %s104, 1
      %p108 = scmp.eq.s32.totalorder %s28, 1
      %p109 = scmp.ne.s32.totalorder %s104, %s106
      %p110 = scmp.eq.s32.totalorder %s28, 0
      %p111 = por %p109, %p110
      %p112 = scmp.ne.s32.totalorder %s104, %s106
      %p113 = scmp.eq.s32.totalorder %s33, 1
      %p114 = por %p112, %p113
      %p115 = scmp.ne.s32.totalorder %s106, %s107
      %p116 = scmp.eq.s32.totalorder %s33, 0
      %p117 = por %p115, %p116
      %p118 = scmp.ne.s32.totalorder %s106, %s107
      %p119 = scmp.eq.s32.totalorder %s34, 1
      %p120 = por %p118, %p119
      %p122 = scmp.ne.s32.totalorder %s107, %s121
      %p123 = scmp.eq.s32.totalorder %s34, 0
      %p124 = por %p122, %p123
      %s126 = sadd.s32 %s125, 1
      %p129 = scmp.eq.s32.totalorder %s28, 1
      %p130 = scmp.ne.s32.totalorder %s125, %s127
      %p131 = scmp.eq.s32.totalorder %s28, 0
      %p132 = por %p130, %p131
      %p133 = scmp.ne.s32.totalorder %s125, %s127
      %p134 = scmp.eq.s32.totalorder %s33, 1
      %p135 = por %p133, %p134
      %p136 = scmp.ne.s32.totalorder %s127, %s128
      %p137 = scmp.eq.s32.totalorder %s33, 0
      %p138 = por %p136, %p137
      %p139 = scmp.ne.s32.totalorder %s127, %s128
      %p140 = scmp.eq.s32.totalorder %s34, 1
      %p141 = por %p139, %p140
      %p143 = scmp.ne.s32.totalorder %s128, %s142
      %p144 = scmp.eq.s32.totalorder %s34, 0
      %p145 = por %p143, %p144
      %s147 = sadd.s32 %s146, 1
      %p150 = scmp.eq.s32.totalorder %s28, 1
      %p151 = scmp.ne.s32.totalorder %s146, %s148
      %p152 = scmp.eq.s32.totalorder %s28, 0
      %p153 = por %p151, %p152
      %p154 = scmp.ne.s32.totalorder %s146, %s148
      %p155 = scmp.eq.s32.totalorder %s33, 1
      %p156 = por %p154, %p155
      %p157 = scmp.ne.s32.totalorder %s148, %s149
      %p158 = scmp.eq.s32.totalorder %s33, 0
      %p159 = por %p157, %p158
      %p160 = scmp.ne.s32.totalorder %s148, %s149
      %p161 = scmp.eq.s32.totalorder %s34, 1
      %p162 = por %p160, %p161
      %p164 = scmp.ne.s32.totalorder %s149, %s163
      %p165 = scmp.eq.s32.totalorder %s34, 0
      %p166 = por %p164, %p165
      %s168 = sadd.s32 %s167, 1
      %p171 = scmp.eq.s32.totalorder %s28, 1
      %p172 = scmp.ne.s32.totalorder %s167, %s169
      %p173 = scmp.eq.s32.totalorder %s28, 0
      %p174 = por %p172, %p173
      %p175 = scmp.ne.s32.totalorder %s167, %s169
      %p176 = scmp.eq.s32.totalorder %s33, 1
      %p177 = por %p175, %p176
      %p178 = scmp.ne.s32.totalorder %s169, %s170
      %p179 = scmp.eq.s32.totalorder %s33, 0
      %p180 = por %p178, %p179
      %p181 = scmp.ne.s32.totalorder %s169, %s170
      %p182 = scmp.eq.s32.totalorder %s34, 1
      %p183 = por %p181, %p182
      %p185 = scmp.ne.s32.totalorder %s170, %s184
      %p186 = scmp.eq.s32.totalorder %s34, 0
      %p187 = por %p185, %p186
      %s189 = sadd.s32 %s188, 1
      %p192 = scmp.eq.s32.totalorder %s28, 1
      %p193 = scmp.ne.s32.totalorder %s188, %s190
      %p194 = scmp.eq.s32.totalorder %s28, 0
      %p195 = por %p193, %p194
      %p196 = scmp.ne.s32.totalorder %s188, %s190
      %p197 = scmp.eq.s32.totalorder %s33, 1
      %p198 = por %p196, %p197
      %p199 = scmp.ne.s32.totalorder %s190, %s191
      %p200 = scmp.eq.s32.totalorder %s33, 0
      %p201 = por %p199, %p200
      %p202 = scmp.ne.s32.totalorder %s190, %s191
      %p203 = scmp.eq.s32.totalorder %s34, 1
      %p204 = por %p202, %p203
      %p206 = scmp.ne.s32.totalorder %s191, %s205
      %p207 = scmp.eq.s32.totalorder %s34, 0
      %p208 = por %p206, %p207
      %s210 = sadd.s32 %s209, 1
      %p213 = scmp.eq.s32.totalorder %s28, 1
      %p214 = scmp.ne.s32.totalorder %s209, %s211
      %p215 = scmp.eq.s32.totalorder %s28, 0
      %p216 = por %p214, %p215
      %p217 = scmp.ne.s32.totalorder %s209, %s211
      %p218 = scmp.eq.s32.totalorder %s33, 1
      %p219 = por %p217, %p218
      %p220 = scmp.ne.s32.totalorder %s211, %s212
      %p221 = scmp.eq.s32.totalorder %s33, 0
      %p222 = por %p220, %p221
      %p223 = scmp.ne.s32.totalorder %s211, %s212
      %p224 = scmp.eq.s32.totalorder %s34, 1
      %p225 = por %p223, %p224
      %p227 = scmp.ne.s32.totalorder %s212, %s226
      %p228 = scmp.eq.s32.totalorder %s34, 0
      %p229 = por %p227, %p228
      %s231 = sadd.s32 %s230, 1
      %p234 = scmp.eq.s32.totalorder %s28, 1
      %p235 = scmp.ne.s32.totalorder %s230, %s232
      %p236 = scmp.eq.s32.totalorder %s28, 0
      %p237 = por %p235, %p236
      %p238 = scmp.ne.s32.totalorder %s230, %s232
      %p239 = scmp.eq.s32.totalorder %s33, 1
      %p240 = por %p238, %p239
      %p241 = scmp.ne.s32.totalorder %s232, %s233
      %p242 = scmp.eq.s32.totalorder %s33, 0
      %p243 = por %p241, %p242
      %p244 = scmp.ne.s32.totalorder %s232, %s233
      %p245 = scmp.eq.s32.totalorder %s34, 1
      %p246 = por %p244, %p245
      %p248 = scmp.ne.s32.totalorder %s233, %s247
      %p249 = scmp.eq.s32.totalorder %s34, 0
      %p250 = por %p248, %p249
      %s252 = sadd.s32 %s251, 1
      %p255 = scmp.eq.s32.totalorder %s28, 1
      %p256 = scmp.ne.s32.totalorder %s251, %s253
      %p257 = scmp.eq.s32.totalorder %s28, 0
      %p258 = por %p256, %p257
      %p259 = scmp.ne.s32.totalorder %s251, %s253
      %p260 = scmp.eq.s32.totalorder %s33, 1
      %p261 = por %p259, %p260
      %p262 = scmp.ne.s32.totalorder %s253, %s254
      %p263 = scmp.eq.s32.totalorder %s33, 0
      %p264 = por %p262, %p263
      %p265 = scmp.ne.s32.totalorder %s253, %s254
      %p266 = scmp.eq.s32.totalorder %s34, 1
      %p267 = por %p265, %p266
      %p269 = scmp.ne.s32.totalorder %s254, %s268
      %p270 = scmp.eq.s32.totalorder %s34, 0
      %p271 = por %p269, %p270
      %s273 = sadd.s32 %s272, 1
      %p276 = scmp.eq.s32.totalorder %s28, 1
      %p277 = scmp.ne.s32.totalorder %s272, %s274
      %p278 = scmp.eq.s32.totalorder %s28, 0
      %p279 = por %p277, %p278
      %p280 = scmp.ne.s32.totalorder %s272, %s274
      %p281 = scmp.eq.s32.totalorder %s33, 1
      %p282 = por %p280, %p281
      %p283 = scmp.ne.s32.totalorder %s274, %s275
      %p284 = scmp.eq.s32.totalorder %s33, 0
      %p285 = por %p283, %p284
      %p286 = scmp.ne.s32.totalorder %s274, %s275
      %p287 = scmp.eq.s32.totalorder %s34, 1
      %p288 = por %p286, %p287
      %p290 = scmp.ne.s32.totalorder %s275, %s289
      %p291 = scmp.eq.s32.totalorder %s34, 0
      %p292 = por %p290, %p291
      %s294 = sadd.s32 %s293, 1
      %p297 = scmp.eq.s32.totalorder %s28, 1
      %p298 = scmp.ne.s32.totalorder %s293, %s295
      %p299 = scmp.eq.s32.totalorder %s28, 0
      %p300 = por %p298, %p299
      %p301 = scmp.ne.s32.totalorder %s293, %s295
      %p302 = scmp.eq.s32.totalorder %s33, 1
      %p303 = por %p301, %p302
      %p304 = scmp.ne.s32.totalorder %s295, %s296
      %p305 = scmp.eq.s32.totalorder %s33, 0
      %p306 = por %p304, %p305
      %p307 = scmp.ne.s32.totalorder %s295, %s296
      %p308 = scmp.eq.s32.totalorder %s34, 1
      %p309 = por %p307, %p308
      %p311 = scmp.ne.s32.totalorder %s296, %s310
      %p312 = scmp.eq.s32.totalorder %s34, 0
      %p313 = por %p311, %p312
      %s314 = ssub.s32 %s28, %s35
      %p315 = scmp.eq.s32.totalorder %s314, 0
      %s317 = sadd.s32 %s316, 1
      %s318 = scalar_select %p315, %s316, %s317
      %p321 = pneg %p315
      %p322 = scmp.eq.s32.totalorder %s28, 1
      %p323 = por %p321, %p322
      %p324 = scmp.ne.s32.totalorder %s316, %s319
      %p325 = scmp.eq.s32.totalorder %s28, 0
      %p326 = por %p324, %p325
      %p327 = scmp.ne.s32.totalorder %s316, %s319
      %p328 = scmp.eq.s32.totalorder %s33, 1
      %p329 = por %p327, %p328
      %p330 = scmp.ne.s32.totalorder %s319, %s320
      %p331 = scmp.eq.s32.totalorder %s33, 0
      %p332 = por %p330, %p331
      %p333 = scmp.ne.s32.totalorder %s319, %s320
      %p334 = scmp.eq.s32.totalorder %s34, 1
      %p335 = por %p333, %p334
      %p337 = scmp.ne.s32.totalorder %s320, %s336
      %p338 = scmp.eq.s32.totalorder %s34, 0
      %p339 = por %p337, %p338
      %p340 = scmp.le.s32.totalorder 1, %s28
      %p341 = scmp.lt.s32.totalorder %s28, 3
      %p342 = pnand %p340, %p341
      %p343 = pneg %p342
      // Predicated region
      $region9: #{tpu_custom_call.1} parent=5 // pred_check
        _
      $region10: #{tpu_custom_call.1} parent=5 // pred_check_branch
        %345 = sbr.rel (%p342) target = $region12
      $region11: #{tpu_custom_call.1} parent=5 // pred_region
        %s346 = ssub.s32 %s28, 1
        // Predicated region
        $region13: #{tpu_custom_call.1} parent=11 // pred_check
          %p347 = pneg %p75
        $region14: #{tpu_custom_call.1} parent=11 // pred_check_branch
          %349 = sbr.rel (%p347) target = $region16
        $region15: #{tpu_custom_call.1} parent=11 // pred_region
          %s351 = ssub.s32 16, 16
          %352 = vsyncadd [#allocation6], %s351
          %s354 = sshll.u32 [#allocation5], 4
          %s355 = int_to_ptr.vmem [resolvable:$true] %s354
          %357 = dma.hbm_to_vmem [thread:$0]  %s1, 16, %s355, [#allocation6]
        $region16: #{tpu_custom_call.1} parent=11 // pred_fallthru
          _
        // Predicated region
        $region17: #{tpu_custom_call.1} parent=11 // pred_check
          %p358 = pneg %p96
        $region18: #{tpu_custom_call.1} parent=11 // pred_check_branch
          %360 = sbr.rel (%p358) target = $region20
        $region19: #{tpu_custom_call.1} parent=11 // pred_region
          %s362 = ssub.s32 16, 16
          %363 = vsyncadd [#allocation6], %s362
          %s365 = sshll.u32 [#allocation7], 4
          %s366 = int_to_ptr.vmem [resolvable:$true] %s365
          %368 = dma.hbm_to_vmem [thread:$0]  %s2, 16, %s366, [#allocation6]
        $region20: #{tpu_custom_call.1} parent=11 // pred_fallthru
          _
        // Predicated region
        $region21: #{tpu_custom_call.1} parent=11 // pred_check
          %p369 = pneg %p117
        $region22: #{tpu_custom_call.1} parent=11 // pred_check_branch
          %371 = sbr.rel (%p369) target = $region24
        $region23: #{tpu_custom_call.1} parent=11 // pred_region
          %s373 = ssub.s32 3072, 3072
          %374 = vsyncadd [#allocation9], %s373
          %s375 = sshll.u32 [#allocation8], 4
          %s376 = int_to_ptr.vmem [resolvable:$true] %s375
          %381 = dma.hbm_to_vmem [thread:$0]  %s3, 3072, %s376, [#allocation9], 192, 192, 12
        $region24: #{tpu_custom_call.1} parent=11 // pred_fallthru
          _
        // Predicated region
        $region25: #{tpu_custom_call.1} parent=11 // pred_check
          %p382 = pneg %p138
        $region26: #{tpu_custom_call.1} parent=11 // pred_check_branch
          %384 = sbr.rel (%p382) target = $region28
        $region27: #{tpu_custom_call.1} parent=11 // pred_region
          %s386 = ssub.s32 48, 48
          %387 = vsyncadd [#allocation9], %s386
          %s389 = sshll.u32 [#allocation10], 4
          %s390 = int_to_ptr.vmem [resolvable:$true] %s389
          %392 = dma.hbm_to_vmem [thread:$0]  %s4, 48, %s390, [#allocation9]
        $region28: #{tpu_custom_call.1} parent=11 // pred_fallthru
          _
        // Predicated region
        $region29: #{tpu_custom_call.1} parent=11 // pred_check
          %p393 = pneg %p159
        $region30: #{tpu_custom_call.1} parent=11 // pred_check_branch
          %395 = sbr.rel (%p393) target = $region32
        $region31: #{tpu_custom_call.1} parent=11 // pred_region
          %s397 = ssub.s32 1024, 1024
          %398 = vsyncadd [#allocation12], %s397
          %s399 = sshll.u32 [#allocation11], 4
          %s400 = int_to_ptr.vmem [resolvable:$true] %s399
          %405 = dma.hbm_to_vmem [thread:$0]  %s5, 1024, %s400, [#allocation12], 64, 64, 4
        $region32: #{tpu_custom_call.1} parent=11 // pred_fallthru
          _
        // Predicated region
        $region33: #{tpu_custom_call.1} parent=11 // pred_check
          %p406 = pneg %p180
        $region34: #{tpu_custom_call.1} parent=11 // pred_check_branch
          %408 = sbr.rel (%p406) target = $region36
        $region35: #{tpu_custom_call.1} parent=11 // pred_region
          _
        $region36: #{tpu_custom_call.1} parent=11 // pred_fallthru
          _
        // Predicated region
        $region37: #{tpu_custom_call.1} parent=11 // pred_check
          %p409 = pneg %p201
        $region38: #{tpu_custom_call.1} parent=11 // pred_check_branch
          %411 = sbr.rel (%p409) target = $region40
        $region39: #{tpu_custom_call.1} parent=11 // pred_region
          _
        $region40: #{tpu_custom_call.1} parent=11 // pred_fallthru
          _
        // Predicated region
        $region41: #{tpu_custom_call.1} parent=11 // pred_check
          %p412 = pneg %p222
        $region42: #{tpu_custom_call.1} parent=11 // pred_check_branch
          %414 = sbr.rel (%p412) target = $region44
        $region43: #{tpu_custom_call.1} parent=11 // pred_region
          _
        $region44: #{tpu_custom_call.1} parent=11 // pred_fallthru
          _
        // Predicated region
        $region45: #{tpu_custom_call.1} parent=11 // pred_check
          %p415 = pneg %p243
        $region46: #{tpu_custom_call.1} parent=11 // pred_check_branch
          %417 = sbr.rel (%p415) target = $region48
        $region47: #{tpu_custom_call.1} parent=11 // pred_region
          _
        $region48: #{tpu_custom_call.1} parent=11 // pred_fallthru
          _
        // Predicated region
        $region49: #{tpu_custom_call.1} parent=11 // pred_check
          %p418 = pneg %p264
        $region50: #{tpu_custom_call.1} parent=11 // pred_check_branch
          %420 = sbr.rel (%p418) target = $region52
        $region51: #{tpu_custom_call.1} parent=11 // pred_region
          _
        $region52: #{tpu_custom_call.1} parent=11 // pred_fallthru
          _
        // Predicated region
        $region53: #{tpu_custom_call.1} parent=11 // pred_check
          %p421 = pneg %p285
        $region54: #{tpu_custom_call.1} parent=11 // pred_check_branch
          %423 = sbr.rel (%p421) target = $region56
        $region55: #{tpu_custom_call.1} parent=11 // pred_region
          _
        $region56: #{tpu_custom_call.1} parent=11 // pred_fallthru
          _
        // Predicated region
        $region57: #{tpu_custom_call.1} parent=11 // pred_check
          %p424 = pneg %p306
        $region58: #{tpu_custom_call.1} parent=11 // pred_check_branch
          %426 = sbr.rel (%p424) target = $region60
        $region59: #{tpu_custom_call.1} parent=11 // pred_region
          _
        $region60: #{tpu_custom_call.1} parent=11 // pred_fallthru
          _
      $region12: #{tpu_custom_call.1} parent=5 // pred_fallthru
        _
      %p427 = scmp.lt.s32.totalorder %s28, 2
      // Predicated region
      $region61: #{tpu_custom_call.1} parent=5 // pred_check
        %p428 = pneg %p427
      $region62: #{tpu_custom_call.1} parent=5 // pred_check_branch
        %430 = sbr.rel (%p428) target = $region64
      $region63: #{tpu_custom_call.1} parent=5 // pred_region
        // Predicated region
        $region65: #{tpu_custom_call.1} parent=63 // pred_check
          %p431 = pneg %p48
        $region66: #{tpu_custom_call.1} parent=63 // pred_check_branch
          %433 = sbr.rel (%p431) target = $region68
        $region67: #{tpu_custom_call.1} parent=63 // pred_region
          %s434 = sand.u32 %s38, 1
          %s435 = scalar_lea.sflag [#allocation3], %s434
          %s436 = sand.u32 %s38, 1
          %s437 = smul.addr %s436, 128
          %s438 = scalar_lea.vmem [#allocation2], %s437
          %s440 = ssub.s32 2048, 2048
          %441 = vsyncadd %s435, %s440
          %s442 = smul.addr %s28, 16
          %s443 = smul.addr %s442, 128
          %s444 = scalar_lea.hbm %s0, %s443
          %s445 = sshll.u32 %s438, 4
          %s446 = int_to_ptr.vmem [resolvable:$true] %s445
          %451 = dma.hbm_to_vmem [thread:$0]  %s444, 2048, %s446, %s435, 128, 128, 8
        $region68: #{tpu_custom_call.1} parent=63 // pred_fallthru
          _
      $region64: #{tpu_custom_call.1} parent=5 // pred_fallthru
        _
      %p452 = scmp.le.s32.totalorder 1, %s28
      %p453 = scmp.lt.s32.totalorder %s28, 3
      %p454 = pnand %p452, %p453
      %p455 = pneg %p454
      // Predicated region
      $region69: #{tpu_custom_call.1} parent=5 // pred_check
        _
      $region70: #{tpu_custom_call.1} parent=5 // pred_check_branch
        %457 = sbr.rel (%p454) target = $region72
      $region71: #{tpu_custom_call.1} parent=5 // pred_region
        %s458 = ssub.s32 %s28, 1
        %s459 = sand.u32 %s41, 1
        %s460 = scalar_lea.sflag [#allocation3], %s459
        %s461 = sand.u32 %s41, 1
        %s462 = smul.addr %s461, 128
        %s463 = scalar_lea.vmem [#allocation2], %s462
        // Predicated region
        $region73: #{tpu_custom_call.1} parent=71 // pred_check
          %p464 = pneg %p54
        $region74: #{tpu_custom_call.1} parent=71 // pred_check_branch
          %466 = sbr.rel (%p464) target = $region76
        $region75: #{tpu_custom_call.1} parent=71 // pred_region
          %467 = dma.done %s460, 2048
        $region76: #{tpu_custom_call.1} parent=71 // pred_fallthru
          _
        // Predicated region
        $region77: #{tpu_custom_call.1} parent=71 // pred_check
          %p468 = pneg %p75
        $region78: #{tpu_custom_call.1} parent=71 // pred_check_branch
          %470 = sbr.rel (%p468) target = $region80
        $region79: #{tpu_custom_call.1} parent=71 // pred_region
          %471 = dma.done [#allocation6], 16
        $region80: #{tpu_custom_call.1} parent=71 // pred_fallthru
          _
        // Predicated region
        $region81: #{tpu_custom_call.1} parent=71 // pred_check
          %p472 = pneg %p96
        $region82: #{tpu_custom_call.1} parent=71 // pred_check_branch
          %474 = sbr.rel (%p472) target = $region84
        $region83: #{tpu_custom_call.1} parent=71 // pred_region
          %475 = dma.done [#allocation6], 16
        $region84: #{tpu_custom_call.1} parent=71 // pred_fallthru
          _
        // Predicated region
        $region85: #{tpu_custom_call.1} parent=71 // pred_check
          %p476 = pneg %p117
        $region86: #{tpu_custom_call.1} parent=71 // pred_check_branch
          %478 = sbr.rel (%p476) target = $region88
        $region87: #{tpu_custom_call.1} parent=71 // pred_region
          %479 = dma.done [#allocation9], 3072
        $region88: #{tpu_custom_call.1} parent=71 // pred_fallthru
          _
        // Predicated region
        $region89: #{tpu_custom_call.1} parent=71 // pred_check
          %p480 = pneg %p138
        $region90: #{tpu_custom_call.1} parent=71 // pred_check_branch
          %482 = sbr.rel (%p480) target = $region92
        $region91: #{tpu_custom_call.1} parent=71 // pred_region
          %483 = dma.done [#allocation9], 48
        $region92: #{tpu_custom_call.1} parent=71 // pred_fallthru
          _
        // Predicated region
        $region93: #{tpu_custom_call.1} parent=71 // pred_check
          %p484 = pneg %p159
        $region94: #{tpu_custom_call.1} parent=71 // pred_check_branch
          %486 = sbr.rel (%p484) target = $region96
        $region95: #{tpu_custom_call.1} parent=71 // pred_region
          %487 = dma.done [#allocation12], 1024
        $region96: #{tpu_custom_call.1} parent=71 // pred_fallthru
          _
        %s488 = sand.u32 %s41, 1
        %s489 = scalar_lea.sflag [#allocation3], %s488
        %s490 = sand.u32 %s41, 1
        %s491 = smul.addr %s490, 128
        %s492 = scalar_lea.vmem [#allocation2], %s491
        %p493 = pneg %p54
        %p494 = pneg %p51
        %p495 = pneg %p75
        %p496 = pneg %p72
        %p497 = pneg %p96
        %p498 = pneg %p93
        %p499 = pneg %p117
        %p500 = pneg %p114
        %p501 = pneg %p138
        %p502 = pneg %p135
        %p503 = pneg %p159
        %p504 = pneg %p156
        %p505 = pneg %p180
        %p506 = pneg %p177
        %p507 = pneg %p201
        %p508 = pneg %p198
        %p509 = pneg %p222
        %p510 = pneg %p219
        %p511 = pneg %p243
        %p512 = pneg %p240
        %p513 = pneg %p264
        %p514 = pneg %p261
        %p515 = pneg %p285
        %p516 = pneg %p282
        %p517 = pneg %p306
        %p518 = pneg %p303
        %p519 = pneg %p332
        %p520 = pneg %p329
        %s521 = sand.u32 %s319, 1
        %s522 = scalar_lea.sflag [#allocation4], %s521
        %s523 = sand.u32 %s319, 1
        %s524 = smul.addr %s523, 128
        %s525 = scalar_lea.vmem [#allocation13], %s524
        %v527 = vld [vmem:[%s463] sm:$0xff]
        %v528 = vld [vmem:[%s463 + $0x8] sm:$0xff]
        %v529 = vld [vmem:[%s463 + $0x10] sm:$0xff]
        %v530 = vld [vmem:[%s463 + $0x18] sm:$0xff]
        %v531 = vld [vmem:[%s463 + $0x20] sm:$0xff]
        %v532 = vld [vmem:[%s463 + $0x28] sm:$0xff]
        %v533 = vld [vmem:[%s463 + $0x30] sm:$0xff]
        %v534 = vld [vmem:[%s463 + $0x38] sm:$0xff]
        %v535 = vld [vmem:[%s463 + $0x40] sm:$0xff]
        %v536 = vld [vmem:[%s463 + $0x48] sm:$0xff]
        %v537 = vld [vmem:[%s463 + $0x50] sm:$0xff]
        %v538 = vld [vmem:[%s463 + $0x58] sm:$0xff]
        %v539 = vld [vmem:[%s463 + $0x60] sm:$0xff]
        %v540 = vld [vmem:[%s463 + $0x68] sm:$0xff]
        %v541 = vld [vmem:[%s463 + $0x70] sm:$0xff]
        %v542 = vld [vmem:[%s463 + $0x78] sm:$0xff]
        %v543 = vld [vmem:[#allocation5] sm:$0x1]
        %v544 = vld [vmem:[#allocation7] sm:$0x1]
        %545 = vadd.xlane.f32.xlu0 %v527
        %v546 = vpop.xlane.xlu0 %545
        %547 = vadd.xlane.f32.xlu0 %v528
        %v548 = vpop.xlane.xlu0 %547
        %549 = vadd.xlane.f32.xlu0 %v529
        %v550 = vpop.xlane.xlu0 %549
        %551 = vadd.xlane.f32.xlu0 %v530
        %v552 = vpop.xlane.xlu0 %551
        %553 = vadd.xlane.f32.xlu0 %v531
        %v554 = vpop.xlane.xlu0 %553
        %555 = vadd.xlane.f32.xlu0 %v532
        %v556 = vpop.xlane.xlu0 %555
        %557 = vadd.xlane.f32.xlu0 %v533
        %v558 = vpop.xlane.xlu0 %557
        %559 = vadd.xlane.f32.xlu0 %v534
        %v560 = vpop.xlane.xlu0 %559
        %561 = vadd.xlane.f32.xlu0 %v535
        %v562 = vpop.xlane.xlu0 %561
        %563 = vadd.xlane.f32.xlu0 %v536
        %v564 = vpop.xlane.xlu0 %563
        %565 = vadd.xlane.f32.xlu0 %v537
        %v566 = vpop.xlane.xlu0 %565
        %567 = vadd.xlane.f32.xlu0 %v538
        %v568 = vpop.xlane.xlu0 %567
        %569 = vadd.xlane.f32.xlu0 %v539
        %v570 = vpop.xlane.xlu0 %569
        %571 = vadd.xlane.f32.xlu0 %v540
        %v572 = vpop.xlane.xlu0 %571
        %573 = vadd.xlane.f32.xlu0 %v541
        %v574 = vpop.xlane.xlu0 %573
        %575 = vadd.xlane.f32.xlu0 %v542
        %v576 = vpop.xlane.xlu0 %575
        %v577 = vrcp.pop 128.0
        %v578 = vmul.f32 %v546, %v577
        %v579 = vmul.f32 %v548, %v577
        %v580 = vmul.f32 %v550, %v577
        %v581 = vmul.f32 %v552, %v577
        %v582 = vmul.f32 %v554, %v577
        %v583 = vmul.f32 %v556, %v577
        %v584 = vmul.f32 %v558, %v577
        %v585 = vmul.f32 %v560, %v577
        %v586 = vmul.f32 %v562, %v577
        %v587 = vmul.f32 %v564, %v577
        %v588 = vmul.f32 %v566, %v577
        %v589 = vmul.f32 %v568, %v577
        %v590 = vmul.f32 %v570, %v577
        %v591 = vmul.f32 %v572, %v577
        %v592 = vmul.f32 %v574, %v577
        %v593 = vmul.f32 %v576, %v577
        %v594 = vsub.f32 %v527, %v578
        %v595 = vsub.f32 %v528, %v579
        %v596 = vsub.f32 %v529, %v580
        %v597 = vsub.f32 %v530, %v581
        %v598 = vsub.f32 %v531, %v582
        %v599 = vsub.f32 %v532, %v583
        %v600 = vsub.f32 %v533, %v584
        %v601 = vsub.f32 %v534, %v585
        %v602 = vsub.f32 %v535, %v586
        %v603 = vsub.f32 %v536, %v587
        %v604 = vsub.f32 %v537, %v588
        %v605 = vsub.f32 %v538, %v589
        %v606 = vsub.f32 %v539, %v590
        %v607 = vsub.f32 %v540, %v591
        %v608 = vsub.f32 %v541, %v592
        %v609 = vsub.f32 %v542, %v593
        %v610 = vmul.f32 %v594, %v594
        %v611 = vmul.f32 %v595, %v595
        %v612 = vmul.f32 %v596, %v596
        %v613 = vmul.f32 %v597, %v597
        %v614 = vmul.f32 %v598, %v598
        %v615 = vmul.f32 %v599, %v599
        %v616 = vmul.f32 %v600, %v600
        %v617 = vmul.f32 %v601, %v601
        %v618 = vmul.f32 %v602, %v602
        %v619 = vmul.f32 %v603, %v603
        %v620 = vmul.f32 %v604, %v604
        %v621 = vmul.f32 %v605, %v605
        %v622 = vmul.f32 %v606, %v606
        %v623 = vmul.f32 %v607, %v607
        %v624 = vmul.f32 %v608, %v608
        %v625 = vmul.f32 %v609, %v609
        %626 = vadd.xlane.f32.xlu0 %v610
        %v627 = vpop.xlane.xlu0 %626
        %628 = vadd.xlane.f32.xlu0 %v611
        %v629 = vpop.xlane.xlu0 %628
        %630 = vadd.xlane.f32.xlu0 %v612
        %v631 = vpop.xlane.xlu0 %630
        %632 = vadd.xlane.f32.xlu0 %v613
        %v633 = vpop.xlane.xlu0 %632
        %634 = vadd.xlane.f32.xlu0 %v614
        %v635 = vpop.xlane.xlu0 %634
        %636 = vadd.xlane.f32.xlu0 %v615
        %v637 = vpop.xlane.xlu0 %636
        %638 = vadd.xlane.f32.xlu0 %v616
        %v639 = vpop.xlane.xlu0 %638
        %640 = vadd.xlane.f32.xlu0 %v617
        %v641 = vpop.xlane.xlu0 %640
        %642 = vadd.xlane.f32.xlu0 %v618
        %v643 = vpop.xlane.xlu0 %642
        %644 = vadd.xlane.f32.xlu0 %v619
        %v645 = vpop.xlane.xlu0 %644
        %646 = vadd.xlane.f32.xlu0 %v620
        %v647 = vpop.xlane.xlu0 %646
        %648 = vadd.xlane.f32.xlu0 %v621
        %v649 = vpop.xlane.xlu0 %648
        %650 = vadd.xlane.f32.xlu0 %v622
        %v651 = vpop.xlane.xlu0 %650
        %652 = vadd.xlane.f32.xlu0 %v623
        %v653 = vpop.xlane.xlu0 %652
        %654 = vadd.xlane.f32.xlu0 %v624
        %v655 = vpop.xlane.xlu0 %654
        %656 = vadd.xlane.f32.xlu0 %v625
        %v657 = vpop.xlane.xlu0 %656
        %v658 = vmul.f32 %v627, %v577
        %v659 = vmul.f32 %v629, %v577
        %v660 = vmul.f32 %v631, %v577
        %v661 = vmul.f32 %v633, %v577
        %v662 = vmul.f32 %v635, %v577
        %v663 = vmul.f32 %v637, %v577
        %v664 = vmul.f32 %v639, %v577
        %v665 = vmul.f32 %v641, %v577
        %v666 = vmul.f32 %v643, %v577
        %v667 = vmul.f32 %v645, %v577
        %v668 = vmul.f32 %v647, %v577
        %v669 = vmul.f32 %v649, %v577
        %v670 = vmul.f32 %v651, %v577
        %v671 = vmul.f32 %v653, %v577
        %v672 = vmul.f32 %v655, %v577
        %v673 = vmul.f32 %v657, %v577
        %v674 = vadd.f32 %v658, 1e-05
        %v675 = vadd.f32 %v659, 1e-05
        %v676 = vadd.f32 %v660, 1e-05
        %v677 = vadd.f32 %v661, 1e-05
        %v678 = vadd.f32 %v662, 1e-05
        %v679 = vadd.f32 %v663, 1e-05
        %v680 = vadd.f32 %v664, 1e-05
        %v681 = vadd.f32 %v665, 1e-05
        %v682 = vadd.f32 %v666, 1e-05
        %v683 = vadd.f32 %v667, 1e-05
        %v684 = vadd.f32 %v668, 1e-05
        %v685 = vadd.f32 %v669, 1e-05
        %v686 = vadd.f32 %v670, 1e-05
        %v687 = vadd.f32 %v671, 1e-05
        %v688 = vadd.f32 %v672, 1e-05
        %v689 = vadd.f32 %v673, 1e-05
        %v690 = vrsqrt.pop %v674
        %v691 = vrsqrt.pop %v675
        %v692 = vrsqrt.pop %v676
        %v693 = vrsqrt.pop %v677
        %v694 = vrsqrt.pop %v678
        %v695 = vrsqrt.pop %v679
        %v696 = vrsqrt.pop %v680
        %v697 = vrsqrt.pop %v681
        %v698 = vrsqrt.pop %v682
        %v699 = vrsqrt.pop %v683
        %v700 = vrsqrt.pop %v684
        %v701 = vrsqrt.pop %v685
        %v702 = vrsqrt.pop %v686
        %v703 = vrsqrt.pop %v687
        %v704 = vrsqrt.pop %v688
        %v705 = vrsqrt.pop %v689
        %v706 = vmul.f32 %v594, %v690
        %v707 = vmul.f32 %v595, %v691
        %v708 = vmul.f32 %v596, %v692
        %v709 = vmul.f32 %v597, %v693
        %v710 = vmul.f32 %v598, %v694
        %v711 = vmul.f32 %v599, %v695
        %v712 = vmul.f32 %v600, %v696
        %v713 = vmul.f32 %v601, %v697
        %v714 = vmul.f32 %v602, %v698
        %v715 = vmul.f32 %v603, %v699
        %v716 = vmul.f32 %v604, %v700
        %v717 = vmul.f32 %v605, %v701
        %v718 = vmul.f32 %v606, %v702
        %v719 = vmul.f32 %v607, %v703
        %v720 = vmul.f32 %v608, %v704
        %v721 = vmul.f32 %v609, %v705
        %v723 = vlaneseq
        %v724 = vshrl.u32 %v723, 7
        %v725 = vsub.s32 0, %v724
        %v726 = vrot.slane %v543, %v725
        %v728 = vmul.f32 %v706, %v726
        %v729 = vmul.f32 %v707, %v726
        %v730 = vmul.f32 %v708, %v726
        %v731 = vmul.f32 %v709, %v726
        %v732 = vmul.f32 %v710, %v726
        %v733 = vmul.f32 %v711, %v726
        %v734 = vmul.f32 %v712, %v726
        %v735 = vmul.f32 %v713, %v726
        %v736 = vmul.f32 %v714, %v726
        %v737 = vmul.f32 %v715, %v726
        %v738 = vmul.f32 %v716, %v726
        %v739 = vmul.f32 %v717, %v726
        %v740 = vmul.f32 %v718, %v726
        %v741 = vmul.f32 %v719, %v726
        %v742 = vmul.f32 %v720, %v726
        %v743 = vmul.f32 %v721, %v726
        %v745 = vlaneseq
        %v746 = vshrl.u32 %v745, 7
        %v747 = vsub.s32 0, %v746
        %v748 = vrot.slane %v544, %v747
        %v750 = vadd.f32 %v728, %v748
        %v751 = vadd.f32 %v729, %v748
        %v752 = vadd.f32 %v730, %v748
        %v753 = vadd.f32 %v731, %v748
        %v754 = vadd.f32 %v732, %v748
        %v755 = vadd.f32 %v733, %v748
        %v756 = vadd.f32 %v734, %v748
        %v757 = vadd.f32 %v735, %v748
        %v758 = vadd.f32 %v736, %v748
        %v759 = vadd.f32 %v737, %v748
        %v760 = vadd.f32 %v738, %v748
        %v761 = vadd.f32 %v739, %v748
        %v762 = vadd.f32 %v740, %v748
        %v763 = vadd.f32 %v741, %v748
        %v764 = vadd.f32 %v742, %v748
        %v765 = vadd.f32 %v743, %v748
        %v766 = vpack.c.bf16 %v751, %v750
        %v767 = vpack.c.bf16 %v753, %v752
        %v768 = vpack.c.bf16 %v755, %v754
        %v769 = vpack.c.bf16 %v757, %v756
        %v770 = vpack.c.bf16 %v759, %v758
        %v771 = vpack.c.bf16 %v761, %v760
        %v772 = vpack.c.bf16 %v763, %v762
        %v773 = vpack.c.bf16 %v765, %v764
        %v774 = vld [vmem:[#allocation8] sm:$0xff]
        %v775 = vld [vmem:[#allocation8 + $0x8] sm:$0xf]
        %v776 = vld [vmem:[#allocation8 + $0xc] sm:$0xff]
        %v777 = vld [vmem:[#allocation8 + $0x14] sm:$0xf]
        %v778 = vld [vmem:[#allocation8 + $0x18] sm:$0xff]
        %v779 = vld [vmem:[#allocation8 + $0x20] sm:$0xf]
        %v780 = vld [vmem:[#allocation8 + $0x24] sm:$0xff]
        %v781 = vld [vmem:[#allocation8 + $0x2c] sm:$0xf]
        %v782 = vld [vmem:[#allocation8 + $0x30] sm:$0xff]
        %v783 = vld [vmem:[#allocation8 + $0x38] sm:$0xf]
        %v784 = vld [vmem:[#allocation8 + $0x3c] sm:$0xff]
        %v785 = vld [vmem:[#allocation8 + $0x44] sm:$0xf]
        %v786 = vld [vmem:[#allocation8 + $0x48] sm:$0xff]
        %v787 = vld [vmem:[#allocation8 + $0x50] sm:$0xf]
        %v788 = vld [vmem:[#allocation8 + $0x54] sm:$0xff]
        %v789 = vld [vmem:[#allocation8 + $0x5c] sm:$0xf]
        %v790 = vld [vmem:[#allocation8 + $0x60] sm:$0xff]
        %v791 = vld [vmem:[#allocation8 + $0x68] sm:$0xf]
        %v792 = vld [vmem:[#allocation8 + $0x6c] sm:$0xff]
        %v793 = vld [vmem:[#allocation8 + $0x74] sm:$0xf]
        %v794 = vld [vmem:[#allocation8 + $0x78] sm:$0xff]
        %v795 = vld [vmem:[#allocation8 + $0x80] sm:$0xf]
        %v796 = vld [vmem:[#allocation8 + $0x84] sm:$0xff]
        %v797 = vld [vmem:[#allocation8 + $0x8c] sm:$0xf]
        %v798 = vld [vmem:[#allocation8 + $0x90] sm:$0xff]
        %v799 = vld [vmem:[#allocation8 + $0x98] sm:$0xf]
        %v800 = vld [vmem:[#allocation8 + $0x9c] sm:$0xff]
        %v801 = vld [vmem:[#allocation8 + $0xa4] sm:$0xf]
        %v802 = vld [vmem:[#allocation8 + $0xa8] sm:$0xff]
        %v803 = vld [vmem:[#allocation8 + $0xb0] sm:$0xf]
        %v804 = vld [vmem:[#allocation8 + $0xb4] sm:$0xff]
        %v805 = vld [vmem:[#allocation8 + $0xbc] sm:$0xf]
        %v806 = vld [vmem:[#allocation10] sm:$0x7]
        %v808 = vlaneseq
        %v809 = vshrl.u32 %v808, 7
        %v810 = vsub.s32 0, %v809
        %v811 = vrot.slane %v806, %v810
        %v812 = vlaneseq
        %v813 = vshrl.u32 %v812, 7
        %v814 = vsub.s32 1, %v813
        %v815 = vrot.slane %v806, %v814
        %v816 = vlaneseq
        %v817 = vshrl.u32 %v816, 7
        %v818 = vsub.s32 2, %v817
        %v819 = vrot.slane %v806, %v818
        %v855 = vunpack.c.l.b16 %v774
        %v856 = vunpack.c.h.b16 %v774
        %v857 = vunpack.c.l.b16 %v775
        %v858 = vunpack.c.l.b16 %v776
        %v859 = vunpack.c.h.b16 %v776
        %v860 = vunpack.c.l.b16 %v777
        %v861 = vunpack.c.l.b16 %v778
        %v862 = vunpack.c.h.b16 %v778
        %v863 = vunpack.c.l.b16 %v779
        %v864 = vunpack.c.l.b16 %v780
        %v865 = vunpack.c.h.b16 %v780
        %v866 = vunpack.c.l.b16 %v781
        %v867 = vunpack.c.l.b16 %v782
        %v868 = vunpack.c.h.b16 %v782
        %v869 = vunpack.c.l.b16 %v783
        %v870 = vunpack.c.l.b16 %v784
        %v871 = vunpack.c.h.b16 %v784
        %v872 = vunpack.c.l.b16 %v785
        %v873 = vunpack.c.l.b16 %v786
        %v874 = vunpack.c.h.b16 %v786
        %v875 = vunpack.c.l.b16 %v787
        %v876 = vunpack.c.l.b16 %v788
        %v877 = vunpack.c.h.b16 %v788
        %v878 = vunpack.c.l.b16 %v789
        %v879 = vunpack.c.l.b16 %v790
        %v880 = vunpack.c.h.b16 %v790
        %v881 = vunpack.c.l.b16 %v791
        %v882 = vunpack.c.l.b16 %v792
        %v883 = vunpack.c.h.b16 %v792
        %v884 = vunpack.c.l.b16 %v793
        %v885 = vunpack.c.l.b16 %v794
        %v886 = vunpack.c.h.b16 %v794
        %v887 = vunpack.c.l.b16 %v795
        %v888 = vunpack.c.l.b16 %v796
        %v889 = vunpack.c.h.b16 %v796
        %v890 = vunpack.c.l.b16 %v797
        %v891 = vunpack.c.l.b16 %v798
        %v892 = vunpack.c.h.b16 %v798
        %v893 = vunpack.c.l.b16 %v799
        %v894 = vunpack.c.l.b16 %v800
        %v895 = vunpack.c.h.b16 %v800
        %v896 = vunpack.c.l.b16 %v801
        %v897 = vunpack.c.l.b16 %v802
        %v898 = vunpack.c.h.b16 %v802
        %v899 = vunpack.c.l.b16 %v803
        %v900 = vunpack.c.l.b16 %v804
        %v901 = vunpack.c.h.b16 %v804
        %v902 = vunpack.c.l.b16 %v805
        %v903 = vpack.c.b16 %v858, %v855
        %v904 = vpack.c.b16 %v859, %v856
        %v905 = vpack.c.b16 %v860, %v857
        %v906 = vpack.c.b16 %v864, %v861
        %v907 = vpack.c.b16 %v865, %v862
        %v908 = vpack.c.b16 %v866, %v863
        %v909 = vpack.c.b16 %v870, %v867
        %v910 = vpack.c.b16 %v871, %v868
        %v911 = vpack.c.b16 %v872, %v869
        %v912 = vpack.c.b16 %v876, %v873
        %v913 = vpack.c.b16 %v877, %v874
        %v914 = vpack.c.b16 %v878, %v875
        %v915 = vpack.c.b16 %v882, %v879
        %v916 = vpack.c.b16 %v883, %v880
        %v917 = vpack.c.b16 %v884, %v881
        %v918 = vpack.c.b16 %v888, %v885
        %v919 = vpack.c.b16 %v889, %v886
        %v920 = vpack.c.b16 %v890, %v887
        %v921 = vpack.c.b16 %v894, %v891
        %v922 = vpack.c.b16 %v895, %v892
        %v923 = vpack.c.b16 %v896, %v893
        %v924 = vpack.c.b16 %v900, %v897
        %v925 = vpack.c.b16 %v901, %v898
        %v926 = vpack.c.b16 %v902, %v899
        %951 = vmatprep.subr.bf16.mxu0 %v925
        %952 = vmatpush1.bf16.msra.mxu0 %v924
        %953 = vmatprep.subr.bf16.mxu0 %v922
        %954 = vmatpush1.bf16.msra.mxu0 %v921
        %955 = vmatprep.subr.bf16.mxu0 %v919
        %956 = vmatpush1.bf16.msra.mxu0 %v918
        %957 = vmatprep.subr.bf16.mxu0 %v916
        %958 = vmatpush1.bf16.msra.mxu0 %v915
        %959 = vmatprep.subr.bf16.mxu0 %v913
        %960 = vmatpush1.bf16.msra.mxu0 %v912
        %961 = vmatprep.subr.bf16.mxu0 %v910
        %962 = vmatpush1.bf16.msra.mxu0 %v909
        %963 = vmatprep.subr.bf16.mxu0 %v907
        %964 = vmatpush1.bf16.msra.mxu0 %v906
        %965 = vmatprep.subr.bf16.mxu0 %v904
        %966 = vmatpush1.bf16.msra.mxu0 %v903
        %967 = vmatprep.subr.bf16.mxu0 0
        %968 = vmatpush2.bf16.msra.mxu0 0
        %969 = vmatprep.subr.bf16.mxu0 0
        %970 = vmatpush2.bf16.msra.mxu0 0
        %971 = vmatprep.subr.bf16.mxu0 0
        %972 = vmatpush2.bf16.msra.mxu0 0
        %973 = vmatprep.subr.bf16.mxu0 0
        %974 = vmatpush2.bf16.msra.mxu0 0
        %975 = vmatprep.subr.bf16.mxu0 0
        %976 = vmatpush2.bf16.msra.mxu0 0
        %977 = vmatprep.subr.bf16.mxu0 0
        %978 = vmatpush2.bf16.msra.mxu0 0
        %979 = vmatprep.subr.bf16.mxu0 0
        %980 = vmatpush2.bf16.msra.mxu0 0
        %981 = vmatprep.subr.bf16.mxu0 0
        %982 = vmatpush2.bf16.msra.mxu0 0
        %983 = vmatprep.mubr.bf16.mxu0 0
        %984 = vmatmul.mubr.bf16.gmra.mxu0 %v766
        %v985 = vpop.f32.mrf.mxu0
        %v986 = vadd.f32 %v811, %v985
        %v987 = vpop.f32.mrf.mxu0
        %v988 = vadd.f32 %v815, %v987
        %v989 = vpop.f32.mrf.mxu0
        %v990 = vadd.f32 %v811, %v989
        %v991 = vpop.f32.mrf.mxu0
        %v992 = vadd.f32 %v815, %v991
        %993 = vmatprep.mubr.bf16.mxu0 0
        %994 = vmatmul.mubr.bf16.gmra.mxu0 %v767
        %v995 = vpop.f32.mrf.mxu0
        %v996 = vadd.f32 %v811, %v995
        %v997 = vpop.f32.mrf.mxu0
        %v998 = vadd.f32 %v815, %v997
        %v999 = vpop.f32.mrf.mxu0
        %v1000 = vadd.f32 %v811, %v999
        %v1001 = vpop.f32.mrf.mxu0
        %v1002 = vadd.f32 %v815, %v1001
        %1003 = vmatprep.mubr.bf16.mxu0 0
        %1004 = vmatmul.mubr.bf16.gmra.mxu0 %v768
        %v1005 = vpop.f32.mrf.mxu0
        %v1006 = vadd.f32 %v811, %v1005
        %v1007 = vpop.f32.mrf.mxu0
        %v1008 = vadd.f32 %v815, %v1007
        %v1009 = vpop.f32.mrf.mxu0
        %v1010 = vadd.f32 %v811, %v1009
        %v1011 = vpop.f32.mrf.mxu0
        %v1012 = vadd.f32 %v815, %v1011
        %1013 = vmatprep.mubr.bf16.mxu0 0
        %1014 = vmatmul.mubr.bf16.gmra.mxu0 %v769
        %v1015 = vpop.f32.mrf.mxu0
        %v1016 = vadd.f32 %v811, %v1015
        %v1017 = vpop.f32.mrf.mxu0
        %v1018 = vadd.f32 %v815, %v1017
        %v1019 = vpop.f32.mrf.mxu0
        %v1020 = vadd.f32 %v811, %v1019
        %v1021 = vpop.f32.mrf.mxu0
        %v1022 = vadd.f32 %v815, %v1021
        %1023 = vmatprep.mubr.bf16.mxu0 0
        %1024 = vmatmul.mubr.bf16.gmra.mxu0 %v770
        %v1025 = vpop.f32.mrf.mxu0
        %v1026 = vadd.f32 %v811, %v1025
        %v1027 = vpop.f32.mrf.mxu0
        %v1028 = vadd.f32 %v815, %v1027
        %v1029 = vpop.f32.mrf.mxu0
        %v1030 = vadd.f32 %v811, %v1029
        %v1031 = vpop.f32.mrf.mxu0
        %v1032 = vadd.f32 %v815, %v1031
        %1033 = vmatprep.mubr.bf16.mxu0 0
        %1034 = vmatmul.mubr.bf16.gmra.mxu0 %v771
        %v1035 = vpop.f32.mrf.mxu0
        %v1036 = vadd.f32 %v811, %v1035
        %v1037 = vpop.f32.mrf.mxu0
        %v1038 = vadd.f32 %v815, %v1037
        %v1039 = vpop.f32.mrf.mxu0
        %v1040 = vadd.f32 %v811, %v1039
        %v1041 = vpop.f32.mrf.mxu0
        %v1042 = vadd.f32 %v815, %v1041
        %1043 = vmatprep.mubr.bf16.mxu0 0
        %1044 = vmatmul.mubr.bf16.gmra.mxu0 %v772
        %v1045 = vpop.f32.mrf.mxu0
        %v1046 = vadd.f32 %v811, %v1045
        %v1047 = vpop.f32.mrf.mxu0
        %v1048 = vadd.f32 %v815, %v1047
        %v1049 = vpop.f32.mrf.mxu0
        %v1050 = vadd.f32 %v811, %v1049
        %v1051 = vpop.f32.mrf.mxu0
        %v1052 = vadd.f32 %v815, %v1051
        %1053 = vmatprep.mubr.bf16.mxu0 0
        %1054 = vmatmul.mubr.bf16.gmra.mxu0 %v773
        %v1055 = vpop.f32.mrf.mxu0
        %v1056 = vadd.f32 %v811, %v1055
        %v1057 = vpop.f32.mrf.mxu0
        %v1058 = vadd.f32 %v815, %v1057
        %v1059 = vpop.f32.mrf.mxu0
        %v1060 = vadd.f32 %v811, %v1059
        %v1061 = vpop.f32.mrf.mxu0
        %v1062 = vadd.f32 %v815, %v1061
        %1063 = vdwg.mxu0
        %1064 = vmatprep.subr.bf16.mxu0 0
        %1065 = vmatpush1.bf16.msra.mxu0 %v926
        %1066 = vmatprep.subr.bf16.mxu0 0
        %1067 = vmatpush1.bf16.msra.mxu0 %v923
        %1068 = vmatprep.subr.bf16.mxu0 0
        %1069 = vmatpush1.bf16.msra.mxu0 %v920
        %1070 = vmatprep.subr.bf16.mxu0 0
        %1071 = vmatpush1.bf16.msra.mxu0 %v917
        %1072 = vmatprep.subr.bf16.mxu0 0
        %1073 = vmatpush1.bf16.msra.mxu0 %v914
        %1074 = vmatprep.subr.bf16.mxu0 0
        %1075 = vmatpush1.bf16.msra.mxu0 %v911
        %1076 = vmatprep.subr.bf16.mxu0 0
        %1077 = vmatpush1.bf16.msra.mxu0 %v908
        %1078 = vmatprep.subr.bf16.mxu0 0
        %1079 = vmatpush1.bf16.msra.mxu0 %v905
        %1080 = vmatprep.subr.bf16.mxu0 0
        %1081 = vmatpush2.bf16.msra.mxu0 0
        %1082 = vmatprep.subr.bf16.mxu0 0
        %1083 = vmatpush2.bf16.msra.mxu0 0
        %1084 = vmatprep.subr.bf16.mxu0 0
        %1085 = vmatpush2.bf16.msra.mxu0 0
        %1086 = vmatprep.subr.bf16.mxu0 0
        %1087 = vmatpush2.bf16.msra.mxu0 0
        %1088 = vmatprep.subr.bf16.mxu0 0
        %1089 = vmatpush2.bf16.msra.mxu0 0
        %1090 = vmatprep.subr.bf16.mxu0 0
        %1091 = vmatpush2.bf16.msra.mxu0 0
        %1092 = vmatprep.subr.bf16.mxu0 0
        %1093 = vmatpush2.bf16.msra.mxu0 0
        %1094 = vmatprep.subr.bf16.mxu0 0
        %1095 = vmatpush2.bf16.msra.mxu0 0
        %1096 = vmatprep.mubr.bf16.mxu0 0
        %1097 = vmatmul.mubr.bf16.gmra.mxu0 %v766
        %v1098 = vpop.f32.mrf.mxu0
        %v1099 = vadd.f32 %v819, %v1098
        %v1100 = vpop.f32.mrf.mxu0
        %v1101 = vpop.f32.mrf.mxu0
        %v1102 = vadd.f32 %v819, %v1101
        %v1103 = vpop.f32.mrf.mxu0
        %1104 = vmatprep.mubr.bf16.mxu0 0
        %1105 = vmatmul.mubr.bf16.gmra.mxu0 %v767
        %v1106 = vpop.f32.mrf.mxu0
        %v1107 = vadd.f32 %v819, %v1106
        %v1108 = vpop.f32.mrf.mxu0
        %v1109 = vpop.f32.mrf.mxu0
        %v1110 = vadd.f32 %v819, %v1109
        %v1111 = vpop.f32.mrf.mxu0
        %1112 = vmatprep.mubr.bf16.mxu0 0
        %1113 = vmatmul.mubr.bf16.gmra.mxu0 %v768
        %v1114 = vpop.f32.mrf.mxu0
        %v1115 = vadd.f32 %v819, %v1114
        %v1116 = vpop.f32.mrf.mxu0
        %v1117 = vpop.f32.mrf.mxu0
        %v1118 = vadd.f32 %v819, %v1117
        %v1119 = vpop.f32.mrf.mxu0
        %1120 = vmatprep.mubr.bf16.mxu0 0
        %1121 = vmatmul.mubr.bf16.gmra.mxu0 %v769
        %v1122 = vpop.f32.mrf.mxu0
        %v1123 = vadd.f32 %v819, %v1122
        %v1124 = vpop.f32.mrf.mxu0
        %v1125 = vpop.f32.mrf.mxu0
        %v1126 = vadd.f32 %v819, %v1125
        %v1127 = vpop.f32.mrf.mxu0
        %1128 = vmatprep.mubr.bf16.mxu0 0
        %1129 = vmatmul.mubr.bf16.gmra.mxu0 %v770
        %v1130 = vpop.f32.mrf.mxu0
        %v1131 = vadd.f32 %v819, %v1130
        %v1132 = vpop.f32.mrf.mxu0
        %v1133 = vpop.f32.mrf.mxu0
        %v1134 = vadd.f32 %v819, %v1133
        %v1135 = vpop.f32.mrf.mxu0
        %1136 = vmatprep.mubr.bf16.mxu0 0
        %1137 = vmatmul.mubr.bf16.gmra.mxu0 %v771
        %v1138 = vpop.f32.mrf.mxu0
        %v1139 = vadd.f32 %v819, %v1138
        %v1140 = vpop.f32.mrf.mxu0
        %v1141 = vpop.f32.mrf.mxu0
        %v1142 = vadd.f32 %v819, %v1141
        %v1143 = vpop.f32.mrf.mxu0
        %1144 = vmatprep.mubr.bf16.mxu0 0
        %1145 = vmatmul.mubr.bf16.gmra.mxu0 %v772
        %v1146 = vpop.f32.mrf.mxu0
        %v1147 = vadd.f32 %v819, %v1146
        %v1148 = vpop.f32.mrf.mxu0
        %v1149 = vpop.f32.mrf.mxu0
        %v1150 = vadd.f32 %v819, %v1149
        %v1151 = vpop.f32.mrf.mxu0
        %1152 = vmatprep.mubr.bf16.mxu0 0
        %1153 = vmatmul.mubr.bf16.gmra.mxu0 %v773
        %v1154 = vpop.f32.mrf.mxu0
        %v1155 = vadd.f32 %v819, %v1154
        %v1156 = vpop.f32.mrf.mxu0
        %v1157 = vpop.f32.mrf.mxu0
        %v1158 = vadd.f32 %v819, %v1157
        %v1159 = vpop.f32.mrf.mxu0
        %1160 = vdwg.mxu0
        %v1161 = vpack.c.bf16 %v990, %v986
        %v1162 = vpack.c.bf16 %v1000, %v996
        %v1163 = vpack.c.bf16 %v1010, %v1006
        %v1164 = vpack.c.bf16 %v1020, %v1016
        %v1165 = vpack.c.bf16 %v1030, %v1026
        %v1166 = vpack.c.bf16 %v1040, %v1036
        %v1167 = vpack.c.bf16 %v1050, %v1046
        %v1168 = vpack.c.bf16 %v1060, %v1056
        %v1169 = vpack.c.bf16 %v992, %v988
        %v1170 = vpack.c.bf16 %v1002, %v998
        %v1171 = vpack.c.bf16 %v1012, %v1008
        %v1172 = vpack.c.bf16 %v1022, %v1018
        %v1173 = vpack.c.bf16 %v1032, %v1028
        %v1174 = vpack.c.bf16 %v1042, %v1038
        %v1175 = vpack.c.bf16 %v1052, %v1048
        %v1176 = vpack.c.bf16 %v1062, %v1058
        %v1177 = vpack.c.bf16 %v1102, %v1099
        %v1178 = vpack.c.bf16 %v1110, %v1107
        %v1179 = vpack.c.bf16 %v1118, %v1115
        %v1180 = vpack.c.bf16 %v1126, %v1123
        %v1181 = vpack.c.bf16 %v1134, %v1131
        %v1182 = vpack.c.bf16 %v1142, %v1139
        %v1183 = vpack.c.bf16 %v1150, %v1147
        %v1184 = vpack.c.bf16 %v1158, %v1155
        %vm1185 = vcmask 261120
        %v1187 = vsel %vm1185, %v1161, 0
        %v1190 = vsel %vm1185, %v1162, 0
        %v1193 = vsel %vm1185, %v1163, 0
        %v1196 = vsel %vm1185, %v1164, 0
        %v1199 = vsel %vm1185, %v1165, 0
        %v1202 = vsel %vm1185, %v1166, 0
        %v1205 = vsel %vm1185, %v1167, 0
        %v1208 = vsel %vm1185, %v1168, 0
        %v1211 = vsel %vm1185, %v1169, 0
        %v1214 = vsel %vm1185, %v1170, 0
        %v1217 = vsel %vm1185, %v1171, 0
        %v1220 = vsel %vm1185, %v1172, 0
        %v1223 = vsel %vm1185, %v1173, 0
        %v1226 = vsel %vm1185, %v1174, 0
        %v1229 = vsel %vm1185, %v1175, 0
        %v1232 = vsel %vm1185, %v1176, 0
        %1234 = vmatprep.subr.bf16.mxu0 0
        %1235 = vmatpush1.bf16.xpose.msra.mxu0 %v1232
        %1236 = vmatprep.subr.bf16.mxu0 0
        %1237 = vmatpush1.bf16.xpose.msra.mxu0 %v1229
        %1238 = vmatprep.subr.bf16.mxu0 0
        %1239 = vmatpush1.bf16.xpose.msra.mxu0 %v1226
        %1240 = vmatprep.subr.bf16.mxu0 0
        %1241 = vmatpush1.bf16.xpose.msra.mxu0 %v1223
        %1242 = vmatprep.subr.bf16.mxu0 0
        %1243 = vmatpush1.bf16.xpose.msra.mxu0 %v1220
        %1244 = vmatprep.subr.bf16.mxu0 0
        %1245 = vmatpush1.bf16.xpose.msra.mxu0 %v1217
        %1246 = vmatprep.subr.bf16.mxu0 0
        %1247 = vmatpush1.bf16.xpose.msra.mxu0 %v1214
        %1248 = vmatprep.subr.bf16.mxu0 0
        %1249 = vmatpush1.bf16.xpose.msra.mxu0 %v1211
        %1250 = vmatprep.subr.bf16.mxu0 0
        %1251 = vmatpush2.bf16.xpose.msra.mxu0 0
        %1252 = vmatprep.subr.bf16.mxu0 0
        %1253 = vmatpush2.bf16.xpose.msra.mxu0 0
        %1254 = vmatprep.subr.bf16.mxu0 0
        %1255 = vmatpush2.bf16.xpose.msra.mxu0 0
        %1256 = vmatprep.subr.bf16.mxu0 0
        %1257 = vmatpush2.bf16.xpose.msra.mxu0 0
        %1258 = vmatprep.subr.bf16.mxu0 0
        %1259 = vmatpush2.bf16.xpose.msra.mxu0 0
        %1260 = vmatprep.subr.bf16.mxu0 0
        %1261 = vmatpush2.bf16.xpose.msra.mxu0 0
        %1262 = vmatprep.subr.bf16.mxu0 0
        %1263 = vmatpush2.bf16.xpose.msra.mxu0 0
        %1264 = vmatprep.subr.bf16.mxu0 0
        %1265 = vmatpush2.bf16.xpose.msra.mxu0 0
        %1266 = vmatprep.mubr.bf16.mxu0 0
        %1267 = vmatmul.mubr.bf16.gmra.mxu0 %v1187
        %v1268 = vpop.f32.mrf.mxu0
        %v1269 = vadd.f32 0.0, %v1268
        %v1270 = vpop.f32.mrf.mxu0
        %v1271 = vpop.f32.mrf.mxu0
        %v1272 = vadd.f32 0.0, %v1271
        %v1273 = vpop.f32.mrf.mxu0
        %1274 = vmatprep.mubr.bf16.mxu0 0
        %1275 = vmatmul.mubr.bf16.gmra.mxu0 %v1190
        %v1276 = vpop.f32.mrf.mxu0
        %v1277 = vadd.f32 0.0, %v1276
        %v1278 = vpop.f32.mrf.mxu0
        %v1279 = vpop.f32.mrf.mxu0
        %v1280 = vadd.f32 0.0, %v1279
        %v1281 = vpop.f32.mrf.mxu0
        %1282 = vmatprep.mubr.bf16.mxu0 0
        %1283 = vmatmul.mubr.bf16.gmra.mxu0 %v1193
        %v1284 = vpop.f32.mrf.mxu0
        %v1285 = vadd.f32 0.0, %v1284
        %v1286 = vpop.f32.mrf.mxu0
        %v1287 = vpop.f32.mrf.mxu0
        %v1288 = vadd.f32 0.0, %v1287
        %v1289 = vpop.f32.mrf.mxu0
        %1290 = vmatprep.mubr.bf16.mxu0 0
        %1291 = vmatmul.mubr.bf16.gmra.mxu0 %v1196
        %v1292 = vpop.f32.mrf.mxu0
        %v1293 = vadd.f32 0.0, %v1292
        %v1294 = vpop.f32.mrf.mxu0
        %v1295 = vpop.f32.mrf.mxu0
        %v1296 = vadd.f32 0.0, %v1295
        %v1297 = vpop.f32.mrf.mxu0
        %1298 = vmatprep.mubr.bf16.mxu0 0
        %1299 = vmatmul.mubr.bf16.gmra.mxu0 %v1199
        %v1300 = vpop.f32.mrf.mxu0
        %v1301 = vadd.f32 0.0, %v1300
        %v1302 = vpop.f32.mrf.mxu0
        %v1303 = vpop.f32.mrf.mxu0
        %v1304 = vadd.f32 0.0, %v1303
        %v1305 = vpop.f32.mrf.mxu0
        %1306 = vmatprep.mubr.bf16.mxu0 0
        %1307 = vmatmul.mubr.bf16.gmra.mxu0 %v1202
        %v1308 = vpop.f32.mrf.mxu0
        %v1309 = vadd.f32 0.0, %v1308
        %v1310 = vpop.f32.mrf.mxu0
        %v1311 = vpop.f32.mrf.mxu0
        %v1312 = vadd.f32 0.0, %v1311
        %v1313 = vpop.f32.mrf.mxu0
        %1314 = vmatprep.mubr.bf16.mxu0 0
        %1315 = vmatmul.mubr.bf16.gmra.mxu0 %v1205
        %v1316 = vpop.f32.mrf.mxu0
        %v1317 = vadd.f32 0.0, %v1316
        %v1318 = vpop.f32.mrf.mxu0
        %v1319 = vpop.f32.mrf.mxu0
        %v1320 = vadd.f32 0.0, %v1319
        %v1321 = vpop.f32.mrf.mxu0
        %1322 = vmatprep.mubr.bf16.mxu0 0
        %1323 = vmatmul.mubr.bf16.gmra.mxu0 %v1208
        %v1324 = vpop.f32.mrf.mxu0
        %v1325 = vadd.f32 0.0, %v1324
        %v1326 = vpop.f32.mrf.mxu0
        %v1327 = vpop.f32.mrf.mxu0
        %v1328 = vadd.f32 0.0, %v1327
        %v1329 = vpop.f32.mrf.mxu0
        %1330 = vdwg.mxu0
        %1331 = vmax.xlane.f32.xlu0 %v1269
        %v1332 = vpop.xlane.xlu0 %1331
        %1333 = vmax.xlane.f32.xlu0 %v1272
        %v1334 = vpop.xlane.xlu0 %1333
        %1335 = vmax.xlane.f32.xlu0 %v1277
        %v1336 = vpop.xlane.xlu0 %1335
        %1337 = vmax.xlane.f32.xlu0 %v1280
        %v1338 = vpop.xlane.xlu0 %1337
        %1339 = vmax.xlane.f32.xlu0 %v1285
        %v1340 = vpop.xlane.xlu0 %1339
        %1341 = vmax.xlane.f32.xlu0 %v1288
        %v1342 = vpop.xlane.xlu0 %1341
        %1343 = vmax.xlane.f32.xlu0 %v1293
        %v1344 = vpop.xlane.xlu0 %1343
        %1345 = vmax.xlane.f32.xlu0 %v1296
        %v1346 = vpop.xlane.xlu0 %1345
        %1347 = vmax.xlane.f32.xlu0 %v1301
        %v1348 = vpop.xlane.xlu0 %1347
        %1349 = vmax.xlane.f32.xlu0 %v1304
        %v1350 = vpop.xlane.xlu0 %1349
        %1351 = vmax.xlane.f32.xlu0 %v1309
        %v1352 = vpop.xlane.xlu0 %1351
        %1353 = vmax.xlane.f32.xlu0 %v1312
        %v1354 = vpop.xlane.xlu0 %1353
        %1355 = vmax.xlane.f32.xlu0 %v1317
        %v1356 = vpop.xlane.xlu0 %1355
        %1357 = vmax.xlane.f32.xlu0 %v1320
        %v1358 = vpop.xlane.xlu0 %1357
        %1359 = vmax.xlane.f32.xlu0 %v1325
        %v1360 = vpop.xlane.xlu0 %1359
        %1361 = vmax.xlane.f32.xlu0 %v1328
        %v1362 = vpop.xlane.xlu0 %1361
        %v1363 = vsub.f32 %v1269, %v1332
        %v1364 = vsub.f32 %v1272, %v1334
        %v1365 = vsub.f32 %v1277, %v1336
        %v1366 = vsub.f32 %v1280, %v1338
        %v1367 = vsub.f32 %v1285, %v1340
        %v1368 = vsub.f32 %v1288, %v1342
        %v1369 = vsub.f32 %v1293, %v1344
        %v1370 = vsub.f32 %v1296, %v1346
        %v1371 = vsub.f32 %v1301, %v1348
        %v1372 = vsub.f32 %v1304, %v1350
        %v1373 = vsub.f32 %v1309, %v1352
        %v1374 = vsub.f32 %v1312, %v1354
        %v1375 = vsub.f32 %v1317, %v1356
        %v1376 = vsub.f32 %v1320, %v1358
        %v1377 = vsub.f32 %v1325, %v1360
        %v1378 = vsub.f32 %v1328, %v1362
        %v1379 = vmul.f32 %v1363, 1.442695
        %v1380 = vpow.pop %v1379
        %v1381 = vmul.f32 %v1364, 1.442695
        %v1382 = vpow.pop %v1381
        %v1383 = vmul.f32 %v1365, 1.442695
        %v1384 = vpow.pop %v1383
        %v1385 = vmul.f32 %v1366, 1.442695
        %v1386 = vpow.pop %v1385
        %v1387 = vmul.f32 %v1367, 1.442695
        %v1388 = vpow.pop %v1387
        %v1389 = vmul.f32 %v1368, 1.442695
        %v1390 = vpow.pop %v1389
        %v1391 = vmul.f32 %v1369, 1.442695
        %v1392 = vpow.pop %v1391
        %v1393 = vmul.f32 %v1370, 1.442695
        %v1394 = vpow.pop %v1393
        %v1395 = vmul.f32 %v1371, 1.442695
        %v1396 = vpow.pop %v1395
        %v1397 = vmul.f32 %v1372, 1.442695
        %v1398 = vpow.pop %v1397
        %v1399 = vmul.f32 %v1373, 1.442695
        %v1400 = vpow.pop %v1399
        %v1401 = vmul.f32 %v1374, 1.442695
        %v1402 = vpow.pop %v1401
        %v1403 = vmul.f32 %v1375, 1.442695
        %v1404 = vpow.pop %v1403
        %v1405 = vmul.f32 %v1376, 1.442695
        %v1406 = vpow.pop %v1405
        %v1407 = vmul.f32 %v1377, 1.442695
        %v1408 = vpow.pop %v1407
        %v1409 = vmul.f32 %v1378, 1.442695
        %v1410 = vpow.pop %v1409
        %1411 = vadd.xlane.f32.xlu0 %v1380
        %v1412 = vpop.xlane.xlu0 %1411
        %1413 = vadd.xlane.f32.xlu0 %v1382
        %v1414 = vpop.xlane.xlu0 %1413
        %1415 = vadd.xlane.f32.xlu0 %v1384
        %v1416 = vpop.xlane.xlu0 %1415
        %1417 = vadd.xlane.f32.xlu0 %v1386
        %v1418 = vpop.xlane.xlu0 %1417
        %1419 = vadd.xlane.f32.xlu0 %v1388
        %v1420 = vpop.xlane.xlu0 %1419
        %1421 = vadd.xlane.f32.xlu0 %v1390
        %v1422 = vpop.xlane.xlu0 %1421
        %1423 = vadd.xlane.f32.xlu0 %v1392
        %v1424 = vpop.xlane.xlu0 %1423
        %1425 = vadd.xlane.f32.xlu0 %v1394
        %v1426 = vpop.xlane.xlu0 %1425
        %1427 = vadd.xlane.f32.xlu0 %v1396
        %v1428 = vpop.xlane.xlu0 %1427
        %1429 = vadd.xlane.f32.xlu0 %v1398
        %v1430 = vpop.xlane.xlu0 %1429
        %1431 = vadd.xlane.f32.xlu0 %v1400
        %v1432 = vpop.xlane.xlu0 %1431
        %1433 = vadd.xlane.f32.xlu0 %v1402
        %v1434 = vpop.xlane.xlu0 %1433
        %1435 = vadd.xlane.f32.xlu0 %v1404
        %v1436 = vpop.xlane.xlu0 %1435
        %1437 = vadd.xlane.f32.xlu0 %v1406
        %v1438 = vpop.xlane.xlu0 %1437
        %1439 = vadd.xlane.f32.xlu0 %v1408
        %v1440 = vpop.xlane.xlu0 %1439
        %1441 = vadd.xlane.f32.xlu0 %v1410
        %v1442 = vpop.xlane.xlu0 %1441
        %v1443 = vrcp.pop %v1412
        %v1444 = vrcp.pop %v1414
        %v1445 = vrcp.pop %v1416
        %v1446 = vrcp.pop %v1418
        %v1447 = vrcp.pop %v1420
        %v1448 = vrcp.pop %v1422
        %v1449 = vrcp.pop %v1424
        %v1450 = vrcp.pop %v1426
        %v1451 = vrcp.pop %v1428
        %v1452 = vrcp.pop %v1430
        %v1453 = vrcp.pop %v1432
        %v1454 = vrcp.pop %v1434
        %v1455 = vrcp.pop %v1436
        %v1456 = vrcp.pop %v1438
        %v1457 = vrcp.pop %v1440
        %v1458 = vrcp.pop %v1442
        %v1459 = vmul.f32 %v1380, %v1443
        %v1460 = vmul.f32 %v1382, %v1444
        %v1461 = vmul.f32 %v1384, %v1445
        %v1462 = vmul.f32 %v1386, %v1446
        %v1463 = vmul.f32 %v1388, %v1447
        %v1464 = vmul.f32 %v1390, %v1448
        %v1465 = vmul.f32 %v1392, %v1449
        %v1466 = vmul.f32 %v1394, %v1450
        %v1467 = vmul.f32 %v1396, %v1451
        %v1468 = vmul.f32 %v1398, %v1452
        %v1469 = vmul.f32 %v1400, %v1453
        %v1470 = vmul.f32 %v1402, %v1454
        %v1471 = vmul.f32 %v1404, %v1455
        %v1472 = vmul.f32 %v1406, %v1456
        %v1473 = vmul.f32 %v1408, %v1457
        %v1474 = vmul.f32 %v1410, %v1458
        %v1475 = vpack.c.bf16 %v1460, %v1459
        %v1476 = vpack.c.bf16 %v1462, %v1461
        %v1477 = vpack.c.bf16 %v1464, %v1463
        %v1478 = vpack.c.bf16 %v1466, %v1465
        %v1479 = vpack.c.bf16 %v1468, %v1467
        %v1480 = vpack.c.bf16 %v1470, %v1469
        %v1481 = vpack.c.bf16 %v1472, %v1471
        %v1482 = vpack.c.bf16 %v1474, %v1473
        %1483 = vmatprep.subr.bf16.mxu0 0
        %1484 = vmatpush1.bf16.msra.mxu0 %v1184
        %1485 = vmatprep.subr.bf16.mxu0 0
        %1486 = vmatpush1.bf16.msra.mxu0 %v1183
        %1487 = vmatprep.subr.bf16.mxu0 0
        %1488 = vmatpush1.bf16.msra.mxu0 %v1182
        %1489 = vmatprep.subr.bf16.mxu0 0
        %1490 = vmatpush1.bf16.msra.mxu0 %v1181
        %1491 = vmatprep.subr.bf16.mxu0 0
        %1492 = vmatpush1.bf16.msra.mxu0 %v1180
        %1493 = vmatprep.subr.bf16.mxu0 0
        %1494 = vmatpush1.bf16.msra.mxu0 %v1179
        %1495 = vmatprep.subr.bf16.mxu0 0
        %1496 = vmatpush1.bf16.msra.mxu0 %v1178
        %1497 = vmatprep.subr.bf16.mxu0 0
        %1498 = vmatpush1.bf16.msra.mxu0 %v1177
        %1499 = vmatprep.subr.bf16.mxu0 0
        %1500 = vmatpush2.bf16.msra.mxu0 0
        %1501 = vmatprep.subr.bf16.mxu0 0
        %1502 = vmatpush2.bf16.msra.mxu0 0
        %1503 = vmatprep.subr.bf16.mxu0 0
        %1504 = vmatpush2.bf16.msra.mxu0 0
        %1505 = vmatprep.subr.bf16.mxu0 0
        %1506 = vmatpush2.bf16.msra.mxu0 0
        %1507 = vmatprep.subr.bf16.mxu0 0
        %1508 = vmatpush2.bf16.msra.mxu0 0
        %1509 = vmatprep.subr.bf16.mxu0 0
        %1510 = vmatpush2.bf16.msra.mxu0 0
        %1511 = vmatprep.subr.bf16.mxu0 0
        %1512 = vmatpush2.bf16.msra.mxu0 0
        %1513 = vmatprep.subr.bf16.mxu0 0
        %1514 = vmatpush2.bf16.msra.mxu0 0
        %1515 = vmatprep.mubr.bf16.mxu0 0
        %1516 = vmatmul.mubr.bf16.gmra.mxu0 %v1475
        %v1517 = vpop.f32.mrf.mxu0
        %v1518 = vadd.f32 0.0, %v1517
        %v1519 = vpop.f32.mrf.mxu0
        %v1520 = vpop.f32.mrf.mxu0
        %v1521 = vadd.f32 0.0, %v1520
        %v1522 = vpop.f32.mrf.mxu0
        %1523 = vmatprep.mubr.bf16.mxu0 0
        %1524 = vmatmul.mubr.bf16.gmra.mxu0 %v1476
        %v1525 = vpop.f32.mrf.mxu0
        %v1526 = vadd.f32 0.0, %v1525
        %v1527 = vpop.f32.mrf.mxu0
        %v1528 = vpop.f32.mrf.mxu0
        %v1529 = vadd.f32 0.0, %v1528
        %v1530 = vpop.f32.mrf.mxu0
        %1531 = vmatprep.mubr.bf16.mxu0 0
        %1532 = vmatmul.mubr.bf16.gmra.mxu0 %v1477
        %v1533 = vpop.f32.mrf.mxu0
        %v1534 = vadd.f32 0.0, %v1533
        %v1535 = vpop.f32.mrf.mxu0
        %v1536 = vpop.f32.mrf.mxu0
        %v1537 = vadd.f32 0.0, %v1536
        %v1538 = vpop.f32.mrf.mxu0
        %1539 = vmatprep.mubr.bf16.mxu0 0
        %1540 = vmatmul.mubr.bf16.gmra.mxu0 %v1478
        %v1541 = vpop.f32.mrf.mxu0
        %v1542 = vadd.f32 0.0, %v1541
        %v1543 = vpop.f32.mrf.mxu0
        %v1544 = vpop.f32.mrf.mxu0
        %v1545 = vadd.f32 0.0, %v1544
        %v1546 = vpop.f32.mrf.mxu0
        %1547 = vmatprep.mubr.bf16.mxu0 0
        %1548 = vmatmul.mubr.bf16.gmra.mxu0 %v1479
        %v1549 = vpop.f32.mrf.mxu0
        %v1550 = vadd.f32 0.0, %v1549
        %v1551 = vpop.f32.mrf.mxu0
        %v1552 = vpop.f32.mrf.mxu0
        %v1553 = vadd.f32 0.0, %v1552
        %v1554 = vpop.f32.mrf.mxu0
        %1555 = vmatprep.mubr.bf16.mxu0 0
        %1556 = vmatmul.mubr.bf16.gmra.mxu0 %v1480
        %v1557 = vpop.f32.mrf.mxu0
        %v1558 = vadd.f32 0.0, %v1557
        %v1559 = vpop.f32.mrf.mxu0
        %v1560 = vpop.f32.mrf.mxu0
        %v1561 = vadd.f32 0.0, %v1560
        %v1562 = vpop.f32.mrf.mxu0
        %1563 = vmatprep.mubr.bf16.mxu0 0
        %1564 = vmatmul.mubr.bf16.gmra.mxu0 %v1481
        %v1565 = vpop.f32.mrf.mxu0
        %v1566 = vadd.f32 0.0, %v1565
        %v1567 = vpop.f32.mrf.mxu0
        %v1568 = vpop.f32.mrf.mxu0
        %v1569 = vadd.f32 0.0, %v1568
        %v1570 = vpop.f32.mrf.mxu0
        %1571 = vmatprep.mubr.bf16.mxu0 0
        %1572 = vmatmul.mubr.bf16.gmra.mxu0 %v1482
        %v1573 = vpop.f32.mrf.mxu0
        %v1574 = vadd.f32 0.0, %v1573
        %v1575 = vpop.f32.mrf.mxu0
        %v1576 = vpop.f32.mrf.mxu0
        %v1577 = vadd.f32 0.0, %v1576
        %v1578 = vpop.f32.mrf.mxu0
        %1579 = vdwg.mxu0
        %1588 = vrot.lane.b32.xlu0 %v1161, 96
        %v1589 = vpop.permute.xlu0 %1588
        %1590 = vrot.lane.b32.xlu0 %v1162, 96
        %v1591 = vpop.permute.xlu0 %1590
        %1592 = vrot.lane.b32.xlu0 %v1163, 96
        %v1593 = vpop.permute.xlu0 %1592
        %1594 = vrot.lane.b32.xlu0 %v1164, 96
        %v1595 = vpop.permute.xlu0 %1594
        %1596 = vrot.lane.b32.xlu0 %v1165, 96
        %v1597 = vpop.permute.xlu0 %1596
        %1598 = vrot.lane.b32.xlu0 %v1166, 96
        %v1599 = vpop.permute.xlu0 %1598
        %1600 = vrot.lane.b32.xlu0 %v1167, 96
        %v1601 = vpop.permute.xlu0 %1600
        %1602 = vrot.lane.b32.xlu0 %v1168, 96
        %v1603 = vpop.permute.xlu0 %1602
        %1612 = vrot.lane.b32.xlu0 %v1169, 96
        %v1613 = vpop.permute.xlu0 %1612
        %1614 = vrot.lane.b32.xlu0 %v1170, 96
        %v1615 = vpop.permute.xlu0 %1614
        %1616 = vrot.lane.b32.xlu0 %v1171, 96
        %v1617 = vpop.permute.xlu0 %1616
        %1618 = vrot.lane.b32.xlu0 %v1172, 96
        %v1619 = vpop.permute.xlu0 %1618
        %1620 = vrot.lane.b32.xlu0 %v1173, 96
        %v1621 = vpop.permute.xlu0 %1620
        %1622 = vrot.lane.b32.xlu0 %v1174, 96
        %v1623 = vpop.permute.xlu0 %1622
        %1624 = vrot.lane.b32.xlu0 %v1175, 96
        %v1625 = vpop.permute.xlu0 %1624
        %1626 = vrot.lane.b32.xlu0 %v1176, 96
        %v1627 = vpop.permute.xlu0 %1626
        %v1629 = vsel %vm1185, %v1589, 0
        %v1632 = vsel %vm1185, %v1591, 0
        %v1635 = vsel %vm1185, %v1593, 0
        %v1638 = vsel %vm1185, %v1595, 0
        %v1641 = vsel %vm1185, %v1597, 0
        %v1644 = vsel %vm1185, %v1599, 0
        %v1647 = vsel %vm1185, %v1601, 0
        %v1650 = vsel %vm1185, %v1603, 0
        %v1653 = vsel %vm1185, %v1613, 0
        %v1656 = vsel %vm1185, %v1615, 0
        %v1659 = vsel %vm1185, %v1617, 0
        %v1662 = vsel %vm1185, %v1619, 0
        %v1665 = vsel %vm1185, %v1621, 0
        %v1668 = vsel %vm1185, %v1623, 0
        %v1671 = vsel %vm1185, %v1625, 0
        %v1674 = vsel %vm1185, %v1627, 0
        %1676 = vmatprep.subr.bf16.mxu0 0
        %1677 = vmatpush1.bf16.xpose.msra.mxu0 %v1674
        %1678 = vmatprep.subr.bf16.mxu0 0
        %1679 = vmatpush1.bf16.xpose.msra.mxu0 %v1671
        %1680 = vmatprep.subr.bf16.mxu0 0
        %1681 = vmatpush1.bf16.xpose.msra.mxu0 %v1668
        %1682 = vmatprep.subr.bf16.mxu0 0
        %1683 = vmatpush1.bf16.xpose.msra.mxu0 %v1665
        %1684 = vmatprep.subr.bf16.mxu0 0
        %1685 = vmatpush1.bf16.xpose.msra.mxu0 %v1662
        %1686 = vmatprep.subr.bf16.mxu0 0
        %1687 = vmatpush1.bf16.xpose.msra.mxu0 %v1659
        %1688 = vmatprep.subr.bf16.mxu0 0
        %1689 = vmatpush1.bf16.xpose.msra.mxu0 %v1656
        %1690 = vmatprep.subr.bf16.mxu0 0
        %1691 = vmatpush1.bf16.xpose.msra.mxu0 %v1653
        %1692 = vmatprep.subr.bf16.mxu0 0
        %1693 = vmatpush2.bf16.xpose.msra.mxu0 0
        %1694 = vmatprep.subr.bf16.mxu0 0
        %1695 = vmatpush2.bf16.xpose.msra.mxu0 0
        %1696 = vmatprep.subr.bf16.mxu0 0
        %1697 = vmatpush2.bf16.xpose.msra.mxu0 0
        %1698 = vmatprep.subr.bf16.mxu0 0
        %1699 = vmatpush2.bf16.xpose.msra.mxu0 0
        %1700 = vmatprep.subr.bf16.mxu0 0
        %1701 = vmatpush2.bf16.xpose.msra.mxu0 0
        %1702 = vmatprep.subr.bf16.mxu0 0
        %1703 = vmatpush2.bf16.xpose.msra.mxu0 0
        %1704 = vmatprep.subr.bf16.mxu0 0
        %1705 = vmatpush2.bf16.xpose.msra.mxu0 0
        %1706 = vmatprep.subr.bf16.mxu0 0
        %1707 = vmatpush2.bf16.xpose.msra.mxu0 0
        %1708 = vmatprep.mubr.bf16.mxu0 0
        %1709 = vmatmul.mubr.bf16.gmra.mxu0 %v1629
        %v1710 = vpop.f32.mrf.mxu0
        %v1711 = vadd.f32 0.0, %v1710
        %v1712 = vpop.f32.mrf.mxu0
        %v1713 = vpop.f32.mrf.mxu0
        %v1714 = vadd.f32 0.0, %v1713
        %v1715 = vpop.f32.mrf.mxu0
        %1716 = vmatprep.mubr.bf16.mxu0 0
        %1717 = vmatmul.mubr.bf16.gmra.mxu0 %v1632
        %v1718 = vpop.f32.mrf.mxu0
        %v1719 = vadd.f32 0.0, %v1718
        %v1720 = vpop.f32.mrf.mxu0
        %v1721 = vpop.f32.mrf.mxu0
        %v1722 = vadd.f32 0.0, %v1721
        %v1723 = vpop.f32.mrf.mxu0
        %1724 = vmatprep.mubr.bf16.mxu0 0
        %1725 = vmatmul.mubr.bf16.gmra.mxu0 %v1635
        %v1726 = vpop.f32.mrf.mxu0
        %v1727 = vadd.f32 0.0, %v1726
        %v1728 = vpop.f32.mrf.mxu0
        %v1729 = vpop.f32.mrf.mxu0
        %v1730 = vadd.f32 0.0, %v1729
        %v1731 = vpop.f32.mrf.mxu0
        %1732 = vmatprep.mubr.bf16.mxu0 0
        %1733 = vmatmul.mubr.bf16.gmra.mxu0 %v1638
        %v1734 = vpop.f32.mrf.mxu0
        %v1735 = vadd.f32 0.0, %v1734
        %v1736 = vpop.f32.mrf.mxu0
        %v1737 = vpop.f32.mrf.mxu0
        %v1738 = vadd.f32 0.0, %v1737
        %v1739 = vpop.f32.mrf.mxu0
        %1740 = vmatprep.mubr.bf16.mxu0 0
        %1741 = vmatmul.mubr.bf16.gmra.mxu0 %v1641
        %v1742 = vpop.f32.mrf.mxu0
        %v1743 = vadd.f32 0.0, %v1742
        %v1744 = vpop.f32.mrf.mxu0
        %v1745 = vpop.f32.mrf.mxu0
        %v1746 = vadd.f32 0.0, %v1745
        %v1747 = vpop.f32.mrf.mxu0
        %1748 = vmatprep.mubr.bf16.mxu0 0
        %1749 = vmatmul.mubr.bf16.gmra.mxu0 %v1644
        %v1750 = vpop.f32.mrf.mxu0
        %v1751 = vadd.f32 0.0, %v1750
        %v1752 = vpop.f32.mrf.mxu0
        %v1753 = vpop.f32.mrf.mxu0
        %v1754 = vadd.f32 0.0, %v1753
        %v1755 = vpop.f32.mrf.mxu0
        %1756 = vmatprep.mubr.bf16.mxu0 0
        %1757 = vmatmul.mubr.bf16.gmra.mxu0 %v1647
        %v1758 = vpop.f32.mrf.mxu0
        %v1759 = vadd.f32 0.0, %v1758
        %v1760 = vpop.f32.mrf.mxu0
        %v1761 = vpop.f32.mrf.mxu0
        %v1762 = vadd.f32 0.0, %v1761
        %v1763 = vpop.f32.mrf.mxu0
        %1764 = vmatprep.mubr.bf16.mxu0 0
        %1765 = vmatmul.mubr.bf16.gmra.mxu0 %v1650
        %v1766 = vpop.f32.mrf.mxu0
        %v1767 = vadd.f32 0.0, %v1766
        %v1768 = vpop.f32.mrf.mxu0
        %v1769 = vpop.f32.mrf.mxu0
        %v1770 = vadd.f32 0.0, %v1769
        %v1771 = vpop.f32.mrf.mxu0
        %1772 = vdwg.mxu0
        %1773 = vmax.xlane.f32.xlu0 %v1711
        %v1774 = vpop.xlane.xlu0 %1773
        %1775 = vmax.xlane.f32.xlu0 %v1714
        %v1776 = vpop.xlane.xlu0 %1775
        %1777 = vmax.xlane.f32.xlu0 %v1719
        %v1778 = vpop.xlane.xlu0 %1777
        %1779 = vmax.xlane.f32.xlu0 %v1722
        %v1780 = vpop.xlane.xlu0 %1779
        %1781 = vmax.xlane.f32.xlu0 %v1727
        %v1782 = vpop.xlane.xlu0 %1781
        %1783 = vmax.xlane.f32.xlu0 %v1730
        %v1784 = vpop.xlane.xlu0 %1783
        %1785 = vmax.xlane.f32.xlu0 %v1735
        %v1786 = vpop.xlane.xlu0 %1785
        %1787 = vmax.xlane.f32.xlu0 %v1738
        %v1788 = vpop.xlane.xlu0 %1787
        %1789 = vmax.xlane.f32.xlu0 %v1743
        %v1790 = vpop.xlane.xlu0 %1789
        %1791 = vmax.xlane.f32.xlu0 %v1746
        %v1792 = vpop.xlane.xlu0 %1791
        %1793 = vmax.xlane.f32.xlu0 %v1751
        %v1794 = vpop.xlane.xlu0 %1793
        %1795 = vmax.xlane.f32.xlu0 %v1754
        %v1796 = vpop.xlane.xlu0 %1795
        %1797 = vmax.xlane.f32.xlu0 %v1759
        %v1798 = vpop.xlane.xlu0 %1797
        %1799 = vmax.xlane.f32.xlu0 %v1762
        %v1800 = vpop.xlane.xlu0 %1799
        %1801 = vmax.xlane.f32.xlu0 %v1767
        %v1802 = vpop.xlane.xlu0 %1801
        %1803 = vmax.xlane.f32.xlu0 %v1770
        %v1804 = vpop.xlane.xlu0 %1803
        %v1805 = vsub.f32 %v1711, %v1774
        %v1806 = vsub.f32 %v1714, %v1776
        %v1807 = vsub.f32 %v1719, %v1778
        %v1808 = vsub.f32 %v1722, %v1780
        %v1809 = vsub.f32 %v1727, %v1782
        %v1810 = vsub.f32 %v1730, %v1784
        %v1811 = vsub.f32 %v1735, %v1786
        %v1812 = vsub.f32 %v1738, %v1788
        %v1813 = vsub.f32 %v1743, %v1790
        %v1814 = vsub.f32 %v1746, %v1792
        %v1815 = vsub.f32 %v1751, %v1794
        %v1816 = vsub.f32 %v1754, %v1796
        %v1817 = vsub.f32 %v1759, %v1798
        %v1818 = vsub.f32 %v1762, %v1800
        %v1819 = vsub.f32 %v1767, %v1802
        %v1820 = vsub.f32 %v1770, %v1804
        %v1821 = vmul.f32 %v1805, 1.442695
        %v1822 = vpow.pop %v1821
        %v1823 = vmul.f32 %v1806, 1.442695
        %v1824 = vpow.pop %v1823
        %v1825 = vmul.f32 %v1807, 1.442695
        %v1826 = vpow.pop %v1825
        %v1827 = vmul.f32 %v1808, 1.442695
        %v1828 = vpow.pop %v1827
        %v1829 = vmul.f32 %v1809, 1.442695
        %v1830 = vpow.pop %v1829
        %v1831 = vmul.f32 %v1810, 1.442695
        %v1832 = vpow.pop %v1831
        %v1833 = vmul.f32 %v1811, 1.442695
        %v1834 = vpow.pop %v1833
        %v1835 = vmul.f32 %v1812, 1.442695
        %v1836 = vpow.pop %v1835
        %v1837 = vmul.f32 %v1813, 1.442695
        %v1838 = vpow.pop %v1837
        %v1839 = vmul.f32 %v1814, 1.442695
        %v1840 = vpow.pop %v1839
        %v1841 = vmul.f32 %v1815, 1.442695
        %v1842 = vpow.pop %v1841
        %v1843 = vmul.f32 %v1816, 1.442695
        %v1844 = vpow.pop %v1843
        %v1845 = vmul.f32 %v1817, 1.442695
        %v1846 = vpow.pop %v1845
        %v1847 = vmul.f32 %v1818, 1.442695
        %v1848 = vpow.pop %v1847
        %v1849 = vmul.f32 %v1819, 1.442695
        %v1850 = vpow.pop %v1849
        %v1851 = vmul.f32 %v1820, 1.442695
        %v1852 = vpow.pop %v1851
        %1853 = vadd.xlane.f32.xlu0 %v1822
        %v1854 = vpop.xlane.xlu0 %1853
        %1855 = vadd.xlane.f32.xlu0 %v1824
        %v1856 = vpop.xlane.xlu0 %1855
        %1857 = vadd.xlane.f32.xlu0 %v1826
        %v1858 = vpop.xlane.xlu0 %1857
        %1859 = vadd.xlane.f32.xlu0 %v1828
        %v1860 = vpop.xlane.xlu0 %1859
        %1861 = vadd.xlane.f32.xlu0 %v1830
        %v1862 = vpop.xlane.xlu0 %1861
        %1863 = vadd.xlane.f32.xlu0 %v1832
        %v1864 = vpop.xlane.xlu0 %1863
        %1865 = vadd.xlane.f32.xlu0 %v1834
        %v1866 = vpop.xlane.xlu0 %1865
        %1867 = vadd.xlane.f32.xlu0 %v1836
        %v1868 = vpop.xlane.xlu0 %1867
        %1869 = vadd.xlane.f32.xlu0 %v1838
        %v1870 = vpop.xlane.xlu0 %1869
        %1871 = vadd.xlane.f32.xlu0 %v1840
        %v1872 = vpop.xlane.xlu0 %1871
        %1873 = vadd.xlane.f32.xlu0 %v1842
        %v1874 = vpop.xlane.xlu0 %1873
        %1875 = vadd.xlane.f32.xlu0 %v1844
        %v1876 = vpop.xlane.xlu0 %1875
        %1877 = vadd.xlane.f32.xlu0 %v1846
        %v1878 = vpop.xlane.xlu0 %1877
        %1879 = vadd.xlane.f32.xlu0 %v1848
        %v1880 = vpop.xlane.xlu0 %1879
        %1881 = vadd.xlane.f32.xlu0 %v1850
        %v1882 = vpop.xlane.xlu0 %1881
        %1883 = vadd.xlane.f32.xlu0 %v1852
        %v1884 = vpop.xlane.xlu0 %1883
        %v1885 = vrcp.pop %v1854
        %v1886 = vrcp.pop %v1856
        %v1887 = vrcp.pop %v1858
        %v1888 = vrcp.pop %v1860
        %v1889 = vrcp.pop %v1862
        %v1890 = vrcp.pop %v1864
        %v1891 = vrcp.pop %v1866
        %v1892 = vrcp.pop %v1868
        %v1893 = vrcp.pop %v1870
        %v1894 = vrcp.pop %v1872
        %v1895 = vrcp.pop %v1874
        %v1896 = vrcp.pop %v1876
        %v1897 = vrcp.pop %v1878
        %v1898 = vrcp.pop %v1880
        %v1899 = vrcp.pop %v1882
        %v1900 = vrcp.pop %v1884
        %v1901 = vmul.f32 %v1822, %v1885
        %v1902 = vmul.f32 %v1824, %v1886
        %v1903 = vmul.f32 %v1826, %v1887
        %v1904 = vmul.f32 %v1828, %v1888
        %v1905 = vmul.f32 %v1830, %v1889
        %v1906 = vmul.f32 %v1832, %v1890
        %v1907 = vmul.f32 %v1834, %v1891
        %v1908 = vmul.f32 %v1836, %v1892
        %v1909 = vmul.f32 %v1838, %v1893
        %v1910 = vmul.f32 %v1840, %v1894
        %v1911 = vmul.f32 %v1842, %v1895
        %v1912 = vmul.f32 %v1844, %v1896
        %v1913 = vmul.f32 %v1846, %v1897
        %v1914 = vmul.f32 %v1848, %v1898
        %v1915 = vmul.f32 %v1850, %v1899
        %v1916 = vmul.f32 %v1852, %v1900
        %v1917 = vpack.c.bf16 %v1902, %v1901
        %v1918 = vpack.c.bf16 %v1904, %v1903
        %v1919 = vpack.c.bf16 %v1906, %v1905
        %v1920 = vpack.c.bf16 %v1908, %v1907
        %v1921 = vpack.c.bf16 %v1910, %v1909
        %v1922 = vpack.c.bf16 %v1912, %v1911
        %v1923 = vpack.c.bf16 %v1914, %v1913
        %v1924 = vpack.c.bf16 %v1916, %v1915
        %1933 = vrot.lane.b32.xlu0 %v1177, 96
        %v1934 = vpop.permute.xlu0 %1933
        %1935 = vrot.lane.b32.xlu0 %v1178, 96
        %v1936 = vpop.permute.xlu0 %1935
        %1937 = vrot.lane.b32.xlu0 %v1179, 96
        %v1938 = vpop.permute.xlu0 %1937
        %1939 = vrot.lane.b32.xlu0 %v1180, 96
        %v1940 = vpop.permute.xlu0 %1939
        %1941 = vrot.lane.b32.xlu0 %v1181, 96
        %v1942 = vpop.permute.xlu0 %1941
        %1943 = vrot.lane.b32.xlu0 %v1182, 96
        %v1944 = vpop.permute.xlu0 %1943
        %1945 = vrot.lane.b32.xlu0 %v1183, 96
        %v1946 = vpop.permute.xlu0 %1945
        %1947 = vrot.lane.b32.xlu0 %v1184, 96
        %v1948 = vpop.permute.xlu0 %1947
        %1957 = vmatprep.subr.bf16.mxu0 0
        %1958 = vmatpush1.bf16.msra.mxu0 %v1948
        %1959 = vmatprep.subr.bf16.mxu0 0
        %1960 = vmatpush1.bf16.msra.mxu0 %v1946
        %1961 = vmatprep.subr.bf16.mxu0 0
        %1962 = vmatpush1.bf16.msra.mxu0 %v1944
        %1963 = vmatprep.subr.bf16.mxu0 0
        %1964 = vmatpush1.bf16.msra.mxu0 %v1942
        %1965 = vmatprep.subr.bf16.mxu0 0
        %1966 = vmatpush1.bf16.msra.mxu0 %v1940
        %1967 = vmatprep.subr.bf16.mxu0 0
        %1968 = vmatpush1.bf16.msra.mxu0 %v1938
        %1969 = vmatprep.subr.bf16.mxu0 0
        %1970 = vmatpush1.bf16.msra.mxu0 %v1936
        %1971 = vmatprep.subr.bf16.mxu0 0
        %1972 = vmatpush1.bf16.msra.mxu0 %v1934
        %1973 = vmatprep.subr.bf16.mxu0 0
        %1974 = vmatpush2.bf16.msra.mxu0 0
        %1975 = vmatprep.subr.bf16.mxu0 0
        %1976 = vmatpush2.bf16.msra.mxu0 0
        %1977 = vmatprep.subr.bf16.mxu0 0
        %1978 = vmatpush2.bf16.msra.mxu0 0
        %1979 = vmatprep.subr.bf16.mxu0 0
        %1980 = vmatpush2.bf16.msra.mxu0 0
        %1981 = vmatprep.subr.bf16.mxu0 0
        %1982 = vmatpush2.bf16.msra.mxu0 0
        %1983 = vmatprep.subr.bf16.mxu0 0
        %1984 = vmatpush2.bf16.msra.mxu0 0
        %1985 = vmatprep.subr.bf16.mxu0 0
        %1986 = vmatpush2.bf16.msra.mxu0 0
        %1987 = vmatprep.subr.bf16.mxu0 0
        %1988 = vmatpush2.bf16.msra.mxu0 0
        %1989 = vmatprep.mubr.bf16.mxu0 0
        %1990 = vmatmul.mubr.bf16.gmra.mxu0 %v1917
        %v1991 = vpop.f32.mrf.mxu0
        %v1992 = vadd.f32 0.0, %v1991
        %v1993 = vpop.f32.mrf.mxu0
        %v1994 = vpop.f32.mrf.mxu0
        %v1995 = vadd.f32 0.0, %v1994
        %v1996 = vpop.f32.mrf.mxu0
        %1997 = vmatprep.mubr.bf16.mxu0 0
        %1998 = vmatmul.mubr.bf16.gmra.mxu0 %v1918
        %v1999 = vpop.f32.mrf.mxu0
        %v2000 = vadd.f32 0.0, %v1999
        %v2001 = vpop.f32.mrf.mxu0
        %v2002 = vpop.f32.mrf.mxu0
        %v2003 = vadd.f32 0.0, %v2002
        %v2004 = vpop.f32.mrf.mxu0
        %2005 = vmatprep.mubr.bf16.mxu0 0
        %2006 = vmatmul.mubr.bf16.gmra.mxu0 %v1919
        %v2007 = vpop.f32.mrf.mxu0
        %v2008 = vadd.f32 0.0, %v2007
        %v2009 = vpop.f32.mrf.mxu0
        %v2010 = vpop.f32.mrf.mxu0
        %v2011 = vadd.f32 0.0, %v2010
        %v2012 = vpop.f32.mrf.mxu0
        %2013 = vmatprep.mubr.bf16.mxu0 0
        %2014 = vmatmul.mubr.bf16.gmra.mxu0 %v1920
        %v2015 = vpop.f32.mrf.mxu0
        %v2016 = vadd.f32 0.0, %v2015
        %v2017 = vpop.f32.mrf.mxu0
        %v2018 = vpop.f32.mrf.mxu0
        %v2019 = vadd.f32 0.0, %v2018
        %v2020 = vpop.f32.mrf.mxu0
        %2021 = vmatprep.mubr.bf16.mxu0 0
        %2022 = vmatmul.mubr.bf16.gmra.mxu0 %v1921
        %v2023 = vpop.f32.mrf.mxu0
        %v2024 = vadd.f32 0.0, %v2023
        %v2025 = vpop.f32.mrf.mxu0
        %v2026 = vpop.f32.mrf.mxu0
        %v2027 = vadd.f32 0.0, %v2026
        %v2028 = vpop.f32.mrf.mxu0
        %2029 = vmatprep.mubr.bf16.mxu0 0
        %2030 = vmatmul.mubr.bf16.gmra.mxu0 %v1922
        %v2031 = vpop.f32.mrf.mxu0
        %v2032 = vadd.f32 0.0, %v2031
        %v2033 = vpop.f32.mrf.mxu0
        %v2034 = vpop.f32.mrf.mxu0
        %v2035 = vadd.f32 0.0, %v2034
        %v2036 = vpop.f32.mrf.mxu0
        %2037 = vmatprep.mubr.bf16.mxu0 0
        %2038 = vmatmul.mubr.bf16.gmra.mxu0 %v1923
        %v2039 = vpop.f32.mrf.mxu0
        %v2040 = vadd.f32 0.0, %v2039
        %v2041 = vpop.f32.mrf.mxu0
        %v2042 = vpop.f32.mrf.mxu0
        %v2043 = vadd.f32 0.0, %v2042
        %v2044 = vpop.f32.mrf.mxu0
        %2045 = vmatprep.mubr.bf16.mxu0 0
        %2046 = vmatmul.mubr.bf16.gmra.mxu0 %v1924
        %v2047 = vpop.f32.mrf.mxu0
        %v2048 = vadd.f32 0.0, %v2047
        %v2049 = vpop.f32.mrf.mxu0
        %v2050 = vpop.f32.mrf.mxu0
        %v2051 = vadd.f32 0.0, %v2050
        %v2052 = vpop.f32.mrf.mxu0
        %2053 = vdwg.mxu0
        %2054 = vrot.lane.b32.xlu0 %v1161, 64
        %v2055 = vpop.permute.xlu0 %2054
        %2056 = vrot.lane.b32.xlu0 %v1162, 64
        %v2057 = vpop.permute.xlu0 %2056
        %2058 = vrot.lane.b32.xlu0 %v1163, 64
        %v2059 = vpop.permute.xlu0 %2058
        %2060 = vrot.lane.b32.xlu0 %v1164, 64
        %v2061 = vpop.permute.xlu0 %2060
        %2062 = vrot.lane.b32.xlu0 %v1165, 64
        %v2063 = vpop.permute.xlu0 %2062
        %2064 = vrot.lane.b32.xlu0 %v1166, 64
        %v2065 = vpop.permute.xlu0 %2064
        %2066 = vrot.lane.b32.xlu0 %v1167, 64
        %v2067 = vpop.permute.xlu0 %2066
        %2068 = vrot.lane.b32.xlu0 %v1168, 64
        %v2069 = vpop.permute.xlu0 %2068
        %2070 = vrot.lane.b32.xlu0 %v1169, 64
        %v2071 = vpop.permute.xlu0 %2070
        %2072 = vrot.lane.b32.xlu0 %v1170, 64
        %v2073 = vpop.permute.xlu0 %2072
        %2074 = vrot.lane.b32.xlu0 %v1171, 64
        %v2075 = vpop.permute.xlu0 %2074
        %2076 = vrot.lane.b32.xlu0 %v1172, 64
        %v2077 = vpop.permute.xlu0 %2076
        %2078 = vrot.lane.b32.xlu0 %v1173, 64
        %v2079 = vpop.permute.xlu0 %2078
        %2080 = vrot.lane.b32.xlu0 %v1174, 64
        %v2081 = vpop.permute.xlu0 %2080
        %2082 = vrot.lane.b32.xlu0 %v1175, 64
        %v2083 = vpop.permute.xlu0 %2082
        %2084 = vrot.lane.b32.xlu0 %v1176, 64
        %v2085 = vpop.permute.xlu0 %2084
        %v2087 = vsel %vm1185, %v2055, 0
        %v2090 = vsel %vm1185, %v2057, 0
        %v2093 = vsel %vm1185, %v2059, 0
        %v2096 = vsel %vm1185, %v2061, 0
        %v2099 = vsel %vm1185, %v2063, 0
        %v2102 = vsel %vm1185, %v2065, 0
        %v2105 = vsel %vm1185, %v2067, 0
        %v2108 = vsel %vm1185, %v2069, 0
        %v2111 = vsel %vm1185, %v2071, 0
        %v2114 = vsel %vm1185, %v2073, 0
        %v2117 = vsel %vm1185, %v2075, 0
        %v2120 = vsel %vm1185, %v2077, 0
        %v2123 = vsel %vm1185, %v2079, 0
        %v2126 = vsel %vm1185, %v2081, 0
        %v2129 = vsel %vm1185, %v2083, 0
        %v2132 = vsel %vm1185, %v2085, 0
        %2134 = vmatprep.subr.bf16.mxu0 0
        %2135 = vmatpush1.bf16.xpose.msra.mxu0 %v2132
        %2136 = vmatprep.subr.bf16.mxu0 0
        %2137 = vmatpush1.bf16.xpose.msra.mxu0 %v2129
        %2138 = vmatprep.subr.bf16.mxu0 0
        %2139 = vmatpush1.bf16.xpose.msra.mxu0 %v2126
        %2140 = vmatprep.subr.bf16.mxu0 0
        %2141 = vmatpush1.bf16.xpose.msra.mxu0 %v2123
        %2142 = vmatprep.subr.bf16.mxu0 0
        %2143 = vmatpush1.bf16.xpose.msra.mxu0 %v2120
        %2144 = vmatprep.subr.bf16.mxu0 0
        %2145 = vmatpush1.bf16.xpose.msra.mxu0 %v2117
        %2146 = vmatprep.subr.bf16.mxu0 0
        %2147 = vmatpush1.bf16.xpose.msra.mxu0 %v2114
        %2148 = vmatprep.subr.bf16.mxu0 0
        %2149 = vmatpush1.bf16.xpose.msra.mxu0 %v2111
        %2150 = vmatprep.subr.bf16.mxu0 0
        %2151 = vmatpush2.bf16.xpose.msra.mxu0 0
        %2152 = vmatprep.subr.bf16.mxu0 0
        %2153 = vmatpush2.bf16.xpose.msra.mxu0 0
        %2154 = vmatprep.subr.bf16.mxu0 0
        %2155 = vmatpush2.bf16.xpose.msra.mxu0 0
        %2156 = vmatprep.subr.bf16.mxu0 0
        %2157 = vmatpush2.bf16.xpose.msra.mxu0 0
        %2158 = vmatprep.subr.bf16.mxu0 0
        %2159 = vmatpush2.bf16.xpose.msra.mxu0 0
        %2160 = vmatprep.subr.bf16.mxu0 0
        %2161 = vmatpush2.bf16.xpose.msra.mxu0 0
        %2162 = vmatprep.subr.bf16.mxu0 0
        %2163 = vmatpush2.bf16.xpose.msra.mxu0 0
        %2164 = vmatprep.subr.bf16.mxu0 0
        %2165 = vmatpush2.bf16.xpose.msra.mxu0 0
        %2166 = vmatprep.mubr.bf16.mxu0 0
        %2167 = vmatmul.mubr.bf16.gmra.mxu0 %v2087
        %v2168 = vpop.f32.mrf.mxu0
        %v2169 = vadd.f32 0.0, %v2168
        %v2170 = vpop.f32.mrf.mxu0
        %v2171 = vpop.f32.mrf.mxu0
        %v2172 = vadd.f32 0.0, %v2171
        %v2173 = vpop.f32.mrf.mxu0
        %2174 = vmatprep.mubr.bf16.mxu0 0
        %2175 = vmatmul.mubr.bf16.gmra.mxu0 %v2090
        %v2176 = vpop.f32.mrf.mxu0
        %v2177 = vadd.f32 0.0, %v2176
        %v2178 = vpop.f32.mrf.mxu0
        %v2179 = vpop.f32.mrf.mxu0
        %v2180 = vadd.f32 0.0, %v2179
        %v2181 = vpop.f32.mrf.mxu0
        %2182 = vmatprep.mubr.bf16.mxu0 0
        %2183 = vmatmul.mubr.bf16.gmra.mxu0 %v2093
        %v2184 = vpop.f32.mrf.mxu0
        %v2185 = vadd.f32 0.0, %v2184
        %v2186 = vpop.f32.mrf.mxu0
        %v2187 = vpop.f32.mrf.mxu0
        %v2188 = vadd.f32 0.0, %v2187
        %v2189 = vpop.f32.mrf.mxu0
        %2190 = vmatprep.mubr.bf16.mxu0 0
        %2191 = vmatmul.mubr.bf16.gmra.mxu0 %v2096
        %v2192 = vpop.f32.mrf.mxu0
        %v2193 = vadd.f32 0.0, %v2192
        %v2194 = vpop.f32.mrf.mxu0
        %v2195 = vpop.f32.mrf.mxu0
        %v2196 = vadd.f32 0.0, %v2195
        %v2197 = vpop.f32.mrf.mxu0
        %2198 = vmatprep.mubr.bf16.mxu0 0
        %2199 = vmatmul.mubr.bf16.gmra.mxu0 %v2099
        %v2200 = vpop.f32.mrf.mxu0
        %v2201 = vadd.f32 0.0, %v2200
        %v2202 = vpop.f32.mrf.mxu0
        %v2203 = vpop.f32.mrf.mxu0
        %v2204 = vadd.f32 0.0, %v2203
        %v2205 = vpop.f32.mrf.mxu0
        %2206 = vmatprep.mubr.bf16.mxu0 0
        %2207 = vmatmul.mubr.bf16.gmra.mxu0 %v2102
        %v2208 = vpop.f32.mrf.mxu0
        %v2209 = vadd.f32 0.0, %v2208
        %v2210 = vpop.f32.mrf.mxu0
        %v2211 = vpop.f32.mrf.mxu0
        %v2212 = vadd.f32 0.0, %v2211
        %v2213 = vpop.f32.mrf.mxu0
        %2214 = vmatprep.mubr.bf16.mxu0 0
        %2215 = vmatmul.mubr.bf16.gmra.mxu0 %v2105
        %v2216 = vpop.f32.mrf.mxu0
        %v2217 = vadd.f32 0.0, %v2216
        %v2218 = vpop.f32.mrf.mxu0
        %v2219 = vpop.f32.mrf.mxu0
        %v2220 = vadd.f32 0.0, %v2219
        %v2221 = vpop.f32.mrf.mxu0
        %2222 = vmatprep.mubr.bf16.mxu0 0
        %2223 = vmatmul.mubr.bf16.gmra.mxu0 %v2108
        %v2224 = vpop.f32.mrf.mxu0
        %v2225 = vadd.f32 0.0, %v2224
        %v2226 = vpop.f32.mrf.mxu0
        %v2227 = vpop.f32.mrf.mxu0
        %v2228 = vadd.f32 0.0, %v2227
        %v2229 = vpop.f32.mrf.mxu0
        %2230 = vdwg.mxu0
        %2231 = vmax.xlane.f32.xlu0 %v2169
        %v2232 = vpop.xlane.xlu0 %2231
        %2233 = vmax.xlane.f32.xlu0 %v2172
        %v2234 = vpop.xlane.xlu0 %2233
        %2235 = vmax.xlane.f32.xlu0 %v2177
        %v2236 = vpop.xlane.xlu0 %2235
        %2237 = vmax.xlane.f32.xlu0 %v2180
        %v2238 = vpop.xlane.xlu0 %2237
        %2239 = vmax.xlane.f32.xlu0 %v2185
        %v2240 = vpop.xlane.xlu0 %2239
        %2241 = vmax.xlane.f32.xlu0 %v2188
        %v2242 = vpop.xlane.xlu0 %2241
        %2243 = vmax.xlane.f32.xlu0 %v2193
        %v2244 = vpop.xlane.xlu0 %2243
        %2245 = vmax.xlane.f32.xlu0 %v2196
        %v2246 = vpop.xlane.xlu0 %2245
        %2247 = vmax.xlane.f32.xlu0 %v2201
        %v2248 = vpop.xlane.xlu0 %2247
        %2249 = vmax.xlane.f32.xlu0 %v2204
        %v2250 = vpop.xlane.xlu0 %2249
        %2251 = vmax.xlane.f32.xlu0 %v2209
        %v2252 = vpop.xlane.xlu0 %2251
        %2253 = vmax.xlane.f32.xlu0 %v2212
        %v2254 = vpop.xlane.xlu0 %2253
        %2255 = vmax.xlane.f32.xlu0 %v2217
        %v2256 = vpop.xlane.xlu0 %2255
        %2257 = vmax.xlane.f32.xlu0 %v2220
        %v2258 = vpop.xlane.xlu0 %2257
        %2259 = vmax.xlane.f32.xlu0 %v2225
        %v2260 = vpop.xlane.xlu0 %2259
        %2261 = vmax.xlane.f32.xlu0 %v2228
        %v2262 = vpop.xlane.xlu0 %2261
        %v2263 = vsub.f32 %v2169, %v2232
        %v2264 = vsub.f32 %v2172, %v2234
        %v2265 = vsub.f32 %v2177, %v2236
        %v2266 = vsub.f32 %v2180, %v2238
        %v2267 = vsub.f32 %v2185, %v2240
        %v2268 = vsub.f32 %v2188, %v2242
        %v2269 = vsub.f32 %v2193, %v2244
        %v2270 = vsub.f32 %v2196, %v2246
        %v2271 = vsub.f32 %v2201, %v2248
        %v2272 = vsub.f32 %v2204, %v2250
        %v2273 = vsub.f32 %v2209, %v2252
        %v2274 = vsub.f32 %v2212, %v2254
        %v2275 = vsub.f32 %v2217, %v2256
        %v2276 = vsub.f32 %v2220, %v2258
        %v2277 = vsub.f32 %v2225, %v2260
        %v2278 = vsub.f32 %v2228, %v2262
        %v2279 = vmul.f32 %v2263, 1.442695
        %v2280 = vpow.pop %v2279
        %v2281 = vmul.f32 %v2264, 1.442695
        %v2282 = vpow.pop %v2281
        %v2283 = vmul.f32 %v2265, 1.442695
        %v2284 = vpow.pop %v2283
        %v2285 = vmul.f32 %v2266, 1.442695
        %v2286 = vpow.pop %v2285
        %v2287 = vmul.f32 %v2267, 1.442695
        %v2288 = vpow.pop %v2287
        %v2289 = vmul.f32 %v2268, 1.442695
        %v2290 = vpow.pop %v2289
        %v2291 = vmul.f32 %v2269, 1.442695
        %v2292 = vpow.pop %v2291
        %v2293 = vmul.f32 %v2270, 1.442695
        %v2294 = vpow.pop %v2293
        %v2295 = vmul.f32 %v2271, 1.442695
        %v2296 = vpow.pop %v2295
        %v2297 = vmul.f32 %v2272, 1.442695
        %v2298 = vpow.pop %v2297
        %v2299 = vmul.f32 %v2273, 1.442695
        %v2300 = vpow.pop %v2299
        %v2301 = vmul.f32 %v2274, 1.442695
        %v2302 = vpow.pop %v2301
        %v2303 = vmul.f32 %v2275, 1.442695
        %v2304 = vpow.pop %v2303
        %v2305 = vmul.f32 %v2276, 1.442695
        %v2306 = vpow.pop %v2305
        %v2307 = vmul.f32 %v2277, 1.442695
        %v2308 = vpow.pop %v2307
        %v2309 = vmul.f32 %v2278, 1.442695
        %v2310 = vpow.pop %v2309
        %2311 = vadd.xlane.f32.xlu0 %v2280
        %v2312 = vpop.xlane.xlu0 %2311
        %2313 = vadd.xlane.f32.xlu0 %v2282
        %v2314 = vpop.xlane.xlu0 %2313
        %2315 = vadd.xlane.f32.xlu0 %v2284
        %v2316 = vpop.xlane.xlu0 %2315
        %2317 = vadd.xlane.f32.xlu0 %v2286
        %v2318 = vpop.xlane.xlu0 %2317
        %2319 = vadd.xlane.f32.xlu0 %v2288
        %v2320 = vpop.xlane.xlu0 %2319
        %2321 = vadd.xlane.f32.xlu0 %v2290
        %v2322 = vpop.xlane.xlu0 %2321
        %2323 = vadd.xlane.f32.xlu0 %v2292
        %v2324 = vpop.xlane.xlu0 %2323
        %2325 = vadd.xlane.f32.xlu0 %v2294
        %v2326 = vpop.xlane.xlu0 %2325
        %2327 = vadd.xlane.f32.xlu0 %v2296
        %v2328 = vpop.xlane.xlu0 %2327
        %2329 = vadd.xlane.f32.xlu0 %v2298
        %v2330 = vpop.xlane.xlu0 %2329
        %2331 = vadd.xlane.f32.xlu0 %v2300
        %v2332 = vpop.xlane.xlu0 %2331
        %2333 = vadd.xlane.f32.xlu0 %v2302
        %v2334 = vpop.xlane.xlu0 %2333
        %2335 = vadd.xlane.f32.xlu0 %v2304
        %v2336 = vpop.xlane.xlu0 %2335
        %2337 = vadd.xlane.f32.xlu0 %v2306
        %v2338 = vpop.xlane.xlu0 %2337
        %2339 = vadd.xlane.f32.xlu0 %v2308
        %v2340 = vpop.xlane.xlu0 %2339
        %2341 = vadd.xlane.f32.xlu0 %v2310
        %v2342 = vpop.xlane.xlu0 %2341
        %v2343 = vrcp.pop %v2312
        %v2344 = vrcp.pop %v2314
        %v2345 = vrcp.pop %v2316
        %v2346 = vrcp.pop %v2318
        %v2347 = vrcp.pop %v2320
        %v2348 = vrcp.pop %v2322
        %v2349 = vrcp.pop %v2324
        %v2350 = vrcp.pop %v2326
        %v2351 = vrcp.pop %v2328
        %v2352 = vrcp.pop %v2330
        %v2353 = vrcp.pop %v2332
        %v2354 = vrcp.pop %v2334
        %v2355 = vrcp.pop %v2336
        %v2356 = vrcp.pop %v2338
        %v2357 = vrcp.pop %v2340
        %v2358 = vrcp.pop %v2342
        %v2359 = vmul.f32 %v2280, %v2343
        %v2360 = vmul.f32 %v2282, %v2344
        %v2361 = vmul.f32 %v2284, %v2345
        %v2362 = vmul.f32 %v2286, %v2346
        %v2363 = vmul.f32 %v2288, %v2347
        %v2364 = vmul.f32 %v2290, %v2348
        %v2365 = vmul.f32 %v2292, %v2349
        %v2366 = vmul.f32 %v2294, %v2350
        %v2367 = vmul.f32 %v2296, %v2351
        %v2368 = vmul.f32 %v2298, %v2352
        %v2369 = vmul.f32 %v2300, %v2353
        %v2370 = vmul.f32 %v2302, %v2354
        %v2371 = vmul.f32 %v2304, %v2355
        %v2372 = vmul.f32 %v2306, %v2356
        %v2373 = vmul.f32 %v2308, %v2357
        %v2374 = vmul.f32 %v2310, %v2358
        %v2375 = vpack.c.bf16 %v2360, %v2359
        %v2376 = vpack.c.bf16 %v2362, %v2361
        %v2377 = vpack.c.bf16 %v2364, %v2363
        %v2378 = vpack.c.bf16 %v2366, %v2365
        %v2379 = vpack.c.bf16 %v2368, %v2367
        %v2380 = vpack.c.bf16 %v2370, %v2369
        %v2381 = vpack.c.bf16 %v2372, %v2371
        %v2382 = vpack.c.bf16 %v2374, %v2373
        %2383 = vrot.lane.b32.xlu0 %v1177, 64
        %v2384 = vpop.permute.xlu0 %2383
        %2385 = vrot.lane.b32.xlu0 %v1178, 64
        %v2386 = vpop.permute.xlu0 %2385
        %2387 = vrot.lane.b32.xlu0 %v1179, 64
        %v2388 = vpop.permute.xlu0 %2387
        %2389 = vrot.lane.b32.xlu0 %v1180, 64
        %v2390 = vpop.permute.xlu0 %2389
        %2391 = vrot.lane.b32.xlu0 %v1181, 64
        %v2392 = vpop.permute.xlu0 %2391
        %2393 = vrot.lane.b32.xlu0 %v1182, 64
        %v2394 = vpop.permute.xlu0 %2393
        %2395 = vrot.lane.b32.xlu0 %v1183, 64
        %v2396 = vpop.permute.xlu0 %2395
        %2397 = vrot.lane.b32.xlu0 %v1184, 64
        %v2398 = vpop.permute.xlu0 %2397
        %2407 = vmatprep.subr.bf16.mxu0 0
        %2408 = vmatpush1.bf16.msra.mxu0 %v2398
        %2409 = vmatprep.subr.bf16.mxu0 0
        %2410 = vmatpush1.bf16.msra.mxu0 %v2396
        %2411 = vmatprep.subr.bf16.mxu0 0
        %2412 = vmatpush1.bf16.msra.mxu0 %v2394
        %2413 = vmatprep.subr.bf16.mxu0 0
        %2414 = vmatpush1.bf16.msra.mxu0 %v2392
        %2415 = vmatprep.subr.bf16.mxu0 0
        %2416 = vmatpush1.bf16.msra.mxu0 %v2390
        %2417 = vmatprep.subr.bf16.mxu0 0
        %2418 = vmatpush1.bf16.msra.mxu0 %v2388
        %2419 = vmatprep.subr.bf16.mxu0 0
        %2420 = vmatpush1.bf16.msra.mxu0 %v2386
        %2421 = vmatprep.subr.bf16.mxu0 0
        %2422 = vmatpush1.bf16.msra.mxu0 %v2384
        %2423 = vmatprep.subr.bf16.mxu0 0
        %2424 = vmatpush2.bf16.msra.mxu0 0
        %2425 = vmatprep.subr.bf16.mxu0 0
        %2426 = vmatpush2.bf16.msra.mxu0 0
        %2427 = vmatprep.subr.bf16.mxu0 0
        %2428 = vmatpush2.bf16.msra.mxu0 0
        %2429 = vmatprep.subr.bf16.mxu0 0
        %2430 = vmatpush2.bf16.msra.mxu0 0
        %2431 = vmatprep.subr.bf16.mxu0 0
        %2432 = vmatpush2.bf16.msra.mxu0 0
        %2433 = vmatprep.subr.bf16.mxu0 0
        %2434 = vmatpush2.bf16.msra.mxu0 0
        %2435 = vmatprep.subr.bf16.mxu0 0
        %2436 = vmatpush2.bf16.msra.mxu0 0
        %2437 = vmatprep.subr.bf16.mxu0 0
        %2438 = vmatpush2.bf16.msra.mxu0 0
        %2439 = vmatprep.mubr.bf16.mxu0 0
        %2440 = vmatmul.mubr.bf16.gmra.mxu0 %v2375
        %v2441 = vpop.f32.mrf.mxu0
        %v2442 = vadd.f32 0.0, %v2441
        %v2443 = vpop.f32.mrf.mxu0
        %v2444 = vpop.f32.mrf.mxu0
        %v2445 = vadd.f32 0.0, %v2444
        %v2446 = vpop.f32.mrf.mxu0
        %2447 = vmatprep.mubr.bf16.mxu0 0
        %2448 = vmatmul.mubr.bf16.gmra.mxu0 %v2376
        %v2449 = vpop.f32.mrf.mxu0
        %v2450 = vadd.f32 0.0, %v2449
        %v2451 = vpop.f32.mrf.mxu0
        %v2452 = vpop.f32.mrf.mxu0
        %v2453 = vadd.f32 0.0, %v2452
        %v2454 = vpop.f32.mrf.mxu0
        %2455 = vmatprep.mubr.bf16.mxu0 0
        %2456 = vmatmul.mubr.bf16.gmra.mxu0 %v2377
        %v2457 = vpop.f32.mrf.mxu0
        %v2458 = vadd.f32 0.0, %v2457
        %v2459 = vpop.f32.mrf.mxu0
        %v2460 = vpop.f32.mrf.mxu0
        %v2461 = vadd.f32 0.0, %v2460
        %v2462 = vpop.f32.mrf.mxu0
        %2463 = vmatprep.mubr.bf16.mxu0 0
        %2464 = vmatmul.mubr.bf16.gmra.mxu0 %v2378
        %v2465 = vpop.f32.mrf.mxu0
        %v2466 = vadd.f32 0.0, %v2465
        %v2467 = vpop.f32.mrf.mxu0
        %v2468 = vpop.f32.mrf.mxu0
        %v2469 = vadd.f32 0.0, %v2468
        %v2470 = vpop.f32.mrf.mxu0
        %2471 = vmatprep.mubr.bf16.mxu0 0
        %2472 = vmatmul.mubr.bf16.gmra.mxu0 %v2379
        %v2473 = vpop.f32.mrf.mxu0
        %v2474 = vadd.f32 0.0, %v2473
        %v2475 = vpop.f32.mrf.mxu0
        %v2476 = vpop.f32.mrf.mxu0
        %v2477 = vadd.f32 0.0, %v2476
        %v2478 = vpop.f32.mrf.mxu0
        %2479 = vmatprep.mubr.bf16.mxu0 0
        %2480 = vmatmul.mubr.bf16.gmra.mxu0 %v2380
        %v2481 = vpop.f32.mrf.mxu0
        %v2482 = vadd.f32 0.0, %v2481
        %v2483 = vpop.f32.mrf.mxu0
        %v2484 = vpop.f32.mrf.mxu0
        %v2485 = vadd.f32 0.0, %v2484
        %v2486 = vpop.f32.mrf.mxu0
        %2487 = vmatprep.mubr.bf16.mxu0 0
        %2488 = vmatmul.mubr.bf16.gmra.mxu0 %v2381
        %v2489 = vpop.f32.mrf.mxu0
        %v2490 = vadd.f32 0.0, %v2489
        %v2491 = vpop.f32.mrf.mxu0
        %v2492 = vpop.f32.mrf.mxu0
        %v2493 = vadd.f32 0.0, %v2492
        %v2494 = vpop.f32.mrf.mxu0
        %2495 = vmatprep.mubr.bf16.mxu0 0
        %2496 = vmatmul.mubr.bf16.gmra.mxu0 %v2382
        %v2497 = vpop.f32.mrf.mxu0
        %v2498 = vadd.f32 0.0, %v2497
        %v2499 = vpop.f32.mrf.mxu0
        %v2500 = vpop.f32.mrf.mxu0
        %v2501 = vadd.f32 0.0, %v2500
        %v2502 = vpop.f32.mrf.mxu0
        %2503 = vdwg.mxu0
        %2504 = vrot.lane.b32.xlu0 %v1161, 32
        %v2505 = vpop.permute.xlu0 %2504
        %2506 = vrot.lane.b32.xlu0 %v1162, 32
        %v2507 = vpop.permute.xlu0 %2506
        %2508 = vrot.lane.b32.xlu0 %v1163, 32
        %v2509 = vpop.permute.xlu0 %2508
        %2510 = vrot.lane.b32.xlu0 %v1164, 32
        %v2511 = vpop.permute.xlu0 %2510
        %2512 = vrot.lane.b32.xlu0 %v1165, 32
        %v2513 = vpop.permute.xlu0 %2512
        %2514 = vrot.lane.b32.xlu0 %v1166, 32
        %v2515 = vpop.permute.xlu0 %2514
        %2516 = vrot.lane.b32.xlu0 %v1167, 32
        %v2517 = vpop.permute.xlu0 %2516
        %2518 = vrot.lane.b32.xlu0 %v1168, 32
        %v2519 = vpop.permute.xlu0 %2518
        %2520 = vrot.lane.b32.xlu0 %v1169, 32
        %v2521 = vpop.permute.xlu0 %2520
        %2522 = vrot.lane.b32.xlu0 %v1170, 32
        %v2523 = vpop.permute.xlu0 %2522
        %2524 = vrot.lane.b32.xlu0 %v1171, 32
        %v2525 = vpop.permute.xlu0 %2524
        %2526 = vrot.lane.b32.xlu0 %v1172, 32
        %v2527 = vpop.permute.xlu0 %2526
        %2528 = vrot.lane.b32.xlu0 %v1173, 32
        %v2529 = vpop.permute.xlu0 %2528
        %2530 = vrot.lane.b32.xlu0 %v1174, 32
        %v2531 = vpop.permute.xlu0 %2530
        %2532 = vrot.lane.b32.xlu0 %v1175, 32
        %v2533 = vpop.permute.xlu0 %2532
        %2534 = vrot.lane.b32.xlu0 %v1176, 32
        %v2535 = vpop.permute.xlu0 %2534
        %v2537 = vsel %vm1185, %v2505, 0
        %v2540 = vsel %vm1185, %v2507, 0
        %v2543 = vsel %vm1185, %v2509, 0
        %v2546 = vsel %vm1185, %v2511, 0
        %v2549 = vsel %vm1185, %v2513, 0
        %v2552 = vsel %vm1185, %v2515, 0
        %v2555 = vsel %vm1185, %v2517, 0
        %v2558 = vsel %vm1185, %v2519, 0
        %v2561 = vsel %vm1185, %v2521, 0
        %v2564 = vsel %vm1185, %v2523, 0
        %v2567 = vsel %vm1185, %v2525, 0
        %v2570 = vsel %vm1185, %v2527, 0
        %v2573 = vsel %vm1185, %v2529, 0
        %v2576 = vsel %vm1185, %v2531, 0
        %v2579 = vsel %vm1185, %v2533, 0
        %v2582 = vsel %vm1185, %v2535, 0
        %2584 = vmatprep.subr.bf16.mxu0 0
        %2585 = vmatpush1.bf16.xpose.msra.mxu0 %v2582
        %2586 = vmatprep.subr.bf16.mxu0 0
        %2587 = vmatpush1.bf16.xpose.msra.mxu0 %v2579
        %2588 = vmatprep.subr.bf16.mxu0 0
        %2589 = vmatpush1.bf16.xpose.msra.mxu0 %v2576
        %2590 = vmatprep.subr.bf16.mxu0 0
        %2591 = vmatpush1.bf16.xpose.msra.mxu0 %v2573
        %2592 = vmatprep.subr.bf16.mxu0 0
        %2593 = vmatpush1.bf16.xpose.msra.mxu0 %v2570
        %2594 = vmatprep.subr.bf16.mxu0 0
        %2595 = vmatpush1.bf16.xpose.msra.mxu0 %v2567
        %2596 = vmatprep.subr.bf16.mxu0 0
        %2597 = vmatpush1.bf16.xpose.msra.mxu0 %v2564
        %2598 = vmatprep.subr.bf16.mxu0 0
        %2599 = vmatpush1.bf16.xpose.msra.mxu0 %v2561
        %2600 = vmatprep.subr.bf16.mxu0 0
        %2601 = vmatpush2.bf16.xpose.msra.mxu0 0
        %2602 = vmatprep.subr.bf16.mxu0 0
        %2603 = vmatpush2.bf16.xpose.msra.mxu0 0
        %2604 = vmatprep.subr.bf16.mxu0 0
        %2605 = vmatpush2.bf16.xpose.msra.mxu0 0
        %2606 = vmatprep.subr.bf16.mxu0 0
        %2607 = vmatpush2.bf16.xpose.msra.mxu0 0
        %2608 = vmatprep.subr.bf16.mxu0 0
        %2609 = vmatpush2.bf16.xpose.msra.mxu0 0
        %2610 = vmatprep.subr.bf16.mxu0 0
        %2611 = vmatpush2.bf16.xpose.msra.mxu0 0
        %2612 = vmatprep.subr.bf16.mxu0 0
        %2613 = vmatpush2.bf16.xpose.msra.mxu0 0
        %2614 = vmatprep.subr.bf16.mxu0 0
        %2615 = vmatpush2.bf16.xpose.msra.mxu0 0
        %2616 = vmatprep.mubr.bf16.mxu0 0
        %2617 = vmatmul.mubr.bf16.gmra.mxu0 %v2537
        %v2618 = vpop.f32.mrf.mxu0
        %v2619 = vadd.f32 0.0, %v2618
        %v2620 = vpop.f32.mrf.mxu0
        %v2621 = vpop.f32.mrf.mxu0
        %v2622 = vadd.f32 0.0, %v2621
        %v2623 = vpop.f32.mrf.mxu0
        %2624 = vmatprep.mubr.bf16.mxu0 0
        %2625 = vmatmul.mubr.bf16.gmra.mxu0 %v2540
        %v2626 = vpop.f32.mrf.mxu0
        %v2627 = vadd.f32 0.0, %v2626
        %v2628 = vpop.f32.mrf.mxu0
        %v2629 = vpop.f32.mrf.mxu0
        %v2630 = vadd.f32 0.0, %v2629
        %v2631 = vpop.f32.mrf.mxu0
        %2632 = vmatprep.mubr.bf16.mxu0 0
        %2633 = vmatmul.mubr.bf16.gmra.mxu0 %v2543
        %v2634 = vpop.f32.mrf.mxu0
        %v2635 = vadd.f32 0.0, %v2634
        %v2636 = vpop.f32.mrf.mxu0
        %v2637 = vpop.f32.mrf.mxu0
        %v2638 = vadd.f32 0.0, %v2637
        %v2639 = vpop.f32.mrf.mxu0
        %2640 = vmatprep.mubr.bf16.mxu0 0
        %2641 = vmatmul.mubr.bf16.gmra.mxu0 %v2546
        %v2642 = vpop.f32.mrf.mxu0
        %v2643 = vadd.f32 0.0, %v2642
        %v2644 = vpop.f32.mrf.mxu0
        %v2645 = vpop.f32.mrf.mxu0
        %v2646 = vadd.f32 0.0, %v2645
        %v2647 = vpop.f32.mrf.mxu0
        %2648 = vmatprep.mubr.bf16.mxu0 0
        %2649 = vmatmul.mubr.bf16.gmra.mxu0 %v2549
        %v2650 = vpop.f32.mrf.mxu0
        %v2651 = vadd.f32 0.0, %v2650
        %v2652 = vpop.f32.mrf.mxu0
        %v2653 = vpop.f32.mrf.mxu0
        %v2654 = vadd.f32 0.0, %v2653
        %v2655 = vpop.f32.mrf.mxu0
        %2656 = vmatprep.mubr.bf16.mxu0 0
        %2657 = vmatmul.mubr.bf16.gmra.mxu0 %v2552
        %v2658 = vpop.f32.mrf.mxu0
        %v2659 = vadd.f32 0.0, %v2658
        %v2660 = vpop.f32.mrf.mxu0
        %v2661 = vpop.f32.mrf.mxu0
        %v2662 = vadd.f32 0.0, %v2661
        %v2663 = vpop.f32.mrf.mxu0
        %2664 = vmatprep.mubr.bf16.mxu0 0
        %2665 = vmatmul.mubr.bf16.gmra.mxu0 %v2555
        %v2666 = vpop.f32.mrf.mxu0
        %v2667 = vadd.f32 0.0, %v2666
        %v2668 = vpop.f32.mrf.mxu0
        %v2669 = vpop.f32.mrf.mxu0
        %v2670 = vadd.f32 0.0, %v2669
        %v2671 = vpop.f32.mrf.mxu0
        %2672 = vmatprep.mubr.bf16.mxu0 0
        %2673 = vmatmul.mubr.bf16.gmra.mxu0 %v2558
        %v2674 = vpop.f32.mrf.mxu0
        %v2675 = vadd.f32 0.0, %v2674
        %v2676 = vpop.f32.mrf.mxu0
        %v2677 = vpop.f32.mrf.mxu0
        %v2678 = vadd.f32 0.0, %v2677
        %v2679 = vpop.f32.mrf.mxu0
        %2680 = vdwg.mxu0
        %2681 = vmax.xlane.f32.xlu0 %v2619
        %v2682 = vpop.xlane.xlu0 %2681
        %2683 = vmax.xlane.f32.xlu0 %v2622
        %v2684 = vpop.xlane.xlu0 %2683
        %2685 = vmax.xlane.f32.xlu0 %v2627
        %v2686 = vpop.xlane.xlu0 %2685
        %2687 = vmax.xlane.f32.xlu0 %v2630
        %v2688 = vpop.xlane.xlu0 %2687
        %2689 = vmax.xlane.f32.xlu0 %v2635
        %v2690 = vpop.xlane.xlu0 %2689
        %2691 = vmax.xlane.f32.xlu0 %v2638
        %v2692 = vpop.xlane.xlu0 %2691
        %2693 = vmax.xlane.f32.xlu0 %v2643
        %v2694 = vpop.xlane.xlu0 %2693
        %2695 = vmax.xlane.f32.xlu0 %v2646
        %v2696 = vpop.xlane.xlu0 %2695
        %2697 = vmax.xlane.f32.xlu0 %v2651
        %v2698 = vpop.xlane.xlu0 %2697
        %2699 = vmax.xlane.f32.xlu0 %v2654
        %v2700 = vpop.xlane.xlu0 %2699
        %2701 = vmax.xlane.f32.xlu0 %v2659
        %v2702 = vpop.xlane.xlu0 %2701
        %2703 = vmax.xlane.f32.xlu0 %v2662
        %v2704 = vpop.xlane.xlu0 %2703
        %2705 = vmax.xlane.f32.xlu0 %v2667
        %v2706 = vpop.xlane.xlu0 %2705
        %2707 = vmax.xlane.f32.xlu0 %v2670
        %v2708 = vpop.xlane.xlu0 %2707
        %2709 = vmax.xlane.f32.xlu0 %v2675
        %v2710 = vpop.xlane.xlu0 %2709
        %2711 = vmax.xlane.f32.xlu0 %v2678
        %v2712 = vpop.xlane.xlu0 %2711
        %v2713 = vsub.f32 %v2619, %v2682
        %v2714 = vsub.f32 %v2622, %v2684
        %v2715 = vsub.f32 %v2627, %v2686
        %v2716 = vsub.f32 %v2630, %v2688
        %v2717 = vsub.f32 %v2635, %v2690
        %v2718 = vsub.f32 %v2638, %v2692
        %v2719 = vsub.f32 %v2643, %v2694
        %v2720 = vsub.f32 %v2646, %v2696
        %v2721 = vsub.f32 %v2651, %v2698
        %v2722 = vsub.f32 %v2654, %v2700
        %v2723 = vsub.f32 %v2659, %v2702
        %v2724 = vsub.f32 %v2662, %v2704
        %v2725 = vsub.f32 %v2667, %v2706
        %v2726 = vsub.f32 %v2670, %v2708
        %v2727 = vsub.f32 %v2675, %v2710
        %v2728 = vsub.f32 %v2678, %v2712
        %v2729 = vmul.f32 %v2713, 1.442695
        %v2730 = vpow.pop %v2729
        %v2731 = vmul.f32 %v2714, 1.442695
        %v2732 = vpow.pop %v2731
        %v2733 = vmul.f32 %v2715, 1.442695
        %v2734 = vpow.pop %v2733
        %v2735 = vmul.f32 %v2716, 1.442695
        %v2736 = vpow.pop %v2735
        %v2737 = vmul.f32 %v2717, 1.442695
        %v2738 = vpow.pop %v2737
        %v2739 = vmul.f32 %v2718, 1.442695
        %v2740 = vpow.pop %v2739
        %v2741 = vmul.f32 %v2719, 1.442695
        %v2742 = vpow.pop %v2741
        %v2743 = vmul.f32 %v2720, 1.442695
        %v2744 = vpow.pop %v2743
        %v2745 = vmul.f32 %v2721, 1.442695
        %v2746 = vpow.pop %v2745
        %v2747 = vmul.f32 %v2722, 1.442695
        %v2748 = vpow.pop %v2747
        %v2749 = vmul.f32 %v2723, 1.442695
        %v2750 = vpow.pop %v2749
        %v2751 = vmul.f32 %v2724, 1.442695
        %v2752 = vpow.pop %v2751
        %v2753 = vmul.f32 %v2725, 1.442695
        %v2754 = vpow.pop %v2753
        %v2755 = vmul.f32 %v2726, 1.442695
        %v2756 = vpow.pop %v2755
        %v2757 = vmul.f32 %v2727, 1.442695
        %v2758 = vpow.pop %v2757
        %v2759 = vmul.f32 %v2728, 1.442695
        %v2760 = vpow.pop %v2759
        %2761 = vadd.xlane.f32.xlu0 %v2730
        %v2762 = vpop.xlane.xlu0 %2761
        %2763 = vadd.xlane.f32.xlu0 %v2732
        %v2764 = vpop.xlane.xlu0 %2763
        %2765 = vadd.xlane.f32.xlu0 %v2734
        %v2766 = vpop.xlane.xlu0 %2765
        %2767 = vadd.xlane.f32.xlu0 %v2736
        %v2768 = vpop.xlane.xlu0 %2767
        %2769 = vadd.xlane.f32.xlu0 %v2738
        %v2770 = vpop.xlane.xlu0 %2769
        %2771 = vadd.xlane.f32.xlu0 %v2740
        %v2772 = vpop.xlane.xlu0 %2771
        %2773 = vadd.xlane.f32.xlu0 %v2742
        %v2774 = vpop.xlane.xlu0 %2773
        %2775 = vadd.xlane.f32.xlu0 %v2744
        %v2776 = vpop.xlane.xlu0 %2775
        %2777 = vadd.xlane.f32.xlu0 %v2746
        %v2778 = vpop.xlane.xlu0 %2777
        %2779 = vadd.xlane.f32.xlu0 %v2748
        %v2780 = vpop.xlane.xlu0 %2779
        %2781 = vadd.xlane.f32.xlu0 %v2750
        %v2782 = vpop.xlane.xlu0 %2781
        %2783 = vadd.xlane.f32.xlu0 %v2752
        %v2784 = vpop.xlane.xlu0 %2783
        %2785 = vadd.xlane.f32.xlu0 %v2754
        %v2786 = vpop.xlane.xlu0 %2785
        %2787 = vadd.xlane.f32.xlu0 %v2756
        %v2788 = vpop.xlane.xlu0 %2787
        %2789 = vadd.xlane.f32.xlu0 %v2758
        %v2790 = vpop.xlane.xlu0 %2789
        %2791 = vadd.xlane.f32.xlu0 %v2760
        %v2792 = vpop.xlane.xlu0 %2791
        %v2793 = vrcp.pop %v2762
        %v2794 = vrcp.pop %v2764
        %v2795 = vrcp.pop %v2766
        %v2796 = vrcp.pop %v2768
        %v2797 = vrcp.pop %v2770
        %v2798 = vrcp.pop %v2772
        %v2799 = vrcp.pop %v2774
        %v2800 = vrcp.pop %v2776
        %v2801 = vrcp.pop %v2778
        %v2802 = vrcp.pop %v2780
        %v2803 = vrcp.pop %v2782
        %v2804 = vrcp.pop %v2784
        %v2805 = vrcp.pop %v2786
        %v2806 = vrcp.pop %v2788
        %v2807 = vrcp.pop %v2790
        %v2808 = vrcp.pop %v2792
        %v2809 = vmul.f32 %v2730, %v2793
        %v2810 = vmul.f32 %v2732, %v2794
        %v2811 = vmul.f32 %v2734, %v2795
        %v2812 = vmul.f32 %v2736, %v2796
        %v2813 = vmul.f32 %v2738, %v2797
        %v2814 = vmul.f32 %v2740, %v2798
        %v2815 = vmul.f32 %v2742, %v2799
        %v2816 = vmul.f32 %v2744, %v2800
        %v2817 = vmul.f32 %v2746, %v2801
        %v2818 = vmul.f32 %v2748, %v2802
        %v2819 = vmul.f32 %v2750, %v2803
        %v2820 = vmul.f32 %v2752, %v2804
        %v2821 = vmul.f32 %v2754, %v2805
        %v2822 = vmul.f32 %v2756, %v2806
        %v2823 = vmul.f32 %v2758, %v2807
        %v2824 = vmul.f32 %v2760, %v2808
        %v2825 = vpack.c.bf16 %v2810, %v2809
        %v2826 = vpack.c.bf16 %v2812, %v2811
        %v2827 = vpack.c.bf16 %v2814, %v2813
        %v2828 = vpack.c.bf16 %v2816, %v2815
        %v2829 = vpack.c.bf16 %v2818, %v2817
        %v2830 = vpack.c.bf16 %v2820, %v2819
        %v2831 = vpack.c.bf16 %v2822, %v2821
        %v2832 = vpack.c.bf16 %v2824, %v2823
        %2833 = vrot.lane.b32.xlu0 %v1177, 32
        %v2834 = vpop.permute.xlu0 %2833
        %2835 = vrot.lane.b32.xlu0 %v1178, 32
        %v2836 = vpop.permute.xlu0 %2835
        %2837 = vrot.lane.b32.xlu0 %v1179, 32
        %v2838 = vpop.permute.xlu0 %2837
        %2839 = vrot.lane.b32.xlu0 %v1180, 32
        %v2840 = vpop.permute.xlu0 %2839
        %2841 = vrot.lane.b32.xlu0 %v1181, 32
        %v2842 = vpop.permute.xlu0 %2841
        %2843 = vrot.lane.b32.xlu0 %v1182, 32
        %v2844 = vpop.permute.xlu0 %2843
        %2845 = vrot.lane.b32.xlu0 %v1183, 32
        %v2846 = vpop.permute.xlu0 %2845
        %2847 = vrot.lane.b32.xlu0 %v1184, 32
        %v2848 = vpop.permute.xlu0 %2847
        %2857 = vmatprep.subr.bf16.mxu0 0
        %2858 = vmatpush1.bf16.msra.mxu0 %v2848
        %2859 = vmatprep.subr.bf16.mxu0 0
        %2860 = vmatpush1.bf16.msra.mxu0 %v2846
        %2861 = vmatprep.subr.bf16.mxu0 0
        %2862 = vmatpush1.bf16.msra.mxu0 %v2844
        %2863 = vmatprep.subr.bf16.mxu0 0
        %2864 = vmatpush1.bf16.msra.mxu0 %v2842
        %2865 = vmatprep.subr.bf16.mxu0 0
        %2866 = vmatpush1.bf16.msra.mxu0 %v2840
        %2867 = vmatprep.subr.bf16.mxu0 0
        %2868 = vmatpush1.bf16.msra.mxu0 %v2838
        %2869 = vmatprep.subr.bf16.mxu0 0
        %2870 = vmatpush1.bf16.msra.mxu0 %v2836
        %2871 = vmatprep.subr.bf16.mxu0 0
        %2872 = vmatpush1.bf16.msra.mxu0 %v2834
        %2873 = vmatprep.subr.bf16.mxu0 0
        %2874 = vmatpush2.bf16.msra.mxu0 0
        %2875 = vmatprep.subr.bf16.mxu0 0
        %2876 = vmatpush2.bf16.msra.mxu0 0
        %2877 = vmatprep.subr.bf16.mxu0 0
        %2878 = vmatpush2.bf16.msra.mxu0 0
        %2879 = vmatprep.subr.bf16.mxu0 0
        %2880 = vmatpush2.bf16.msra.mxu0 0
        %2881 = vmatprep.subr.bf16.mxu0 0
        %2882 = vmatpush2.bf16.msra.mxu0 0
        %2883 = vmatprep.subr.bf16.mxu0 0
        %2884 = vmatpush2.bf16.msra.mxu0 0
        %2885 = vmatprep.subr.bf16.mxu0 0
        %2886 = vmatpush2.bf16.msra.mxu0 0
        %2887 = vmatprep.subr.bf16.mxu0 0
        %2888 = vmatpush2.bf16.msra.mxu0 0
        %2889 = vmatprep.mubr.bf16.mxu0 0
        %2890 = vmatmul.mubr.bf16.gmra.mxu0 %v2825
        %v2891 = vpop.f32.mrf.mxu0
        %v2892 = vadd.f32 0.0, %v2891
        %v2893 = vpop.f32.mrf.mxu0
        %v2894 = vpop.f32.mrf.mxu0
        %v2895 = vadd.f32 0.0, %v2894
        %v2896 = vpop.f32.mrf.mxu0
        %2897 = vmatprep.mubr.bf16.mxu0 0
        %2898 = vmatmul.mubr.bf16.gmra.mxu0 %v2826
        %v2899 = vpop.f32.mrf.mxu0
        %v2900 = vadd.f32 0.0, %v2899
        %v2901 = vpop.f32.mrf.mxu0
        %v2902 = vpop.f32.mrf.mxu0
        %v2903 = vadd.f32 0.0, %v2902
        %v2904 = vpop.f32.mrf.mxu0
        %2905 = vmatprep.mubr.bf16.mxu0 0
        %2906 = vmatmul.mubr.bf16.gmra.mxu0 %v2827
        %v2907 = vpop.f32.mrf.mxu0
        %v2908 = vadd.f32 0.0, %v2907
        %v2909 = vpop.f32.mrf.mxu0
        %v2910 = vpop.f32.mrf.mxu0
        %v2911 = vadd.f32 0.0, %v2910
        %v2912 = vpop.f32.mrf.mxu0
        %2913 = vmatprep.mubr.bf16.mxu0 0
        %2914 = vmatmul.mubr.bf16.gmra.mxu0 %v2828
        %v2915 = vpop.f32.mrf.mxu0
        %v2916 = vadd.f32 0.0, %v2915
        %v2917 = vpop.f32.mrf.mxu0
        %v2918 = vpop.f32.mrf.mxu0
        %v2919 = vadd.f32 0.0, %v2918
        %v2920 = vpop.f32.mrf.mxu0
        %2921 = vmatprep.mubr.bf16.mxu0 0
        %2922 = vmatmul.mubr.bf16.gmra.mxu0 %v2829
        %v2923 = vpop.f32.mrf.mxu0
        %v2924 = vadd.f32 0.0, %v2923
        %v2925 = vpop.f32.mrf.mxu0
        %v2926 = vpop.f32.mrf.mxu0
        %v2927 = vadd.f32 0.0, %v2926
        %v2928 = vpop.f32.mrf.mxu0
        %2929 = vmatprep.mubr.bf16.mxu0 0
        %2930 = vmatmul.mubr.bf16.gmra.mxu0 %v2830
        %v2931 = vpop.f32.mrf.mxu0
        %v2932 = vadd.f32 0.0, %v2931
        %v2933 = vpop.f32.mrf.mxu0
        %v2934 = vpop.f32.mrf.mxu0
        %v2935 = vadd.f32 0.0, %v2934
        %v2936 = vpop.f32.mrf.mxu0
        %2937 = vmatprep.mubr.bf16.mxu0 0
        %2938 = vmatmul.mubr.bf16.gmra.mxu0 %v2831
        %v2939 = vpop.f32.mrf.mxu0
        %v2940 = vadd.f32 0.0, %v2939
        %v2941 = vpop.f32.mrf.mxu0
        %v2942 = vpop.f32.mrf.mxu0
        %v2943 = vadd.f32 0.0, %v2942
        %v2944 = vpop.f32.mrf.mxu0
        %2945 = vmatprep.mubr.bf16.mxu0 0
        %2946 = vmatmul.mubr.bf16.gmra.mxu0 %v2832
        %v2947 = vpop.f32.mrf.mxu0
        %v2948 = vadd.f32 0.0, %v2947
        %v2949 = vpop.f32.mrf.mxu0
        %v2950 = vpop.f32.mrf.mxu0
        %v2951 = vadd.f32 0.0, %v2950
        %v2952 = vpop.f32.mrf.mxu0
        %2953 = vdwg.mxu0
        %2970 = vrot.lane.b32.xlu0 %v1992, 32
        %v2971 = vpop.permute.xlu0 %2970
        %2972 = vrot.lane.b32.xlu0 %v1995, 32
        %v2973 = vpop.permute.xlu0 %2972
        %2974 = vrot.lane.b32.xlu0 %v2000, 32
        %v2975 = vpop.permute.xlu0 %2974
        %2976 = vrot.lane.b32.xlu0 %v2003, 32
        %v2977 = vpop.permute.xlu0 %2976
        %2978 = vrot.lane.b32.xlu0 %v2008, 32
        %v2979 = vpop.permute.xlu0 %2978
        %2980 = vrot.lane.b32.xlu0 %v2011, 32
        %v2981 = vpop.permute.xlu0 %2980
        %2982 = vrot.lane.b32.xlu0 %v2016, 32
        %v2983 = vpop.permute.xlu0 %2982
        %2984 = vrot.lane.b32.xlu0 %v2019, 32
        %v2985 = vpop.permute.xlu0 %2984
        %2986 = vrot.lane.b32.xlu0 %v2024, 32
        %v2987 = vpop.permute.xlu0 %2986
        %2988 = vrot.lane.b32.xlu0 %v2027, 32
        %v2989 = vpop.permute.xlu0 %2988
        %2990 = vrot.lane.b32.xlu0 %v2032, 32
        %v2991 = vpop.permute.xlu0 %2990
        %2992 = vrot.lane.b32.xlu0 %v2035, 32
        %v2993 = vpop.permute.xlu0 %2992
        %2994 = vrot.lane.b32.xlu0 %v2040, 32
        %v2995 = vpop.permute.xlu0 %2994
        %2996 = vrot.lane.b32.xlu0 %v2043, 32
        %v2997 = vpop.permute.xlu0 %2996
        %2998 = vrot.lane.b32.xlu0 %v2048, 32
        %v2999 = vpop.permute.xlu0 %2998
        %3000 = vrot.lane.b32.xlu0 %v2051, 32
        %v3001 = vpop.permute.xlu0 %3000
        %3034 = vrot.lane.b32.xlu0 %v2442, 64
        %v3035 = vpop.permute.xlu0 %3034
        %3036 = vrot.lane.b32.xlu0 %v2445, 64
        %v3037 = vpop.permute.xlu0 %3036
        %3038 = vrot.lane.b32.xlu0 %v2450, 64
        %v3039 = vpop.permute.xlu0 %3038
        %3040 = vrot.lane.b32.xlu0 %v2453, 64
        %v3041 = vpop.permute.xlu0 %3040
        %3042 = vrot.lane.b32.xlu0 %v2458, 64
        %v3043 = vpop.permute.xlu0 %3042
        %3044 = vrot.lane.b32.xlu0 %v2461, 64
        %v3045 = vpop.permute.xlu0 %3044
        %3046 = vrot.lane.b32.xlu0 %v2466, 64
        %v3047 = vpop.permute.xlu0 %3046
        %3048 = vrot.lane.b32.xlu0 %v2469, 64
        %v3049 = vpop.permute.xlu0 %3048
        %3050 = vrot.lane.b32.xlu0 %v2474, 64
        %v3051 = vpop.permute.xlu0 %3050
        %3052 = vrot.lane.b32.xlu0 %v2477, 64
        %v3053 = vpop.permute.xlu0 %3052
        %3054 = vrot.lane.b32.xlu0 %v2482, 64
        %v3055 = vpop.permute.xlu0 %3054
        %3056 = vrot.lane.b32.xlu0 %v2485, 64
        %v3057 = vpop.permute.xlu0 %3056
        %3058 = vrot.lane.b32.xlu0 %v2490, 64
        %v3059 = vpop.permute.xlu0 %3058
        %3060 = vrot.lane.b32.xlu0 %v2493, 64
        %v3061 = vpop.permute.xlu0 %3060
        %3062 = vrot.lane.b32.xlu0 %v2498, 64
        %v3063 = vpop.permute.xlu0 %3062
        %3064 = vrot.lane.b32.xlu0 %v2501, 64
        %v3065 = vpop.permute.xlu0 %3064
        %3098 = vrot.lane.b32.xlu0 %v2892, 96
        %v3099 = vpop.permute.xlu0 %3098
        %3100 = vrot.lane.b32.xlu0 %v2895, 96
        %v3101 = vpop.permute.xlu0 %3100
        %3102 = vrot.lane.b32.xlu0 %v2900, 96
        %v3103 = vpop.permute.xlu0 %3102
        %3104 = vrot.lane.b32.xlu0 %v2903, 96
        %v3105 = vpop.permute.xlu0 %3104
        %3106 = vrot.lane.b32.xlu0 %v2908, 96
        %v3107 = vpop.permute.xlu0 %3106
        %3108 = vrot.lane.b32.xlu0 %v2911, 96
        %v3109 = vpop.permute.xlu0 %3108
        %3110 = vrot.lane.b32.xlu0 %v2916, 96
        %v3111 = vpop.permute.xlu0 %3110
        %3112 = vrot.lane.b32.xlu0 %v2919, 96
        %v3113 = vpop.permute.xlu0 %3112
        %3114 = vrot.lane.b32.xlu0 %v2924, 96
        %v3115 = vpop.permute.xlu0 %3114
        %3116 = vrot.lane.b32.xlu0 %v2927, 96
        %v3117 = vpop.permute.xlu0 %3116
        %3118 = vrot.lane.b32.xlu0 %v2932, 96
        %v3119 = vpop.permute.xlu0 %3118
        %3120 = vrot.lane.b32.xlu0 %v2935, 96
        %v3121 = vpop.permute.xlu0 %3120
        %3122 = vrot.lane.b32.xlu0 %v2940, 96
        %v3123 = vpop.permute.xlu0 %3122
        %3124 = vrot.lane.b32.xlu0 %v2943, 96
        %v3125 = vpop.permute.xlu0 %3124
        %3126 = vrot.lane.b32.xlu0 %v2948, 96
        %v3127 = vpop.permute.xlu0 %3126
        %3128 = vrot.lane.b32.xlu0 %v2951, 96
        %v3129 = vpop.permute.xlu0 %3128
        %v3146 = vsel %vm1185, %v1518, %v2971
        %v3147 = vsel %vm1185, %v1521, %v2973
        %v3148 = vsel %vm1185, %v1526, %v2975
        %v3149 = vsel %vm1185, %v1529, %v2977
        %v3150 = vsel %vm1185, %v1534, %v2979
        %v3151 = vsel %vm1185, %v1537, %v2981
        %v3152 = vsel %vm1185, %v1542, %v2983
        %v3153 = vsel %vm1185, %v1545, %v2985
        %v3154 = vsel %vm1185, %v1550, %v2987
        %v3155 = vsel %vm1185, %v1553, %v2989
        %v3156 = vsel %vm1185, %v1558, %v2991
        %v3157 = vsel %vm1185, %v1561, %v2993
        %v3158 = vsel %vm1185, %v1566, %v2995
        %v3159 = vsel %vm1185, %v1569, %v2997
        %v3160 = vsel %vm1185, %v1574, %v2999
        %v3161 = vsel %vm1185, %v1577, %v3001
        %vm3162 = vcmask 523264
        %v3163 = vsel %vm3162, %v3146, %v3035
        %v3164 = vsel %vm3162, %v3147, %v3037
        %v3165 = vsel %vm3162, %v3148, %v3039
        %v3166 = vsel %vm3162, %v3149, %v3041
        %v3167 = vsel %vm3162, %v3150, %v3043
        %v3168 = vsel %vm3162, %v3151, %v3045
        %v3169 = vsel %vm3162, %v3152, %v3047
        %v3170 = vsel %vm3162, %v3153, %v3049
        %v3171 = vsel %vm3162, %v3154, %v3051
        %v3172 = vsel %vm3162, %v3155, %v3053
        %v3173 = vsel %vm3162, %v3156, %v3055
        %v3174 = vsel %vm3162, %v3157, %v3057
        %v3175 = vsel %vm3162, %v3158, %v3059
        %v3176 = vsel %vm3162, %v3159, %v3061
        %v3177 = vsel %vm3162, %v3160, %v3063
        %v3178 = vsel %vm3162, %v3161, %v3065
        %vm3179 = vcmask 785408
        %v3180 = vsel %vm3179, %v3163, %v3099
        %v3181 = vsel %vm3179, %v3164, %v3101
        %v3182 = vsel %vm3179, %v3165, %v3103
        %v3183 = vsel %vm3179, %v3166, %v3105
        %v3184 = vsel %vm3179, %v3167, %v3107
        %v3185 = vsel %vm3179, %v3168, %v3109
        %v3186 = vsel %vm3179, %v3169, %v3111
        %v3187 = vsel %vm3179, %v3170, %v3113
        %v3188 = vsel %vm3179, %v3171, %v3115
        %v3189 = vsel %vm3179, %v3172, %v3117
        %v3190 = vsel %vm3179, %v3173, %v3119
        %v3191 = vsel %vm3179, %v3174, %v3121
        %v3192 = vsel %vm3179, %v3175, %v3123
        %v3193 = vsel %vm3179, %v3176, %v3125
        %v3194 = vsel %vm3179, %v3177, %v3127
        %v3195 = vsel %vm3179, %v3178, %v3129
        %v3196 = vpack.c.bf16 %v3181, %v3180
        %v3197 = vpack.c.bf16 %v3183, %v3182
        %v3198 = vpack.c.bf16 %v3185, %v3184
        %v3199 = vpack.c.bf16 %v3187, %v3186
        %v3200 = vpack.c.bf16 %v3189, %v3188
        %v3201 = vpack.c.bf16 %v3191, %v3190
        %v3202 = vpack.c.bf16 %v3193, %v3192
        %v3203 = vpack.c.bf16 %v3195, %v3194
        %v3204 = vld [vmem:[#allocation11] sm:$0xf]
        %v3205 = vld [vmem:[#allocation11 + $0x4] sm:$0xf]
        %v3206 = vld [vmem:[#allocation11 + $0x8] sm:$0xf]
        %v3207 = vld [vmem:[#allocation11 + $0xc] sm:$0xf]
        %v3208 = vld [vmem:[#allocation11 + $0x10] sm:$0xf]
        %v3209 = vld [vmem:[#allocation11 + $0x14] sm:$0xf]
        %v3210 = vld [vmem:[#allocation11 + $0x18] sm:$0xf]
        %v3211 = vld [vmem:[#allocation11 + $0x1c] sm:$0xf]
        %v3212 = vld [vmem:[#allocation11 + $0x20] sm:$0xf]
        %v3213 = vld [vmem:[#allocation11 + $0x24] sm:$0xf]
        %v3214 = vld [vmem:[#allocation11 + $0x28] sm:$0xf]
        %v3215 = vld [vmem:[#allocation11 + $0x2c] sm:$0xf]
        %v3216 = vld [vmem:[#allocation11 + $0x30] sm:$0xf]
        %v3217 = vld [vmem:[#allocation11 + $0x34] sm:$0xf]
        %v3218 = vld [vmem:[#allocation11 + $0x38] sm:$0xf]
        %v3219 = vld [vmem:[#allocation11 + $0x3c] sm:$0xf]
        %v3220 = vld [vmem:[%s6] sm:$0x1]
        %v3222 = vlaneseq
        %v3223 = vshrl.u32 %v3222, 7
        %v3224 = vsub.s32 0, %v3223
        %v3225 = vrot.slane %v3220, %v3224
        %v3243 = vunpack.c.l.b16 %v3204
        %v3244 = vunpack.c.l.b16 %v3205
        %v3245 = vunpack.c.l.b16 %v3206
        %v3246 = vunpack.c.l.b16 %v3207
        %v3247 = vunpack.c.l.b16 %v3208
        %v3248 = vunpack.c.l.b16 %v3209
        %v3249 = vunpack.c.l.b16 %v3210
        %v3250 = vunpack.c.l.b16 %v3211
        %v3251 = vunpack.c.l.b16 %v3212
        %v3252 = vunpack.c.l.b16 %v3213
        %v3253 = vunpack.c.l.b16 %v3214
        %v3254 = vunpack.c.l.b16 %v3215
        %v3255 = vunpack.c.l.b16 %v3216
        %v3256 = vunpack.c.l.b16 %v3217
        %v3257 = vunpack.c.l.b16 %v3218
        %v3258 = vunpack.c.l.b16 %v3219
        %v3259 = vpack.c.b16 %v3244, %v3243
        %v3260 = vpack.c.b16 %v3246, %v3245
        %v3261 = vpack.c.b16 %v3248, %v3247
        %v3262 = vpack.c.b16 %v3250, %v3249
        %v3263 = vpack.c.b16 %v3252, %v3251
        %v3264 = vpack.c.b16 %v3254, %v3253
        %v3265 = vpack.c.b16 %v3256, %v3255
        %v3266 = vpack.c.b16 %v3258, %v3257
        %3275 = vmatprep.subr.bf16.mxu0 0
        %3276 = vmatpush1.bf16.msra.mxu0 %v3266
        %3277 = vmatprep.subr.bf16.mxu0 0
        %3278 = vmatpush1.bf16.msra.mxu0 %v3265
        %3279 = vmatprep.subr.bf16.mxu0 0
        %3280 = vmatpush1.bf16.msra.mxu0 %v3264
        %3281 = vmatprep.subr.bf16.mxu0 0
        %3282 = vmatpush1.bf16.msra.mxu0 %v3263
        %3283 = vmatprep.subr.bf16.mxu0 0
        %3284 = vmatpush1.bf16.msra.mxu0 %v3262
        %3285 = vmatprep.subr.bf16.mxu0 0
        %3286 = vmatpush1.bf16.msra.mxu0 %v3261
        %3287 = vmatprep.subr.bf16.mxu0 0
        %3288 = vmatpush1.bf16.msra.mxu0 %v3260
        %3289 = vmatprep.subr.bf16.mxu0 0
        %3290 = vmatpush1.bf16.msra.mxu0 %v3259
        %3291 = vmatprep.subr.bf16.mxu0 0
        %3292 = vmatpush2.bf16.msra.mxu0 0
        %3293 = vmatprep.subr.bf16.mxu0 0
        %3294 = vmatpush2.bf16.msra.mxu0 0
        %3295 = vmatprep.subr.bf16.mxu0 0
        %3296 = vmatpush2.bf16.msra.mxu0 0
        %3297 = vmatprep.subr.bf16.mxu0 0
        %3298 = vmatpush2.bf16.msra.mxu0 0
        %3299 = vmatprep.subr.bf16.mxu0 0
        %3300 = vmatpush2.bf16.msra.mxu0 0
        %3301 = vmatprep.subr.bf16.mxu0 0
        %3302 = vmatpush2.bf16.msra.mxu0 0
        %3303 = vmatprep.subr.bf16.mxu0 0
        %3304 = vmatpush2.bf16.msra.mxu0 0
        %3305 = vmatprep.subr.bf16.mxu0 0
        %3306 = vmatpush2.bf16.msra.mxu0 0
        %3307 = vmatprep.mubr.bf16.mxu0 0
        %3308 = vmatmul.mubr.bf16.gmra.mxu0 %v3196
        %v3309 = vpop.f32.mrf.mxu0
        %v3310 = vadd.f32 %v3225, %v3309
        %v3311 = vpop.f32.mrf.mxu0
        %v3312 = vpop.f32.mrf.mxu0
        %v3313 = vadd.f32 %v3225, %v3312
        %v3314 = vpop.f32.mrf.mxu0
        %3315 = vmatprep.mubr.bf16.mxu0 0
        %3316 = vmatmul.mubr.bf16.gmra.mxu0 %v3197
        %v3317 = vpop.f32.mrf.mxu0
        %v3318 = vadd.f32 %v3225, %v3317
        %v3319 = vpop.f32.mrf.mxu0
        %v3320 = vpop.f32.mrf.mxu0
        %v3321 = vadd.f32 %v3225, %v3320
        %v3322 = vpop.f32.mrf.mxu0
        %3323 = vmatprep.mubr.bf16.mxu0 0
        %3324 = vmatmul.mubr.bf16.gmra.mxu0 %v3198
        %v3325 = vpop.f32.mrf.mxu0
        %v3326 = vadd.f32 %v3225, %v3325
        %v3327 = vpop.f32.mrf.mxu0
        %v3328 = vpop.f32.mrf.mxu0
        %v3329 = vadd.f32 %v3225, %v3328
        %v3330 = vpop.f32.mrf.mxu0
        %3331 = vmatprep.mubr.bf16.mxu0 0
        %3332 = vmatmul.mubr.bf16.gmra.mxu0 %v3199
        %v3333 = vpop.f32.mrf.mxu0
        %v3334 = vadd.f32 %v3225, %v3333
        %v3335 = vpop.f32.mrf.mxu0
        %v3336 = vpop.f32.mrf.mxu0
        %v3337 = vadd.f32 %v3225, %v3336
        %v3338 = vpop.f32.mrf.mxu0
        %3339 = vmatprep.mubr.bf16.mxu0 0
        %3340 = vmatmul.mubr.bf16.gmra.mxu0 %v3200
        %v3341 = vpop.f32.mrf.mxu0
        %v3342 = vadd.f32 %v3225, %v3341
        %v3343 = vpop.f32.mrf.mxu0
        %v3344 = vpop.f32.mrf.mxu0
        %v3345 = vadd.f32 %v3225, %v3344
        %v3346 = vpop.f32.mrf.mxu0
        %3347 = vmatprep.mubr.bf16.mxu0 0
        %3348 = vmatmul.mubr.bf16.gmra.mxu0 %v3201
        %v3349 = vpop.f32.mrf.mxu0
        %v3350 = vadd.f32 %v3225, %v3349
        %v3351 = vpop.f32.mrf.mxu0
        %v3352 = vpop.f32.mrf.mxu0
        %v3353 = vadd.f32 %v3225, %v3352
        %v3354 = vpop.f32.mrf.mxu0
        %3355 = vmatprep.mubr.bf16.mxu0 0
        %3356 = vmatmul.mubr.bf16.gmra.mxu0 %v3202
        %v3357 = vpop.f32.mrf.mxu0
        %v3358 = vadd.f32 %v3225, %v3357
        %v3359 = vpop.f32.mrf.mxu0
        %v3360 = vpop.f32.mrf.mxu0
        %v3361 = vadd.f32 %v3225, %v3360
        %v3362 = vpop.f32.mrf.mxu0
        %3363 = vmatprep.mubr.bf16.mxu0 0
        %3364 = vmatmul.mubr.bf16.gmra.mxu0 %v3203
        %v3365 = vpop.f32.mrf.mxu0
        %v3366 = vadd.f32 %v3225, %v3365
        %v3367 = vpop.f32.mrf.mxu0
        %v3368 = vpop.f32.mrf.mxu0
        %v3369 = vadd.f32 %v3225, %v3368
        %v3370 = vpop.f32.mrf.mxu0
        %3371 = vdwg.mxu0
        %v3372 = vadd.f32 %v527, %v3310
        %v3373 = vadd.f32 %v528, %v3313
        %v3374 = vadd.f32 %v529, %v3318
        %v3375 = vadd.f32 %v530, %v3321
        %v3376 = vadd.f32 %v531, %v3326
        %v3377 = vadd.f32 %v532, %v3329
        %v3378 = vadd.f32 %v533, %v3334
        %v3379 = vadd.f32 %v534, %v3337
        %v3380 = vadd.f32 %v535, %v3342
        %v3381 = vadd.f32 %v536, %v3345
        %v3382 = vadd.f32 %v537, %v3350
        %v3383 = vadd.f32 %v538, %v3353
        %v3384 = vadd.f32 %v539, %v3358
        %v3385 = vadd.f32 %v540, %v3361
        %v3386 = vadd.f32 %v541, %v3366
        %v3387 = vadd.f32 %v542, %v3369
        %v3388 = vld [vmem:[%s7] sm:$0x1]
        %v3389 = vld [vmem:[%s8] sm:$0x1]
        %3390 = vadd.xlane.f32.xlu0 %v3372
        %v3391 = vpop.xlane.xlu0 %3390
        %3392 = vadd.xlane.f32.xlu0 %v3373
        %v3393 = vpop.xlane.xlu0 %3392
        %3394 = vadd.xlane.f32.xlu0 %v3374
        %v3395 = vpop.xlane.xlu0 %3394
        %3396 = vadd.xlane.f32.xlu0 %v3375
        %v3397 = vpop.xlane.xlu0 %3396
        %3398 = vadd.xlane.f32.xlu0 %v3376
        %v3399 = vpop.xlane.xlu0 %3398
        %3400 = vadd.xlane.f32.xlu0 %v3377
        %v3401 = vpop.xlane.xlu0 %3400
        %3402 = vadd.xlane.f32.xlu0 %v3378
        %v3403 = vpop.xlane.xlu0 %3402
        %3404 = vadd.xlane.f32.xlu0 %v3379
        %v3405 = vpop.xlane.xlu0 %3404
        %3406 = vadd.xlane.f32.xlu0 %v3380
        %v3407 = vpop.xlane.xlu0 %3406
        %3408 = vadd.xlane.f32.xlu0 %v3381
        %v3409 = vpop.xlane.xlu0 %3408
        %3410 = vadd.xlane.f32.xlu0 %v3382
        %v3411 = vpop.xlane.xlu0 %3410
        %3412 = vadd.xlane.f32.xlu0 %v3383
        %v3413 = vpop.xlane.xlu0 %3412
        %3414 = vadd.xlane.f32.xlu0 %v3384
        %v3415 = vpop.xlane.xlu0 %3414
        %3416 = vadd.xlane.f32.xlu0 %v3385
        %v3417 = vpop.xlane.xlu0 %3416
        %3418 = vadd.xlane.f32.xlu0 %v3386
        %v3419 = vpop.xlane.xlu0 %3418
        %3420 = vadd.xlane.f32.xlu0 %v3387
        %v3421 = vpop.xlane.xlu0 %3420
        %v3422 = vmul.f32 %v3391, %v577
        %v3423 = vmul.f32 %v3393, %v577
        %v3424 = vmul.f32 %v3395, %v577
        %v3425 = vmul.f32 %v3397, %v577
        %v3426 = vmul.f32 %v3399, %v577
        %v3427 = vmul.f32 %v3401, %v577
        %v3428 = vmul.f32 %v3403, %v577
        %v3429 = vmul.f32 %v3405, %v577
        %v3430 = vmul.f32 %v3407, %v577
        %v3431 = vmul.f32 %v3409, %v577
        %v3432 = vmul.f32 %v3411, %v577
        %v3433 = vmul.f32 %v3413, %v577
        %v3434 = vmul.f32 %v3415, %v577
        %v3435 = vmul.f32 %v3417, %v577
        %v3436 = vmul.f32 %v3419, %v577
        %v3437 = vmul.f32 %v3421, %v577
        %v3438 = vsub.f32 %v3372, %v3422
        %v3439 = vsub.f32 %v3373, %v3423
        %v3440 = vsub.f32 %v3374, %v3424
        %v3441 = vsub.f32 %v3375, %v3425
        %v3442 = vsub.f32 %v3376, %v3426
        %v3443 = vsub.f32 %v3377, %v3427
        %v3444 = vsub.f32 %v3378, %v3428
        %v3445 = vsub.f32 %v3379, %v3429
        %v3446 = vsub.f32 %v3380, %v3430
        %v3447 = vsub.f32 %v3381, %v3431
        %v3448 = vsub.f32 %v3382, %v3432
        %v3449 = vsub.f32 %v3383, %v3433
        %v3450 = vsub.f32 %v3384, %v3434
        %v3451 = vsub.f32 %v3385, %v3435
        %v3452 = vsub.f32 %v3386, %v3436
        %v3453 = vsub.f32 %v3387, %v3437
        %v3454 = vmul.f32 %v3438, %v3438
        %v3455 = vmul.f32 %v3439, %v3439
        %v3456 = vmul.f32 %v3440, %v3440
        %v3457 = vmul.f32 %v3441, %v3441
        %v3458 = vmul.f32 %v3442, %v3442
        %v3459 = vmul.f32 %v3443, %v3443
        %v3460 = vmul.f32 %v3444, %v3444
        %v3461 = vmul.f32 %v3445, %v3445
        %v3462 = vmul.f32 %v3446, %v3446
        %v3463 = vmul.f32 %v3447, %v3447
        %v3464 = vmul.f32 %v3448, %v3448
        %v3465 = vmul.f32 %v3449, %v3449
        %v3466 = vmul.f32 %v3450, %v3450
        %v3467 = vmul.f32 %v3451, %v3451
        %v3468 = vmul.f32 %v3452, %v3452
        %v3469 = vmul.f32 %v3453, %v3453
        %3470 = vadd.xlane.f32.xlu0 %v3454
        %v3471 = vpop.xlane.xlu0 %3470
        %3472 = vadd.xlane.f32.xlu0 %v3455
        %v3473 = vpop.xlane.xlu0 %3472
        %3474 = vadd.xlane.f32.xlu0 %v3456
        %v3475 = vpop.xlane.xlu0 %3474
        %3476 = vadd.xlane.f32.xlu0 %v3457
        %v3477 = vpop.xlane.xlu0 %3476
        %3478 = vadd.xlane.f32.xlu0 %v3458
        %v3479 = vpop.xlane.xlu0 %3478
        %3480 = vadd.xlane.f32.xlu0 %v3459
        %v3481 = vpop.xlane.xlu0 %3480
        %3482 = vadd.xlane.f32.xlu0 %v3460
        %v3483 = vpop.xlane.xlu0 %3482
        %3484 = vadd.xlane.f32.xlu0 %v3461
        %v3485 = vpop.xlane.xlu0 %3484
        %3486 = vadd.xlane.f32.xlu0 %v3462
        %v3487 = vpop.xlane.xlu0 %3486
        %3488 = vadd.xlane.f32.xlu0 %v3463
        %v3489 = vpop.xlane.xlu0 %3488
        %3490 = vadd.xlane.f32.xlu0 %v3464
        %v3491 = vpop.xlane.xlu0 %3490
        %3492 = vadd.xlane.f32.xlu0 %v3465
        %v3493 = vpop.xlane.xlu0 %3492
        %3494 = vadd.xlane.f32.xlu0 %v3466
        %v3495 = vpop.xlane.xlu0 %3494
        %3496 = vadd.xlane.f32.xlu0 %v3467
        %v3497 = vpop.xlane.xlu0 %3496
        %3498 = vadd.xlane.f32.xlu0 %v3468
        %v3499 = vpop.xlane.xlu0 %3498
        %3500 = vadd.xlane.f32.xlu0 %v3469
        %v3501 = vpop.xlane.xlu0 %3500
        %v3502 = vmul.f32 %v3471, %v577
        %v3503 = vmul.f32 %v3473, %v577
        %v3504 = vmul.f32 %v3475, %v577
        %v3505 = vmul.f32 %v3477, %v577
        %v3506 = vmul.f32 %v3479, %v577
        %v3507 = vmul.f32 %v3481, %v577
        %v3508 = vmul.f32 %v3483, %v577
        %v3509 = vmul.f32 %v3485, %v577
        %v3510 = vmul.f32 %v3487, %v577
        %v3511 = vmul.f32 %v3489, %v577
        %v3512 = vmul.f32 %v3491, %v577
        %v3513 = vmul.f32 %v3493, %v577
        %v3514 = vmul.f32 %v3495, %v577
        %v3515 = vmul.f32 %v3497, %v577
        %v3516 = vmul.f32 %v3499, %v577
        %v3517 = vmul.f32 %v3501, %v577
        %v3518 = vadd.f32 %v3502, 1e-05
        %v3519 = vadd.f32 %v3503, 1e-05
        %v3520 = vadd.f32 %v3504, 1e-05
        %v3521 = vadd.f32 %v3505, 1e-05
        %v3522 = vadd.f32 %v3506, 1e-05
        %v3523 = vadd.f32 %v3507, 1e-05
        %v3524 = vadd.f32 %v3508, 1e-05
        %v3525 = vadd.f32 %v3509, 1e-05
        %v3526 = vadd.f32 %v3510, 1e-05
        %v3527 = vadd.f32 %v3511, 1e-05
        %v3528 = vadd.f32 %v3512, 1e-05
        %v3529 = vadd.f32 %v3513, 1e-05
        %v3530 = vadd.f32 %v3514, 1e-05
        %v3531 = vadd.f32 %v3515, 1e-05
        %v3532 = vadd.f32 %v3516, 1e-05
        %v3533 = vadd.f32 %v3517, 1e-05
        %v3534 = vrsqrt.pop %v3518
        %v3535 = vrsqrt.pop %v3519
        %v3536 = vrsqrt.pop %v3520
        %v3537 = vrsqrt.pop %v3521
        %v3538 = vrsqrt.pop %v3522
        %v3539 = vrsqrt.pop %v3523
        %v3540 = vrsqrt.pop %v3524
        %v3541 = vrsqrt.pop %v3525
        %v3542 = vrsqrt.pop %v3526
        %v3543 = vrsqrt.pop %v3527
        %v3544 = vrsqrt.pop %v3528
        %v3545 = vrsqrt.pop %v3529
        %v3546 = vrsqrt.pop %v3530
        %v3547 = vrsqrt.pop %v3531
        %v3548 = vrsqrt.pop %v3532
        %v3549 = vrsqrt.pop %v3533
        %v3550 = vmul.f32 %v3438, %v3534
        %v3551 = vmul.f32 %v3439, %v3535
        %v3552 = vmul.f32 %v3440, %v3536
        %v3553 = vmul.f32 %v3441, %v3537
        %v3554 = vmul.f32 %v3442, %v3538
        %v3555 = vmul.f32 %v3443, %v3539
        %v3556 = vmul.f32 %v3444, %v3540
        %v3557 = vmul.f32 %v3445, %v3541
        %v3558 = vmul.f32 %v3446, %v3542
        %v3559 = vmul.f32 %v3447, %v3543
        %v3560 = vmul.f32 %v3448, %v3544
        %v3561 = vmul.f32 %v3449, %v3545
        %v3562 = vmul.f32 %v3450, %v3546
        %v3563 = vmul.f32 %v3451, %v3547
        %v3564 = vmul.f32 %v3452, %v3548
        %v3565 = vmul.f32 %v3453, %v3549
        %v3567 = vlaneseq
        %v3568 = vshrl.u32 %v3567, 7
        %v3569 = vsub.s32 0, %v3568
        %v3570 = vrot.slane %v3388, %v3569
        %v3572 = vmul.f32 %v3550, %v3570
        %v3573 = vmul.f32 %v3551, %v3570
        %v3574 = vmul.f32 %v3552, %v3570
        %v3575 = vmul.f32 %v3553, %v3570
        %v3576 = vmul.f32 %v3554, %v3570
        %v3577 = vmul.f32 %v3555, %v3570
        %v3578 = vmul.f32 %v3556, %v3570
        %v3579 = vmul.f32 %v3557, %v3570
        %v3580 = vmul.f32 %v3558, %v3570
        %v3581 = vmul.f32 %v3559, %v3570
        %v3582 = vmul.f32 %v3560, %v3570
        %v3583 = vmul.f32 %v3561, %v3570
        %v3584 = vmul.f32 %v3562, %v3570
        %v3585 = vmul.f32 %v3563, %v3570
        %v3586 = vmul.f32 %v3564, %v3570
        %v3587 = vmul.f32 %v3565, %v3570
        %v3589 = vlaneseq
        %v3590 = vshrl.u32 %v3589, 7
        %v3591 = vsub.s32 0, %v3590
        %v3592 = vrot.slane %v3389, %v3591
        %v3594 = vadd.f32 %v3572, %v3592
        %v3595 = vadd.f32 %v3573, %v3592
        %v3596 = vadd.f32 %v3574, %v3592
        %v3597 = vadd.f32 %v3575, %v3592
        %v3598 = vadd.f32 %v3576, %v3592
        %v3599 = vadd.f32 %v3577, %v3592
        %v3600 = vadd.f32 %v3578, %v3592
        %v3601 = vadd.f32 %v3579, %v3592
        %v3602 = vadd.f32 %v3580, %v3592
        %v3603 = vadd.f32 %v3581, %v3592
        %v3604 = vadd.f32 %v3582, %v3592
        %v3605 = vadd.f32 %v3583, %v3592
        %v3606 = vadd.f32 %v3584, %v3592
        %v3607 = vadd.f32 %v3585, %v3592
        %v3608 = vadd.f32 %v3586, %v3592
        %v3609 = vadd.f32 %v3587, %v3592
        %v3610 = vpack.c.bf16 %v3595, %v3594
        %v3611 = vpack.c.bf16 %v3597, %v3596
        %v3612 = vpack.c.bf16 %v3599, %v3598
        %v3613 = vpack.c.bf16 %v3601, %v3600
        %v3614 = vpack.c.bf16 %v3603, %v3602
        %v3615 = vpack.c.bf16 %v3605, %v3604
        %v3616 = vpack.c.bf16 %v3607, %v3606
        %v3617 = vpack.c.bf16 %v3609, %v3608
        %v3618 = vld [vmem:[%s9] sm:$0xff]
        %v3619 = vld [vmem:[%s9 + $0x8] sm:$0xff]
        %v3620 = vld [vmem:[%s9 + $0x10] sm:$0xff]
        %v3621 = vld [vmem:[%s9 + $0x18] sm:$0xff]
        %v3622 = vld [vmem:[%s9 + $0x20] sm:$0xff]
        %v3623 = vld [vmem:[%s9 + $0x28] sm:$0xff]
        %v3624 = vld [vmem:[%s9 + $0x30] sm:$0xff]
        %v3625 = vld [vmem:[%s9 + $0x38] sm:$0xff]
        %v3626 = vld [vmem:[%s9 + $0x40] sm:$0xff]
        %v3627 = vld [vmem:[%s9 + $0x48] sm:$0xff]
        %v3628 = vld [vmem:[%s9 + $0x50] sm:$0xff]
        %v3629 = vld [vmem:[%s9 + $0x58] sm:$0xff]
        %v3630 = vld [vmem:[%s9 + $0x60] sm:$0xff]
        %v3631 = vld [vmem:[%s9 + $0x68] sm:$0xff]
        %v3632 = vld [vmem:[%s9 + $0x70] sm:$0xff]
        %v3633 = vld [vmem:[%s9 + $0x78] sm:$0xff]
        %v3634 = vld [vmem:[%s9 + $0x80] sm:$0xff]
        %v3635 = vld [vmem:[%s9 + $0x88] sm:$0xff]
        %v3636 = vld [vmem:[%s9 + $0x90] sm:$0xff]
        %v3637 = vld [vmem:[%s9 + $0x98] sm:$0xff]
        %v3638 = vld [vmem:[%s9 + $0xa0] sm:$0xff]
        %v3639 = vld [vmem:[%s9 + $0xa8] sm:$0xff]
        %v3640 = vld [vmem:[%s9 + $0xb0] sm:$0xff]
        %v3641 = vld [vmem:[%s9 + $0xb8] sm:$0xff]
        %v3642 = vld [vmem:[%s9 + $0xc0] sm:$0xff]
        %v3643 = vld [vmem:[%s9 + $0xc8] sm:$0xff]
        %v3644 = vld [vmem:[%s9 + $0xd0] sm:$0xff]
        %v3645 = vld [vmem:[%s9 + $0xd8] sm:$0xff]
        %v3646 = vld [vmem:[%s9 + $0xe0] sm:$0xff]
        %v3647 = vld [vmem:[%s9 + $0xe8] sm:$0xff]
        %v3648 = vld [vmem:[%s9 + $0xf0] sm:$0xff]
        %v3649 = vld [vmem:[%s9 + $0xf8] sm:$0xff]
        %v3650 = vld [vmem:[%s10] sm:$0xf]
        %v3652 = vlaneseq
        %v3653 = vshrl.u32 %v3652, 7
        %v3654 = vsub.s32 0, %v3653
        %v3655 = vrot.slane %v3650, %v3654
        %v3656 = vlaneseq
        %v3657 = vshrl.u32 %v3656, 7
        %v3658 = vsub.s32 1, %v3657
        %v3659 = vrot.slane %v3650, %v3658
        %v3660 = vlaneseq
        %v3661 = vshrl.u32 %v3660, 7
        %v3662 = vsub.s32 2, %v3661
        %v3663 = vrot.slane %v3650, %v3662
        %v3664 = vlaneseq
        %v3665 = vshrl.u32 %v3664, 7
        %v3666 = vsub.s32 3, %v3665
        %v3667 = vrot.slane %v3650, %v3666
        %v3704 = vunpack.c.l.b16 %v3618
        %v3705 = vunpack.c.h.b16 %v3618
        %v3706 = vunpack.c.l.b16 %v3619
        %v3707 = vunpack.c.h.b16 %v3619
        %v3708 = vunpack.c.l.b16 %v3620
        %v3709 = vunpack.c.h.b16 %v3620
        %v3710 = vunpack.c.l.b16 %v3621
        %v3711 = vunpack.c.h.b16 %v3621
        %v3712 = vunpack.c.l.b16 %v3622
        %v3713 = vunpack.c.h.b16 %v3622
        %v3714 = vunpack.c.l.b16 %v3623
        %v3715 = vunpack.c.h.b16 %v3623
        %v3716 = vunpack.c.l.b16 %v3624
        %v3717 = vunpack.c.h.b16 %v3624
        %v3718 = vunpack.c.l.b16 %v3625
        %v3719 = vunpack.c.h.b16 %v3625
        %v3720 = vunpack.c.l.b16 %v3626
        %v3721 = vunpack.c.h.b16 %v3626
        %v3722 = vunpack.c.l.b16 %v3627
        %v3723 = vunpack.c.h.b16 %v3627
        %v3724 = vunpack.c.l.b16 %v3628
        %v3725 = vunpack.c.h.b16 %v3628
        %v3726 = vunpack.c.l.b16 %v3629
        %v3727 = vunpack.c.h.b16 %v3629
        %v3728 = vunpack.c.l.b16 %v3630
        %v3729 = vunpack.c.h.b16 %v3630
        %v3730 = vunpack.c.l.b16 %v3631
        %v3731 = vunpack.c.h.b16 %v3631
        %v3732 = vunpack.c.l.b16 %v3632
        %v3733 = vunpack.c.h.b16 %v3632
        %v3734 = vunpack.c.l.b16 %v3633
        %v3735 = vunpack.c.h.b16 %v3633
        %v3736 = vunpack.c.l.b16 %v3634
        %v3737 = vunpack.c.h.b16 %v3634
        %v3738 = vunpack.c.l.b16 %v3635
        %v3739 = vunpack.c.h.b16 %v3635
        %v3740 = vunpack.c.l.b16 %v3636
        %v3741 = vunpack.c.h.b16 %v3636
        %v3742 = vunpack.c.l.b16 %v3637
        %v3743 = vunpack.c.h.b16 %v3637
        %v3744 = vunpack.c.l.b16 %v3638
        %v3745 = vunpack.c.h.b16 %v3638
        %v3746 = vunpack.c.l.b16 %v3639
        %v3747 = vunpack.c.h.b16 %v3639
        %v3748 = vunpack.c.l.b16 %v3640
        %v3749 = vunpack.c.h.b16 %v3640
        %v3750 = vunpack.c.l.b16 %v3641
        %v3751 = vunpack.c.h.b16 %v3641
        %v3752 = vunpack.c.l.b16 %v3642
        %v3753 = vunpack.c.h.b16 %v3642
        %v3754 = vunpack.c.l.b16 %v3643
        %v3755 = vunpack.c.h.b16 %v3643
        %v3756 = vunpack.c.l.b16 %v3644
        %v3757 = vunpack.c.h.b16 %v3644
        %v3758 = vunpack.c.l.b16 %v3645
        %v3759 = vunpack.c.h.b16 %v3645
        %v3760 = vunpack.c.l.b16 %v3646
        %v3761 = vunpack.c.h.b16 %v3646
        %v3762 = vunpack.c.l.b16 %v3647
        %v3763 = vunpack.c.h.b16 %v3647
        %v3764 = vunpack.c.l.b16 %v3648
        %v3765 = vunpack.c.h.b16 %v3648
        %v3766 = vunpack.c.l.b16 %v3649
        %v3767 = vunpack.c.h.b16 %v3649
        %v3768 = vpack.c.b16 %v3708, %v3704
        %v3769 = vpack.c.b16 %v3709, %v3705
        %v3770 = vpack.c.b16 %v3710, %v3706
        %v3771 = vpack.c.b16 %v3711, %v3707
        %v3772 = vpack.c.b16 %v3716, %v3712
        %v3773 = vpack.c.b16 %v3717, %v3713
        %v3774 = vpack.c.b16 %v3718, %v3714
        %v3775 = vpack.c.b16 %v3719, %v3715
        %v3776 = vpack.c.b16 %v3724, %v3720
        %v3777 = vpack.c.b16 %v3725, %v3721
        %v3778 = vpack.c.b16 %v3726, %v3722
        %v3779 = vpack.c.b16 %v3727, %v3723
        %v3780 = vpack.c.b16 %v3732, %v3728
        %v3781 = vpack.c.b16 %v3733, %v3729
        %v3782 = vpack.c.b16 %v3734, %v3730
        %v3783 = vpack.c.b16 %v3735, %v3731
        %v3784 = vpack.c.b16 %v3740, %v3736
        %v3785 = vpack.c.b16 %v3741, %v3737
        %v3786 = vpack.c.b16 %v3742, %v3738
        %v3787 = vpack.c.b16 %v3743, %v3739
        %v3788 = vpack.c.b16 %v3748, %v3744
        %v3789 = vpack.c.b16 %v3749, %v3745
        %v3790 = vpack.c.b16 %v3750, %v3746
        %v3791 = vpack.c.b16 %v3751, %v3747
        %v3792 = vpack.c.b16 %v3756, %v3752
        %v3793 = vpack.c.b16 %v3757, %v3753
        %v3794 = vpack.c.b16 %v3758, %v3754
        %v3795 = vpack.c.b16 %v3759, %v3755
        %v3796 = vpack.c.b16 %v3764, %v3760
        %v3797 = vpack.c.b16 %v3765, %v3761
        %v3798 = vpack.c.b16 %v3766, %v3762
        %v3799 = vpack.c.b16 %v3767, %v3763
        %3832 = vmatprep.subr.bf16.mxu0 %v3797
        %3833 = vmatpush1.bf16.msra.mxu0 %v3796
        %3834 = vmatprep.subr.bf16.mxu0 %v3793
        %3835 = vmatpush1.bf16.msra.mxu0 %v3792
        %3836 = vmatprep.subr.bf16.mxu0 %v3789
        %3837 = vmatpush1.bf16.msra.mxu0 %v3788
        %3838 = vmatprep.subr.bf16.mxu0 %v3785
        %3839 = vmatpush1.bf16.msra.mxu0 %v3784
        %3840 = vmatprep.subr.bf16.mxu0 %v3781
        %3841 = vmatpush1.bf16.msra.mxu0 %v3780
        %3842 = vmatprep.subr.bf16.mxu0 %v3777
        %3843 = vmatpush1.bf16.msra.mxu0 %v3776
        %3844 = vmatprep.subr.bf16.mxu0 %v3773
        %3845 = vmatpush1.bf16.msra.mxu0 %v3772
        %3846 = vmatprep.subr.bf16.mxu0 %v3769
        %3847 = vmatpush1.bf16.msra.mxu0 %v3768
        %3848 = vmatprep.subr.bf16.mxu0 0
        %3849 = vmatpush2.bf16.msra.mxu0 0
        %3850 = vmatprep.subr.bf16.mxu0 0
        %3851 = vmatpush2.bf16.msra.mxu0 0
        %3852 = vmatprep.subr.bf16.mxu0 0
        %3853 = vmatpush2.bf16.msra.mxu0 0
        %3854 = vmatprep.subr.bf16.mxu0 0
        %3855 = vmatpush2.bf16.msra.mxu0 0
        %3856 = vmatprep.subr.bf16.mxu0 0
        %3857 = vmatpush2.bf16.msra.mxu0 0
        %3858 = vmatprep.subr.bf16.mxu0 0
        %3859 = vmatpush2.bf16.msra.mxu0 0
        %3860 = vmatprep.subr.bf16.mxu0 0
        %3861 = vmatpush2.bf16.msra.mxu0 0
        %3862 = vmatprep.subr.bf16.mxu0 0
        %3863 = vmatpush2.bf16.msra.mxu0 0
        %3864 = vmatprep.mubr.bf16.mxu0 0
        %3865 = vmatmul.mubr.bf16.gmra.mxu0 %v3610
        %v3866 = vpop.f32.mrf.mxu0
        %v3867 = vadd.f32 %v3655, %v3866
        %v3868 = vpop.f32.mrf.mxu0
        %v3869 = vadd.f32 %v3659, %v3868
        %v3870 = vpop.f32.mrf.mxu0
        %v3871 = vadd.f32 %v3655, %v3870
        %v3872 = vpop.f32.mrf.mxu0
        %v3873 = vadd.f32 %v3659, %v3872
        %3874 = vmatprep.mubr.bf16.mxu0 0
        %3875 = vmatmul.mubr.bf16.gmra.mxu0 %v3611
        %v3876 = vpop.f32.mrf.mxu0
        %v3877 = vadd.f32 %v3655, %v3876
        %v3878 = vpop.f32.mrf.mxu0
        %v3879 = vadd.f32 %v3659, %v3878
        %v3880 = vpop.f32.mrf.mxu0
        %v3881 = vadd.f32 %v3655, %v3880
        %v3882 = vpop.f32.mrf.mxu0
        %v3883 = vadd.f32 %v3659, %v3882
        %3884 = vmatprep.mubr.bf16.mxu0 0
        %3885 = vmatmul.mubr.bf16.gmra.mxu0 %v3612
        %v3886 = vpop.f32.mrf.mxu0
        %v3887 = vadd.f32 %v3655, %v3886
        %v3888 = vpop.f32.mrf.mxu0
        %v3889 = vadd.f32 %v3659, %v3888
        %v3890 = vpop.f32.mrf.mxu0
        %v3891 = vadd.f32 %v3655, %v3890
        %v3892 = vpop.f32.mrf.mxu0
        %v3893 = vadd.f32 %v3659, %v3892
        %3894 = vmatprep.mubr.bf16.mxu0 0
        %3895 = vmatmul.mubr.bf16.gmra.mxu0 %v3613
        %v3896 = vpop.f32.mrf.mxu0
        %v3897 = vadd.f32 %v3655, %v3896
        %v3898 = vpop.f32.mrf.mxu0
        %v3899 = vadd.f32 %v3659, %v3898
        %v3900 = vpop.f32.mrf.mxu0
        %v3901 = vadd.f32 %v3655, %v3900
        %v3902 = vpop.f32.mrf.mxu0
        %v3903 = vadd.f32 %v3659, %v3902
        %3904 = vmatprep.mubr.bf16.mxu0 0
        %3905 = vmatmul.mubr.bf16.gmra.mxu0 %v3614
        %v3906 = vpop.f32.mrf.mxu0
        %v3907 = vadd.f32 %v3655, %v3906
        %v3908 = vpop.f32.mrf.mxu0
        %v3909 = vadd.f32 %v3659, %v3908
        %v3910 = vpop.f32.mrf.mxu0
        %v3911 = vadd.f32 %v3655, %v3910
        %v3912 = vpop.f32.mrf.mxu0
        %v3913 = vadd.f32 %v3659, %v3912
        %3914 = vmatprep.mubr.bf16.mxu0 0
        %3915 = vmatmul.mubr.bf16.gmra.mxu0 %v3615
        %v3916 = vpop.f32.mrf.mxu0
        %v3917 = vadd.f32 %v3655, %v3916
        %v3918 = vpop.f32.mrf.mxu0
        %v3919 = vadd.f32 %v3659, %v3918
        %v3920 = vpop.f32.mrf.mxu0
        %v3921 = vadd.f32 %v3655, %v3920
        %v3922 = vpop.f32.mrf.mxu0
        %v3923 = vadd.f32 %v3659, %v3922
        %3924 = vmatprep.mubr.bf16.mxu0 0
        %3925 = vmatmul.mubr.bf16.gmra.mxu0 %v3616
        %v3926 = vpop.f32.mrf.mxu0
        %v3927 = vadd.f32 %v3655, %v3926
        %v3928 = vpop.f32.mrf.mxu0
        %v3929 = vadd.f32 %v3659, %v3928
        %v3930 = vpop.f32.mrf.mxu0
        %v3931 = vadd.f32 %v3655, %v3930
        %v3932 = vpop.f32.mrf.mxu0
        %v3933 = vadd.f32 %v3659, %v3932
        %3934 = vmatprep.mubr.bf16.mxu0 0
        %3935 = vmatmul.mubr.bf16.gmra.mxu0 %v3617
        %v3936 = vpop.f32.mrf.mxu0
        %v3937 = vadd.f32 %v3655, %v3936
        %v3938 = vpop.f32.mrf.mxu0
        %v3939 = vadd.f32 %v3659, %v3938
        %v3940 = vpop.f32.mrf.mxu0
        %v3941 = vadd.f32 %v3655, %v3940
        %v3942 = vpop.f32.mrf.mxu0
        %v3943 = vadd.f32 %v3659, %v3942
        %3944 = vdwg.mxu0
        %3945 = vmatprep.subr.bf16.mxu0 %v3799
        %3946 = vmatpush1.bf16.msra.mxu0 %v3798
        %3947 = vmatprep.subr.bf16.mxu0 %v3795
        %3948 = vmatpush1.bf16.msra.mxu0 %v3794
        %3949 = vmatprep.subr.bf16.mxu0 %v3791
        %3950 = vmatpush1.bf16.msra.mxu0 %v3790
        %3951 = vmatprep.subr.bf16.mxu0 %v3787
        %3952 = vmatpush1.bf16.msra.mxu0 %v3786
        %3953 = vmatprep.subr.bf16.mxu0 %v3783
        %3954 = vmatpush1.bf16.msra.mxu0 %v3782
        %3955 = vmatprep.subr.bf16.mxu0 %v3779
        %3956 = vmatpush1.bf16.msra.mxu0 %v3778
        %3957 = vmatprep.subr.bf16.mxu0 %v3775
        %3958 = vmatpush1.bf16.msra.mxu0 %v3774
        %3959 = vmatprep.subr.bf16.mxu0 %v3771
        %3960 = vmatpush1.bf16.msra.mxu0 %v3770
        %3961 = vmatprep.subr.bf16.mxu0 0
        %3962 = vmatpush2.bf16.msra.mxu0 0
        %3963 = vmatprep.subr.bf16.mxu0 0
        %3964 = vmatpush2.bf16.msra.mxu0 0
        %3965 = vmatprep.subr.bf16.mxu0 0
        %3966 = vmatpush2.bf16.msra.mxu0 0
        %3967 = vmatprep.subr.bf16.mxu0 0
        %3968 = vmatpush2.bf16.msra.mxu0 0
        %3969 = vmatprep.subr.bf16.mxu0 0
        %3970 = vmatpush2.bf16.msra.mxu0 0
        %3971 = vmatprep.subr.bf16.mxu0 0
        %3972 = vmatpush2.bf16.msra.mxu0 0
        %3973 = vmatprep.subr.bf16.mxu0 0
        %3974 = vmatpush2.bf16.msra.mxu0 0
        %3975 = vmatprep.subr.bf16.mxu0 0
        %3976 = vmatpush2.bf16.msra.mxu0 0
        %3977 = vmatprep.mubr.bf16.mxu0 0
        %3978 = vmatmul.mubr.bf16.gmra.mxu0 %v3610
        %v3979 = vpop.f32.mrf.mxu0
        %v3980 = vadd.f32 %v3663, %v3979
        %v3981 = vpop.f32.mrf.mxu0
        %v3982 = vadd.f32 %v3667, %v3981
        %v3983 = vpop.f32.mrf.mxu0
        %v3984 = vadd.f32 %v3663, %v3983
        %v3985 = vpop.f32.mrf.mxu0
        %v3986 = vadd.f32 %v3667, %v3985
        %3987 = vmatprep.mubr.bf16.mxu0 0
        %3988 = vmatmul.mubr.bf16.gmra.mxu0 %v3611
        %v3989 = vpop.f32.mrf.mxu0
        %v3990 = vadd.f32 %v3663, %v3989
        %v3991 = vpop.f32.mrf.mxu0
        %v3992 = vadd.f32 %v3667, %v3991
        %v3993 = vpop.f32.mrf.mxu0
        %v3994 = vadd.f32 %v3663, %v3993
        %v3995 = vpop.f32.mrf.mxu0
        %v3996 = vadd.f32 %v3667, %v3995
        %3997 = vmatprep.mubr.bf16.mxu0 0
        %3998 = vmatmul.mubr.bf16.gmra.mxu0 %v3612
        %v3999 = vpop.f32.mrf.mxu0
        %v4000 = vadd.f32 %v3663, %v3999
        %v4001 = vpop.f32.mrf.mxu0
        %v4002 = vadd.f32 %v3667, %v4001
        %v4003 = vpop.f32.mrf.mxu0
        %v4004 = vadd.f32 %v3663, %v4003
        %v4005 = vpop.f32.mrf.mxu0
        %v4006 = vadd.f32 %v3667, %v4005
        %4007 = vmatprep.mubr.bf16.mxu0 0
        %4008 = vmatmul.mubr.bf16.gmra.mxu0 %v3613
        %v4009 = vpop.f32.mrf.mxu0
        %v4010 = vadd.f32 %v3663, %v4009
        %v4011 = vpop.f32.mrf.mxu0
        %v4012 = vadd.f32 %v3667, %v4011
        %v4013 = vpop.f32.mrf.mxu0
        %v4014 = vadd.f32 %v3663, %v4013
        %v4015 = vpop.f32.mrf.mxu0
        %v4016 = vadd.f32 %v3667, %v4015
        %4017 = vmatprep.mubr.bf16.mxu0 0
        %4018 = vmatmul.mubr.bf16.gmra.mxu0 %v3614
        %v4019 = vpop.f32.mrf.mxu0
        %v4020 = vadd.f32 %v3663, %v4019
        %v4021 = vpop.f32.mrf.mxu0
        %v4022 = vadd.f32 %v3667, %v4021
        %v4023 = vpop.f32.mrf.mxu0
        %v4024 = vadd.f32 %v3663, %v4023
        %v4025 = vpop.f32.mrf.mxu0
        %v4026 = vadd.f32 %v3667, %v4025
        %4027 = vmatprep.mubr.bf16.mxu0 0
        %4028 = vmatmul.mubr.bf16.gmra.mxu0 %v3615
        %v4029 = vpop.f32.mrf.mxu0
        %v4030 = vadd.f32 %v3663, %v4029
        %v4031 = vpop.f32.mrf.mxu0
        %v4032 = vadd.f32 %v3667, %v4031
        %v4033 = vpop.f32.mrf.mxu0
        %v4034 = vadd.f32 %v3663, %v4033
        %v4035 = vpop.f32.mrf.mxu0
        %v4036 = vadd.f32 %v3667, %v4035
        %4037 = vmatprep.mubr.bf16.mxu0 0
        %4038 = vmatmul.mubr.bf16.gmra.mxu0 %v3616
        %v4039 = vpop.f32.mrf.mxu0
        %v4040 = vadd.f32 %v3663, %v4039
        %v4041 = vpop.f32.mrf.mxu0
        %v4042 = vadd.f32 %v3667, %v4041
        %v4043 = vpop.f32.mrf.mxu0
        %v4044 = vadd.f32 %v3663, %v4043
        %v4045 = vpop.f32.mrf.mxu0
        %v4046 = vadd.f32 %v3667, %v4045
        %4047 = vmatprep.mubr.bf16.mxu0 0
        %4048 = vmatmul.mubr.bf16.gmra.mxu0 %v3617
        %v4049 = vpop.f32.mrf.mxu0
        %v4050 = vadd.f32 %v3663, %v4049
        %v4051 = vpop.f32.mrf.mxu0
        %v4052 = vadd.f32 %v3667, %v4051
        %v4053 = vpop.f32.mrf.mxu0
        %v4054 = vadd.f32 %v3663, %v4053
        %v4055 = vpop.f32.mrf.mxu0
        %v4056 = vadd.f32 %v3667, %v4055
        %4057 = vdwg.mxu0
        %v4058 = vmul.f32 %v3867, 0.5
        %v4059 = vmul.f32 %v3869, 0.5
        %v4060 = vmul.f32 %v3980, 0.5
        %v4061 = vmul.f32 %v3982, 0.5
        %v4062 = vmul.f32 %v3871, 0.5
        %v4063 = vmul.f32 %v3873, 0.5
        %v4064 = vmul.f32 %v3984, 0.5
        %v4065 = vmul.f32 %v3986, 0.5
        %v4066 = vmul.f32 %v3877, 0.5
        %v4067 = vmul.f32 %v3879, 0.5
        %v4068 = vmul.f32 %v3990, 0.5
        %v4069 = vmul.f32 %v3992, 0.5
        %v4070 = vmul.f32 %v3881, 0.5
        %v4071 = vmul.f32 %v3883, 0.5
        %v4072 = vmul.f32 %v3994, 0.5
        %v4073 = vmul.f32 %v3996, 0.5
        %v4074 = vmul.f32 %v3887, 0.5
        %v4075 = vmul.f32 %v3889, 0.5
        %v4076 = vmul.f32 %v4000, 0.5
        %v4077 = vmul.f32 %v4002, 0.5
        %v4078 = vmul.f32 %v3891, 0.5
        %v4079 = vmul.f32 %v3893, 0.5
        %v4080 = vmul.f32 %v4004, 0.5
        %v4081 = vmul.f32 %v4006, 0.5
        %v4082 = vmul.f32 %v3897, 0.5
        %v4083 = vmul.f32 %v3899, 0.5
        %v4084 = vmul.f32 %v4010, 0.5
        %v4085 = vmul.f32 %v4012, 0.5
        %v4086 = vmul.f32 %v3901, 0.5
        %v4087 = vmul.f32 %v3903, 0.5
        %v4088 = vmul.f32 %v4014, 0.5
        %v4089 = vmul.f32 %v4016, 0.5
        %v4090 = vmul.f32 %v3907, 0.5
        %v4091 = vmul.f32 %v3909, 0.5
        %v4092 = vmul.f32 %v4020, 0.5
        %v4093 = vmul.f32 %v4022, 0.5
        %v4094 = vmul.f32 %v3911, 0.5
        %v4095 = vmul.f32 %v3913, 0.5
        %v4096 = vmul.f32 %v4024, 0.5
        %v4097 = vmul.f32 %v4026, 0.5
        %v4098 = vmul.f32 %v3917, 0.5
        %v4099 = vmul.f32 %v3919, 0.5
        %v4100 = vmul.f32 %v4030, 0.5
        %v4101 = vmul.f32 %v4032, 0.5
        %v4102 = vmul.f32 %v3921, 0.5
        %v4103 = vmul.f32 %v3923, 0.5
        %v4104 = vmul.f32 %v4034, 0.5
        %v4105 = vmul.f32 %v4036, 0.5
        %v4106 = vmul.f32 %v3927, 0.5
        %v4107 = vmul.f32 %v3929, 0.5
        %v4108 = vmul.f32 %v4040, 0.5
        %v4109 = vmul.f32 %v4042, 0.5
        %v4110 = vmul.f32 %v3931, 0.5
        %v4111 = vmul.f32 %v3933, 0.5
        %v4112 = vmul.f32 %v4044, 0.5
        %v4113 = vmul.f32 %v4046, 0.5
        %v4114 = vmul.f32 %v3937, 0.5
        %v4115 = vmul.f32 %v3939, 0.5
        %v4116 = vmul.f32 %v4050, 0.5
        %v4117 = vmul.f32 %v4052, 0.5
        %v4118 = vmul.f32 %v3941, 0.5
        %v4119 = vmul.f32 %v3943, 0.5
        %v4120 = vmul.f32 %v4054, 0.5
        %v4121 = vmul.f32 %v4056, 0.5
        %v4122 = vmul.f32 %v3867, 0.70710677
        %v4123 = vmul.f32 %v3869, 0.70710677
        %v4124 = vmul.f32 %v3980, 0.70710677
        %v4125 = vmul.f32 %v3982, 0.70710677
        %v4126 = vmul.f32 %v3871, 0.70710677
        %v4127 = vmul.f32 %v3873, 0.70710677
        %v4128 = vmul.f32 %v3984, 0.70710677
        %v4129 = vmul.f32 %v3986, 0.70710677
        %v4130 = vmul.f32 %v3877, 0.70710677
        %v4131 = vmul.f32 %v3879, 0.70710677
        %v4132 = vmul.f32 %v3990, 0.70710677
        %v4133 = vmul.f32 %v3992, 0.70710677
        %v4134 = vmul.f32 %v3881, 0.70710677
        %v4135 = vmul.f32 %v3883, 0.70710677
        %v4136 = vmul.f32 %v3994, 0.70710677
        %v4137 = vmul.f32 %v3996, 0.70710677
        %v4138 = vmul.f32 %v3887, 0.70710677
        %v4139 = vmul.f32 %v3889, 0.70710677
        %v4140 = vmul.f32 %v4000, 0.70710677
        %v4141 = vmul.f32 %v4002, 0.70710677
        %v4142 = vmul.f32 %v3891, 0.70710677
        %v4143 = vmul.f32 %v3893, 0.70710677
        %v4144 = vmul.f32 %v4004, 0.70710677
        %v4145 = vmul.f32 %v4006, 0.70710677
        %v4146 = vmul.f32 %v3897, 0.70710677
        %v4147 = vmul.f32 %v3899, 0.70710677
        %v4148 = vmul.f32 %v4010, 0.70710677
        %v4149 = vmul.f32 %v4012, 0.70710677
        %v4150 = vmul.f32 %v3901, 0.70710677
        %v4151 = vmul.f32 %v3903, 0.70710677
        %v4152 = vmul.f32 %v4014, 0.70710677
        %v4153 = vmul.f32 %v4016, 0.70710677
        %v4154 = vmul.f32 %v3907, 0.70710677
        %v4155 = vmul.f32 %v3909, 0.70710677
        %v4156 = vmul.f32 %v4020, 0.70710677
        %v4157 = vmul.f32 %v4022, 0.70710677
        %v4158 = vmul.f32 %v3911, 0.70710677
        %v4159 = vmul.f32 %v3913, 0.70710677
        %v4160 = vmul.f32 %v4024, 0.70710677
        %v4161 = vmul.f32 %v4026, 0.70710677
        %v4162 = vmul.f32 %v3917, 0.70710677
        %v4163 = vmul.f32 %v3919, 0.70710677
        %v4164 = vmul.f32 %v4030, 0.70710677
        %v4165 = vmul.f32 %v4032, 0.70710677
        %v4166 = vmul.f32 %v3921, 0.70710677
        %v4167 = vmul.f32 %v3923, 0.70710677
        %v4168 = vmul.f32 %v4034, 0.70710677
        %v4169 = vmul.f32 %v4036, 0.70710677
        %v4170 = vmul.f32 %v3927, 0.70710677
        %v4171 = vmul.f32 %v3929, 0.70710677
        %v4172 = vmul.f32 %v4040, 0.70710677
        %v4173 = vmul.f32 %v4042, 0.70710677
        %v4174 = vmul.f32 %v3931, 0.70710677
        %v4175 = vmul.f32 %v3933, 0.70710677
        %v4176 = vmul.f32 %v4044, 0.70710677
        %v4177 = vmul.f32 %v4046, 0.70710677
        %v4178 = vmul.f32 %v3937, 0.70710677
        %v4179 = vmul.f32 %v3939, 0.70710677
        %v4180 = vmul.f32 %v4050, 0.70710677
        %v4181 = vmul.f32 %v4052, 0.70710677
        %v4182 = vmul.f32 %v3941, 0.70710677
        %v4183 = vmul.f32 %v3943, 0.70710677
        %v4184 = vmul.f32 %v4054, 0.70710677
        %v4185 = vmul.f32 %v4056, 0.70710677
        %v4186 = verf.f32.pop %v4122
        %v4187 = verf.f32.pop %v4123
        %v4188 = verf.f32.pop %v4124
        %v4189 = verf.f32.pop %v4125
        %v4190 = verf.f32.pop %v4126
        %v4191 = verf.f32.pop %v4127
        %v4192 = verf.f32.pop %v4128
        %v4193 = verf.f32.pop %v4129
        %v4194 = verf.f32.pop %v4130
        %v4195 = verf.f32.pop %v4131
        %v4196 = verf.f32.pop %v4132
        %v4197 = verf.f32.pop %v4133
        %v4198 = verf.f32.pop %v4134
        %v4199 = verf.f32.pop %v4135
        %v4200 = verf.f32.pop %v4136
        %v4201 = verf.f32.pop %v4137
        %v4202 = verf.f32.pop %v4138
        %v4203 = verf.f32.pop %v4139
        %v4204 = verf.f32.pop %v4140
        %v4205 = verf.f32.pop %v4141
        %v4206 = verf.f32.pop %v4142
        %v4207 = verf.f32.pop %v4143
        %v4208 = verf.f32.pop %v4144
        %v4209 = verf.f32.pop %v4145
        %v4210 = verf.f32.pop %v4146
        %v4211 = verf.f32.pop %v4147
        %v4212 = verf.f32.pop %v4148
        %v4213 = verf.f32.pop %v4149
        %v4214 = verf.f32.pop %v4150
        %v4215 = verf.f32.pop %v4151
        %v4216 = verf.f32.pop %v4152
        %v4217 = verf.f32.pop %v4153
        %v4218 = verf.f32.pop %v4154
        %v4219 = verf.f32.pop %v4155
        %v4220 = verf.f32.pop %v4156
        %v4221 = verf.f32.pop %v4157
        %v4222 = verf.f32.pop %v4158
        %v4223 = verf.f32.pop %v4159
        %v4224 = verf.f32.pop %v4160
        %v4225 = verf.f32.pop %v4161
        %v4226 = verf.f32.pop %v4162
        %v4227 = verf.f32.pop %v4163
        %v4228 = verf.f32.pop %v4164
        %v4229 = verf.f32.pop %v4165
        %v4230 = verf.f32.pop %v4166
        %v4231 = verf.f32.pop %v4167
        %v4232 = verf.f32.pop %v4168
        %v4233 = verf.f32.pop %v4169
        %v4234 = verf.f32.pop %v4170
        %v4235 = verf.f32.pop %v4171
        %v4236 = verf.f32.pop %v4172
        %v4237 = verf.f32.pop %v4173
        %v4238 = verf.f32.pop %v4174
        %v4239 = verf.f32.pop %v4175
        %v4240 = verf.f32.pop %v4176
        %v4241 = verf.f32.pop %v4177
        %v4242 = verf.f32.pop %v4178
        %v4243 = verf.f32.pop %v4179
        %v4244 = verf.f32.pop %v4180
        %v4245 = verf.f32.pop %v4181
        %v4246 = verf.f32.pop %v4182
        %v4247 = verf.f32.pop %v4183
        %v4248 = verf.f32.pop %v4184
        %v4249 = verf.f32.pop %v4185
        %v4250 = vadd.f32 %v4186, 1.0
        %v4251 = vadd.f32 %v4187, 1.0
        %v4252 = vadd.f32 %v4188, 1.0
        %v4253 = vadd.f32 %v4189, 1.0
        %v4254 = vadd.f32 %v4190, 1.0
        %v4255 = vadd.f32 %v4191, 1.0
        %v4256 = vadd.f32 %v4192, 1.0
        %v4257 = vadd.f32 %v4193, 1.0
        %v4258 = vadd.f32 %v4194, 1.0
        %v4259 = vadd.f32 %v4195, 1.0
        %v4260 = vadd.f32 %v4196, 1.0
        %v4261 = vadd.f32 %v4197, 1.0
        %v4262 = vadd.f32 %v4198, 1.0
        %v4263 = vadd.f32 %v4199, 1.0
        %v4264 = vadd.f32 %v4200, 1.0
        %v4265 = vadd.f32 %v4201, 1.0
        %v4266 = vadd.f32 %v4202, 1.0
        %v4267 = vadd.f32 %v4203, 1.0
        %v4268 = vadd.f32 %v4204, 1.0
        %v4269 = vadd.f32 %v4205, 1.0
        %v4270 = vadd.f32 %v4206, 1.0
        %v4271 = vadd.f32 %v4207, 1.0
        %v4272 = vadd.f32 %v4208, 1.0
        %v4273 = vadd.f32 %v4209, 1.0
        %v4274 = vadd.f32 %v4210, 1.0
        %v4275 = vadd.f32 %v4211, 1.0
        %v4276 = vadd.f32 %v4212, 1.0
        %v4277 = vadd.f32 %v4213, 1.0
        %v4278 = vadd.f32 %v4214, 1.0
        %v4279 = vadd.f32 %v4215, 1.0
        %v4280 = vadd.f32 %v4216, 1.0
        %v4281 = vadd.f32 %v4217, 1.0
        %v4282 = vadd.f32 %v4218, 1.0
        %v4283 = vadd.f32 %v4219, 1.0
        %v4284 = vadd.f32 %v4220, 1.0
        %v4285 = vadd.f32 %v4221, 1.0
        %v4286 = vadd.f32 %v4222, 1.0
        %v4287 = vadd.f32 %v4223, 1.0
        %v4288 = vadd.f32 %v4224, 1.0
        %v4289 = vadd.f32 %v4225, 1.0
        %v4290 = vadd.f32 %v4226, 1.0
        %v4291 = vadd.f32 %v4227, 1.0
        %v4292 = vadd.f32 %v4228, 1.0
        %v4293 = vadd.f32 %v4229, 1.0
        %v4294 = vadd.f32 %v4230, 1.0
        %v4295 = vadd.f32 %v4231, 1.0
        %v4296 = vadd.f32 %v4232, 1.0
        %v4297 = vadd.f32 %v4233, 1.0
        %v4298 = vadd.f32 %v4234, 1.0
        %v4299 = vadd.f32 %v4235, 1.0
        %v4300 = vadd.f32 %v4236, 1.0
        %v4301 = vadd.f32 %v4237, 1.0
        %v4302 = vadd.f32 %v4238, 1.0
        %v4303 = vadd.f32 %v4239, 1.0
        %v4304 = vadd.f32 %v4240, 1.0
        %v4305 = vadd.f32 %v4241, 1.0
        %v4306 = vadd.f32 %v4242, 1.0
        %v4307 = vadd.f32 %v4243, 1.0
        %v4308 = vadd.f32 %v4244, 1.0
        %v4309 = vadd.f32 %v4245, 1.0
        %v4310 = vadd.f32 %v4246, 1.0
        %v4311 = vadd.f32 %v4247, 1.0
        %v4312 = vadd.f32 %v4248, 1.0
        %v4313 = vadd.f32 %v4249, 1.0
        %v4314 = vmul.f32 %v4058, %v4250
        %v4315 = vmul.f32 %v4059, %v4251
        %v4316 = vmul.f32 %v4060, %v4252
        %v4317 = vmul.f32 %v4061, %v4253
        %v4318 = vmul.f32 %v4062, %v4254
        %v4319 = vmul.f32 %v4063, %v4255
        %v4320 = vmul.f32 %v4064, %v4256
        %v4321 = vmul.f32 %v4065, %v4257
        %v4322 = vmul.f32 %v4066, %v4258
        %v4323 = vmul.f32 %v4067, %v4259
        %v4324 = vmul.f32 %v4068, %v4260
        %v4325 = vmul.f32 %v4069, %v4261
        %v4326 = vmul.f32 %v4070, %v4262
        %v4327 = vmul.f32 %v4071, %v4263
        %v4328 = vmul.f32 %v4072, %v4264
        %v4329 = vmul.f32 %v4073, %v4265
        %v4330 = vmul.f32 %v4074, %v4266
        %v4331 = vmul.f32 %v4075, %v4267
        %v4332 = vmul.f32 %v4076, %v4268
        %v4333 = vmul.f32 %v4077, %v4269
        %v4334 = vmul.f32 %v4078, %v4270
        %v4335 = vmul.f32 %v4079, %v4271
        %v4336 = vmul.f32 %v4080, %v4272
        %v4337 = vmul.f32 %v4081, %v4273
        %v4338 = vmul.f32 %v4082, %v4274
        %v4339 = vmul.f32 %v4083, %v4275
        %v4340 = vmul.f32 %v4084, %v4276
        %v4341 = vmul.f32 %v4085, %v4277
        %v4342 = vmul.f32 %v4086, %v4278
        %v4343 = vmul.f32 %v4087, %v4279
        %v4344 = vmul.f32 %v4088, %v4280
        %v4345 = vmul.f32 %v4089, %v4281
        %v4346 = vmul.f32 %v4090, %v4282
        %v4347 = vmul.f32 %v4091, %v4283
        %v4348 = vmul.f32 %v4092, %v4284
        %v4349 = vmul.f32 %v4093, %v4285
        %v4350 = vmul.f32 %v4094, %v4286
        %v4351 = vmul.f32 %v4095, %v4287
        %v4352 = vmul.f32 %v4096, %v4288
        %v4353 = vmul.f32 %v4097, %v4289
        %v4354 = vmul.f32 %v4098, %v4290
        %v4355 = vmul.f32 %v4099, %v4291
        %v4356 = vmul.f32 %v4100, %v4292
        %v4357 = vmul.f32 %v4101, %v4293
        %v4358 = vmul.f32 %v4102, %v4294
        %v4359 = vmul.f32 %v4103, %v4295
        %v4360 = vmul.f32 %v4104, %v4296
        %v4361 = vmul.f32 %v4105, %v4297
        %v4362 = vmul.f32 %v4106, %v4298
        %v4363 = vmul.f32 %v4107, %v4299
        %v4364 = vmul.f32 %v4108, %v4300
        %v4365 = vmul.f32 %v4109, %v4301
        %v4366 = vmul.f32 %v4110, %v4302
        %v4367 = vmul.f32 %v4111, %v4303
        %v4368 = vmul.f32 %v4112, %v4304
        %v4369 = vmul.f32 %v4113, %v4305
        %v4370 = vmul.f32 %v4114, %v4306
        %v4371 = vmul.f32 %v4115, %v4307
        %v4372 = vmul.f32 %v4116, %v4308
        %v4373 = vmul.f32 %v4117, %v4309
        %v4374 = vmul.f32 %v4118, %v4310
        %v4375 = vmul.f32 %v4119, %v4311
        %v4376 = vmul.f32 %v4120, %v4312
        %v4377 = vmul.f32 %v4121, %v4313
        %v4378 = vpack.c.bf16 %v4318, %v4314
        %v4379 = vpack.c.bf16 %v4319, %v4315
        %v4380 = vpack.c.bf16 %v4320, %v4316
        %v4381 = vpack.c.bf16 %v4321, %v4317
        %v4382 = vpack.c.bf16 %v4326, %v4322
        %v4383 = vpack.c.bf16 %v4327, %v4323
        %v4384 = vpack.c.bf16 %v4328, %v4324
        %v4385 = vpack.c.bf16 %v4329, %v4325
        %v4386 = vpack.c.bf16 %v4334, %v4330
        %v4387 = vpack.c.bf16 %v4335, %v4331
        %v4388 = vpack.c.bf16 %v4336, %v4332
        %v4389 = vpack.c.bf16 %v4337, %v4333
        %v4390 = vpack.c.bf16 %v4342, %v4338
        %v4391 = vpack.c.bf16 %v4343, %v4339
        %v4392 = vpack.c.bf16 %v4344, %v4340
        %v4393 = vpack.c.bf16 %v4345, %v4341
        %v4394 = vpack.c.bf16 %v4350, %v4346
        %v4395 = vpack.c.bf16 %v4351, %v4347
        %v4396 = vpack.c.bf16 %v4352, %v4348
        %v4397 = vpack.c.bf16 %v4353, %v4349
        %v4398 = vpack.c.bf16 %v4358, %v4354
        %v4399 = vpack.c.bf16 %v4359, %v4355
        %v4400 = vpack.c.bf16 %v4360, %v4356
        %v4401 = vpack.c.bf16 %v4361, %v4357
        %v4402 = vpack.c.bf16 %v4366, %v4362
        %v4403 = vpack.c.bf16 %v4367, %v4363
        %v4404 = vpack.c.bf16 %v4368, %v4364
        %v4405 = vpack.c.bf16 %v4369, %v4365
        %v4406 = vpack.c.bf16 %v4374, %v4370
        %v4407 = vpack.c.bf16 %v4375, %v4371
        %v4408 = vpack.c.bf16 %v4376, %v4372
        %v4409 = vpack.c.bf16 %v4377, %v4373
        %v4410 = vld [vmem:[%s11] sm:$0xf]
        %v4411 = vld [vmem:[%s11 + $0x4] sm:$0xf]
        %v4412 = vld [vmem:[%s11 + $0x8] sm:$0xf]
        %v4413 = vld [vmem:[%s11 + $0xc] sm:$0xf]
        %v4414 = vld [vmem:[%s11 + $0x10] sm:$0xf]
        %v4415 = vld [vmem:[%s11 + $0x14] sm:$0xf]
        %v4416 = vld [vmem:[%s11 + $0x18] sm:$0xf]
        %v4417 = vld [vmem:[%s11 + $0x1c] sm:$0xf]
        %v4418 = vld [vmem:[%s11 + $0x20] sm:$0xf]
        %v4419 = vld [vmem:[%s11 + $0x24] sm:$0xf]
        %v4420 = vld [vmem:[%s11 + $0x28] sm:$0xf]
        %v4421 = vld [vmem:[%s11 + $0x2c] sm:$0xf]
        %v4422 = vld [vmem:[%s11 + $0x30] sm:$0xf]
        %v4423 = vld [vmem:[%s11 + $0x34] sm:$0xf]
        %v4424 = vld [vmem:[%s11 + $0x38] sm:$0xf]
        %v4425 = vld [vmem:[%s11 + $0x3c] sm:$0xf]
        %v4426 = vld [vmem:[%s11 + $0x40] sm:$0xf]
        %v4427 = vld [vmem:[%s11 + $0x44] sm:$0xf]
        %v4428 = vld [vmem:[%s11 + $0x48] sm:$0xf]
        %v4429 = vld [vmem:[%s11 + $0x4c] sm:$0xf]
        %v4430 = vld [vmem:[%s11 + $0x50] sm:$0xf]
        %v4431 = vld [vmem:[%s11 + $0x54] sm:$0xf]
        %v4432 = vld [vmem:[%s11 + $0x58] sm:$0xf]
        %v4433 = vld [vmem:[%s11 + $0x5c] sm:$0xf]
        %v4434 = vld [vmem:[%s11 + $0x60] sm:$0xf]
        %v4435 = vld [vmem:[%s11 + $0x64] sm:$0xf]
        %v4436 = vld [vmem:[%s11 + $0x68] sm:$0xf]
        %v4437 = vld [vmem:[%s11 + $0x6c] sm:$0xf]
        %v4438 = vld [vmem:[%s11 + $0x70] sm:$0xf]
        %v4439 = vld [vmem:[%s11 + $0x74] sm:$0xf]
        %v4440 = vld [vmem:[%s11 + $0x78] sm:$0xf]
        %v4441 = vld [vmem:[%s11 + $0x7c] sm:$0xf]
        %v4442 = vld [vmem:[%s11 + $0x80] sm:$0xf]
        %v4443 = vld [vmem:[%s11 + $0x84] sm:$0xf]
        %v4444 = vld [vmem:[%s11 + $0x88] sm:$0xf]
        %v4445 = vld [vmem:[%s11 + $0x8c] sm:$0xf]
        %v4446 = vld [vmem:[%s11 + $0x90] sm:$0xf]
        %v4447 = vld [vmem:[%s11 + $0x94] sm:$0xf]
        %v4448 = vld [vmem:[%s11 + $0x98] sm:$0xf]
        %v4449 = vld [vmem:[%s11 + $0x9c] sm:$0xf]
        %v4450 = vld [vmem:[%s11 + $0xa0] sm:$0xf]
        %v4451 = vld [vmem:[%s11 + $0xa4] sm:$0xf]
        %v4452 = vld [vmem:[%s11 + $0xa8] sm:$0xf]
        %v4453 = vld [vmem:[%s11 + $0xac] sm:$0xf]
        %v4454 = vld [vmem:[%s11 + $0xb0] sm:$0xf]
        %v4455 = vld [vmem:[%s11 + $0xb4] sm:$0xf]
        %v4456 = vld [vmem:[%s11 + $0xb8] sm:$0xf]
        %v4457 = vld [vmem:[%s11 + $0xbc] sm:$0xf]
        %v4458 = vld [vmem:[%s11 + $0xc0] sm:$0xf]
        %v4459 = vld [vmem:[%s11 + $0xc4] sm:$0xf]
        %v4460 = vld [vmem:[%s11 + $0xc8] sm:$0xf]
        %v4461 = vld [vmem:[%s11 + $0xcc] sm:$0xf]
        %v4462 = vld [vmem:[%s11 + $0xd0] sm:$0xf]
        %v4463 = vld [vmem:[%s11 + $0xd4] sm:$0xf]
        %v4464 = vld [vmem:[%s11 + $0xd8] sm:$0xf]
        %v4465 = vld [vmem:[%s11 + $0xdc] sm:$0xf]
        %v4466 = vld [vmem:[%s11 + $0xe0] sm:$0xf]
        %v4467 = vld [vmem:[%s11 + $0xe4] sm:$0xf]
        %v4468 = vld [vmem:[%s11 + $0xe8] sm:$0xf]
        %v4469 = vld [vmem:[%s11 + $0xec] sm:$0xf]
        %v4470 = vld [vmem:[%s11 + $0xf0] sm:$0xf]
        %v4471 = vld [vmem:[%s11 + $0xf4] sm:$0xf]
        %v4472 = vld [vmem:[%s11 + $0xf8] sm:$0xf]
        %v4473 = vld [vmem:[%s11 + $0xfc] sm:$0xf]
        %v4474 = vld [vmem:[%s12] sm:$0x1]
        %v4476 = vlaneseq
        %v4477 = vshrl.u32 %v4476, 7
        %v4478 = vsub.s32 0, %v4477
        %v4479 = vrot.slane %v4474, %v4478
        %v4545 = vunpack.c.l.b16 %v4410
        %v4546 = vunpack.c.l.b16 %v4411
        %v4547 = vunpack.c.l.b16 %v4412
        %v4548 = vunpack.c.l.b16 %v4413
        %v4549 = vunpack.c.l.b16 %v4414
        %v4550 = vunpack.c.l.b16 %v4415
        %v4551 = vunpack.c.l.b16 %v4416
        %v4552 = vunpack.c.l.b16 %v4417
        %v4553 = vunpack.c.l.b16 %v4418
        %v4554 = vunpack.c.l.b16 %v4419
        %v4555 = vunpack.c.l.b16 %v4420
        %v4556 = vunpack.c.l.b16 %v4421
        %v4557 = vunpack.c.l.b16 %v4422
        %v4558 = vunpack.c.l.b16 %v4423
        %v4559 = vunpack.c.l.b16 %v4424
        %v4560 = vunpack.c.l.b16 %v4425
        %v4561 = vunpack.c.l.b16 %v4426
        %v4562 = vunpack.c.l.b16 %v4427
        %v4563 = vunpack.c.l.b16 %v4428
        %v4564 = vunpack.c.l.b16 %v4429
        %v4565 = vunpack.c.l.b16 %v4430
        %v4566 = vunpack.c.l.b16 %v4431
        %v4567 = vunpack.c.l.b16 %v4432
        %v4568 = vunpack.c.l.b16 %v4433
        %v4569 = vunpack.c.l.b16 %v4434
        %v4570 = vunpack.c.l.b16 %v4435
        %v4571 = vunpack.c.l.b16 %v4436
        %v4572 = vunpack.c.l.b16 %v4437
        %v4573 = vunpack.c.l.b16 %v4438
        %v4574 = vunpack.c.l.b16 %v4439
        %v4575 = vunpack.c.l.b16 %v4440
        %v4576 = vunpack.c.l.b16 %v4441
        %v4577 = vunpack.c.l.b16 %v4442
        %v4578 = vunpack.c.l.b16 %v4443
        %v4579 = vunpack.c.l.b16 %v4444
        %v4580 = vunpack.c.l.b16 %v4445
        %v4581 = vunpack.c.l.b16 %v4446
        %v4582 = vunpack.c.l.b16 %v4447
        %v4583 = vunpack.c.l.b16 %v4448
        %v4584 = vunpack.c.l.b16 %v4449
        %v4585 = vunpack.c.l.b16 %v4450
        %v4586 = vunpack.c.l.b16 %v4451
        %v4587 = vunpack.c.l.b16 %v4452
        %v4588 = vunpack.c.l.b16 %v4453
        %v4589 = vunpack.c.l.b16 %v4454
        %v4590 = vunpack.c.l.b16 %v4455
        %v4591 = vunpack.c.l.b16 %v4456
        %v4592 = vunpack.c.l.b16 %v4457
        %v4593 = vunpack.c.l.b16 %v4458
        %v4594 = vunpack.c.l.b16 %v4459
        %v4595 = vunpack.c.l.b16 %v4460
        %v4596 = vunpack.c.l.b16 %v4461
        %v4597 = vunpack.c.l.b16 %v4462
        %v4598 = vunpack.c.l.b16 %v4463
        %v4599 = vunpack.c.l.b16 %v4464
        %v4600 = vunpack.c.l.b16 %v4465
        %v4601 = vunpack.c.l.b16 %v4466
        %v4602 = vunpack.c.l.b16 %v4467
        %v4603 = vunpack.c.l.b16 %v4468
        %v4604 = vunpack.c.l.b16 %v4469
        %v4605 = vunpack.c.l.b16 %v4470
        %v4606 = vunpack.c.l.b16 %v4471
        %v4607 = vunpack.c.l.b16 %v4472
        %v4608 = vunpack.c.l.b16 %v4473
        %v4609 = vpack.c.b16 %v4546, %v4545
        %v4610 = vpack.c.b16 %v4548, %v4547
        %v4611 = vpack.c.b16 %v4550, %v4549
        %v4612 = vpack.c.b16 %v4552, %v4551
        %v4613 = vpack.c.b16 %v4554, %v4553
        %v4614 = vpack.c.b16 %v4556, %v4555
        %v4615 = vpack.c.b16 %v4558, %v4557
        %v4616 = vpack.c.b16 %v4560, %v4559
        %v4617 = vpack.c.b16 %v4562, %v4561
        %v4618 = vpack.c.b16 %v4564, %v4563
        %v4619 = vpack.c.b16 %v4566, %v4565
        %v4620 = vpack.c.b16 %v4568, %v4567
        %v4621 = vpack.c.b16 %v4570, %v4569
        %v4622 = vpack.c.b16 %v4572, %v4571
        %v4623 = vpack.c.b16 %v4574, %v4573
        %v4624 = vpack.c.b16 %v4576, %v4575
        %v4625 = vpack.c.b16 %v4578, %v4577
        %v4626 = vpack.c.b16 %v4580, %v4579
        %v4627 = vpack.c.b16 %v4582, %v4581
        %v4628 = vpack.c.b16 %v4584, %v4583
        %v4629 = vpack.c.b16 %v4586, %v4585
        %v4630 = vpack.c.b16 %v4588, %v4587
        %v4631 = vpack.c.b16 %v4590, %v4589
        %v4632 = vpack.c.b16 %v4592, %v4591
        %v4633 = vpack.c.b16 %v4594, %v4593
        %v4634 = vpack.c.b16 %v4596, %v4595
        %v4635 = vpack.c.b16 %v4598, %v4597
        %v4636 = vpack.c.b16 %v4600, %v4599
        %v4637 = vpack.c.b16 %v4602, %v4601
        %v4638 = vpack.c.b16 %v4604, %v4603
        %v4639 = vpack.c.b16 %v4606, %v4605
        %v4640 = vpack.c.b16 %v4608, %v4607
        %4673 = vmatprep.subr.bf16.mxu0 0
        %4674 = vmatpush1.bf16.msra.mxu0 %v4616
        %4675 = vmatprep.subr.bf16.mxu0 0
        %4676 = vmatpush1.bf16.msra.mxu0 %v4615
        %4677 = vmatprep.subr.bf16.mxu0 0
        %4678 = vmatpush1.bf16.msra.mxu0 %v4614
        %4679 = vmatprep.subr.bf16.mxu0 0
        %4680 = vmatpush1.bf16.msra.mxu0 %v4613
        %4681 = vmatprep.subr.bf16.mxu0 0
        %4682 = vmatpush1.bf16.msra.mxu0 %v4612
        %4683 = vmatprep.subr.bf16.mxu0 0
        %4684 = vmatpush1.bf16.msra.mxu0 %v4611
        %4685 = vmatprep.subr.bf16.mxu0 0
        %4686 = vmatpush1.bf16.msra.mxu0 %v4610
        %4687 = vmatprep.subr.bf16.mxu0 0
        %4688 = vmatpush1.bf16.msra.mxu0 %v4609
        %4689 = vmatprep.subr.bf16.mxu0 0
        %4690 = vmatpush2.bf16.msra.mxu0 %v4624
        %4691 = vmatprep.subr.bf16.mxu0 0
        %4692 = vmatpush2.bf16.msra.mxu0 %v4623
        %4693 = vmatprep.subr.bf16.mxu0 0
        %4694 = vmatpush2.bf16.msra.mxu0 %v4622
        %4695 = vmatprep.subr.bf16.mxu0 0
        %4696 = vmatpush2.bf16.msra.mxu0 %v4621
        %4697 = vmatprep.subr.bf16.mxu0 0
        %4698 = vmatpush2.bf16.msra.mxu0 %v4620
        %4699 = vmatprep.subr.bf16.mxu0 0
        %4700 = vmatpush2.bf16.msra.mxu0 %v4619
        %4701 = vmatprep.subr.bf16.mxu0 0
        %4702 = vmatpush2.bf16.msra.mxu0 %v4618
        %4703 = vmatprep.subr.bf16.mxu0 0
        %4704 = vmatpush2.bf16.msra.mxu0 %v4617
        %4705 = vmatprep.mubr.bf16.mxu0 %v4379
        %4706 = vmatmul.mubr.bf16.gmra.mxu0 %v4378
        %v4707 = vpop.f32.mrf.mxu0
        %v4708 = vadd.f32 %v4479, %v4707
        %v4709 = vpop.f32.mrf.mxu0
        %v4710 = vpop.f32.mrf.mxu0
        %v4711 = vadd.f32 %v4479, %v4710
        %v4712 = vpop.f32.mrf.mxu0
        %4713 = vmatprep.mubr.bf16.mxu0 %v4383
        %4714 = vmatmul.mubr.bf16.gmra.mxu0 %v4382
        %v4715 = vpop.f32.mrf.mxu0
        %v4716 = vadd.f32 %v4479, %v4715
        %v4717 = vpop.f32.mrf.mxu0
        %v4718 = vpop.f32.mrf.mxu0
        %v4719 = vadd.f32 %v4479, %v4718
        %v4720 = vpop.f32.mrf.mxu0
        %4721 = vmatprep.mubr.bf16.mxu0 %v4387
        %4722 = vmatmul.mubr.bf16.gmra.mxu0 %v4386
        %v4723 = vpop.f32.mrf.mxu0
        %v4724 = vadd.f32 %v4479, %v4723
        %v4725 = vpop.f32.mrf.mxu0
        %v4726 = vpop.f32.mrf.mxu0
        %v4727 = vadd.f32 %v4479, %v4726
        %v4728 = vpop.f32.mrf.mxu0
        %4729 = vmatprep.mubr.bf16.mxu0 %v4391
        %4730 = vmatmul.mubr.bf16.gmra.mxu0 %v4390
        %v4731 = vpop.f32.mrf.mxu0
        %v4732 = vadd.f32 %v4479, %v4731
        %v4733 = vpop.f32.mrf.mxu0
        %v4734 = vpop.f32.mrf.mxu0
        %v4735 = vadd.f32 %v4479, %v4734
        %v4736 = vpop.f32.mrf.mxu0
        %4737 = vmatprep.mubr.bf16.mxu0 %v4395
        %4738 = vmatmul.mubr.bf16.gmra.mxu0 %v4394
        %v4739 = vpop.f32.mrf.mxu0
        %v4740 = vadd.f32 %v4479, %v4739
        %v4741 = vpop.f32.mrf.mxu0
        %v4742 = vpop.f32.mrf.mxu0
        %v4743 = vadd.f32 %v4479, %v4742
        %v4744 = vpop.f32.mrf.mxu0
        %4745 = vmatprep.mubr.bf16.mxu0 %v4399
        %4746 = vmatmul.mubr.bf16.gmra.mxu0 %v4398
        %v4747 = vpop.f32.mrf.mxu0
        %v4748 = vadd.f32 %v4479, %v4747
        %v4749 = vpop.f32.mrf.mxu0
        %v4750 = vpop.f32.mrf.mxu0
        %v4751 = vadd.f32 %v4479, %v4750
        %v4752 = vpop.f32.mrf.mxu0
        %4753 = vmatprep.mubr.bf16.mxu0 %v4403
        %4754 = vmatmul.mubr.bf16.gmra.mxu0 %v4402
        %v4755 = vpop.f32.mrf.mxu0
        %v4756 = vadd.f32 %v4479, %v4755
        %v4757 = vpop.f32.mrf.mxu0
        %v4758 = vpop.f32.mrf.mxu0
        %v4759 = vadd.f32 %v4479, %v4758
        %v4760 = vpop.f32.mrf.mxu0
        %4761 = vmatprep.mubr.bf16.mxu0 %v4407
        %4762 = vmatmul.mubr.bf16.gmra.mxu0 %v4406
        %v4763 = vpop.f32.mrf.mxu0
        %v4764 = vadd.f32 %v4479, %v4763
        %v4765 = vpop.f32.mrf.mxu0
        %v4766 = vpop.f32.mrf.mxu0
        %v4767 = vadd.f32 %v4479, %v4766
        %v4768 = vpop.f32.mrf.mxu0
        %4769 = vdwg.mxu0
        %4770 = vmatprep.subr.bf16.mxu0 0
        %4771 = vmatpush1.bf16.msra.mxu0 %v4632
        %4772 = vmatprep.subr.bf16.mxu0 0
        %4773 = vmatpush1.bf16.msra.mxu0 %v4631
        %4774 = vmatprep.subr.bf16.mxu0 0
        %4775 = vmatpush1.bf16.msra.mxu0 %v4630
        %4776 = vmatprep.subr.bf16.mxu0 0
        %4777 = vmatpush1.bf16.msra.mxu0 %v4629
        %4778 = vmatprep.subr.bf16.mxu0 0
        %4779 = vmatpush1.bf16.msra.mxu0 %v4628
        %4780 = vmatprep.subr.bf16.mxu0 0
        %4781 = vmatpush1.bf16.msra.mxu0 %v4627
        %4782 = vmatprep.subr.bf16.mxu0 0
        %4783 = vmatpush1.bf16.msra.mxu0 %v4626
        %4784 = vmatprep.subr.bf16.mxu0 0
        %4785 = vmatpush1.bf16.msra.mxu0 %v4625
        %4786 = vmatprep.subr.bf16.mxu0 0
        %4787 = vmatpush2.bf16.msra.mxu0 %v4640
        %4788 = vmatprep.subr.bf16.mxu0 0
        %4789 = vmatpush2.bf16.msra.mxu0 %v4639
        %4790 = vmatprep.subr.bf16.mxu0 0
        %4791 = vmatpush2.bf16.msra.mxu0 %v4638
        %4792 = vmatprep.subr.bf16.mxu0 0
        %4793 = vmatpush2.bf16.msra.mxu0 %v4637
        %4794 = vmatprep.subr.bf16.mxu0 0
        %4795 = vmatpush2.bf16.msra.mxu0 %v4636
        %4796 = vmatprep.subr.bf16.mxu0 0
        %4797 = vmatpush2.bf16.msra.mxu0 %v4635
        %4798 = vmatprep.subr.bf16.mxu0 0
        %4799 = vmatpush2.bf16.msra.mxu0 %v4634
        %4800 = vmatprep.subr.bf16.mxu0 0
        %4801 = vmatpush2.bf16.msra.mxu0 %v4633
        %4802 = vmatprep.mubr.bf16.mxu0 %v4381
        %4803 = vmatmul.mubr.bf16.gmra.mxu0 %v4380
        %v4804 = vpop.f32.mrf.mxu0
        %v4805 = vadd.f32 %v4708, %v4804
        %v4806 = vpop.f32.mrf.mxu0
        %v4807 = vpop.f32.mrf.mxu0
        %v4808 = vadd.f32 %v4711, %v4807
        %v4809 = vpop.f32.mrf.mxu0
        %4810 = vmatprep.mubr.bf16.mxu0 %v4385
        %4811 = vmatmul.mubr.bf16.gmra.mxu0 %v4384
        %v4812 = vpop.f32.mrf.mxu0
        %v4813 = vadd.f32 %v4716, %v4812
        %v4814 = vpop.f32.mrf.mxu0
        %v4815 = vpop.f32.mrf.mxu0
        %v4816 = vadd.f32 %v4719, %v4815
        %v4817 = vpop.f32.mrf.mxu0
        %4818 = vmatprep.mubr.bf16.mxu0 %v4389
        %4819 = vmatmul.mubr.bf16.gmra.mxu0 %v4388
        %v4820 = vpop.f32.mrf.mxu0
        %v4821 = vadd.f32 %v4724, %v4820
        %v4822 = vpop.f32.mrf.mxu0
        %v4823 = vpop.f32.mrf.mxu0
        %v4824 = vadd.f32 %v4727, %v4823
        %v4825 = vpop.f32.mrf.mxu0
        %4826 = vmatprep.mubr.bf16.mxu0 %v4393
        %4827 = vmatmul.mubr.bf16.gmra.mxu0 %v4392
        %v4828 = vpop.f32.mrf.mxu0
        %v4829 = vadd.f32 %v4732, %v4828
        %v4830 = vpop.f32.mrf.mxu0
        %v4831 = vpop.f32.mrf.mxu0
        %v4832 = vadd.f32 %v4735, %v4831
        %v4833 = vpop.f32.mrf.mxu0
        %4834 = vmatprep.mubr.bf16.mxu0 %v4397
        %4835 = vmatmul.mubr.bf16.gmra.mxu0 %v4396
        %v4836 = vpop.f32.mrf.mxu0
        %v4837 = vadd.f32 %v4740, %v4836
        %v4838 = vpop.f32.mrf.mxu0
        %v4839 = vpop.f32.mrf.mxu0
        %v4840 = vadd.f32 %v4743, %v4839
        %v4841 = vpop.f32.mrf.mxu0
        %4842 = vmatprep.mubr.bf16.mxu0 %v4401
        %4843 = vmatmul.mubr.bf16.gmra.mxu0 %v4400
        %v4844 = vpop.f32.mrf.mxu0
        %v4845 = vadd.f32 %v4748, %v4844
        %v4846 = vpop.f32.mrf.mxu0
        %v4847 = vpop.f32.mrf.mxu0
        %v4848 = vadd.f32 %v4751, %v4847
        %v4849 = vpop.f32.mrf.mxu0
        %4850 = vmatprep.mubr.bf16.mxu0 %v4405
        %4851 = vmatmul.mubr.bf16.gmra.mxu0 %v4404
        %v4852 = vpop.f32.mrf.mxu0
        %v4853 = vadd.f32 %v4756, %v4852
        %v4854 = vpop.f32.mrf.mxu0
        %v4855 = vpop.f32.mrf.mxu0
        %v4856 = vadd.f32 %v4759, %v4855
        %v4857 = vpop.f32.mrf.mxu0
        %4858 = vmatprep.mubr.bf16.mxu0 %v4409
        %4859 = vmatmul.mubr.bf16.gmra.mxu0 %v4408
        %v4860 = vpop.f32.mrf.mxu0
        %v4861 = vadd.f32 %v4764, %v4860
        %v4862 = vpop.f32.mrf.mxu0
        %v4863 = vpop.f32.mrf.mxu0
        %v4864 = vadd.f32 %v4767, %v4863
        %v4865 = vpop.f32.mrf.mxu0
        %4866 = vdwg.mxu0
        %v4867 = vadd.f32 %v3372, %v4805
        %v4868 = vadd.f32 %v3373, %v4808
        %v4869 = vadd.f32 %v3374, %v4813
        %v4870 = vadd.f32 %v3375, %v4816
        %v4871 = vadd.f32 %v3376, %v4821
        %v4872 = vadd.f32 %v3377, %v4824
        %v4873 = vadd.f32 %v3378, %v4829
        %v4874 = vadd.f32 %v3379, %v4832
        %v4875 = vadd.f32 %v3380, %v4837
        %v4876 = vadd.f32 %v3381, %v4840
        %v4877 = vadd.f32 %v3382, %v4845
        %v4878 = vadd.f32 %v3383, %v4848
        %v4879 = vadd.f32 %v3384, %v4853
        %v4880 = vadd.f32 %v3385, %v4856
        %v4881 = vadd.f32 %v3386, %v4861
        %v4882 = vadd.f32 %v3387, %v4864
        %4883 = vst [vmem:[%s525] sm:$0xff] %v4867
        %4884 = vst [vmem:[%s525 + $0x8] sm:$0xff] %v4868
        %4885 = vst [vmem:[%s525 + $0x10] sm:$0xff] %v4869
        %4886 = vst [vmem:[%s525 + $0x18] sm:$0xff] %v4870
        %4887 = vst [vmem:[%s525 + $0x20] sm:$0xff] %v4871
        %4888 = vst [vmem:[%s525 + $0x28] sm:$0xff] %v4872
        %4889 = vst [vmem:[%s525 + $0x30] sm:$0xff] %v4873
        %4890 = vst [vmem:[%s525 + $0x38] sm:$0xff] %v4874
        %4891 = vst [vmem:[%s525 + $0x40] sm:$0xff] %v4875
        %4892 = vst [vmem:[%s525 + $0x48] sm:$0xff] %v4876
        %4893 = vst [vmem:[%s525 + $0x50] sm:$0xff] %v4877
        %4894 = vst [vmem:[%s525 + $0x58] sm:$0xff] %v4878
        %4895 = vst [vmem:[%s525 + $0x60] sm:$0xff] %v4879
        %4896 = vst [vmem:[%s525 + $0x68] sm:$0xff] %v4880
        %4897 = vst [vmem:[%s525 + $0x70] sm:$0xff] %v4881
        %4898 = vst [vmem:[%s525 + $0x78] sm:$0xff] %v4882
        %s4899 = sand.u32 %s319, 1
        %s4900 = scalar_lea.sflag [#allocation4], %s4899
        %s4901 = sand.u32 %s319, 1
        %s4902 = smul.addr %s4901, 128
        %s4903 = scalar_lea.vmem [#allocation13], %s4902
        // Predicated region
        $region97: #{tpu_custom_call.1} parent=71 // pred_check
          %p4904 = pneg %p329
        $region98: #{tpu_custom_call.1} parent=71 // pred_check_branch
          %4906 = sbr.rel (%p4904) target = $region100
        $region99: #{tpu_custom_call.1} parent=71 // pred_region
          %s4908 = ssub.s32 2048, 2048
          %4909 = vsyncadd %s4900, %s4908
          %s4910 = smul.addr %s33, 16
          %s4911 = smul.addr %s4910, 128
          %s4912 = scalar_lea.hbm %s13, %s4911
          %s4913 = sshll.u32 %s4903, 4
          %s4914 = int_to_ptr.vmem [resolvable:$true] %s4913
          %4919 = dma.vmem_to_hbm [thread:$0]  %s4914, 2048, %s4912, %s4900, 128, 128, 8
        $region100: #{tpu_custom_call.1} parent=71 // pred_fallthru
          _
      $region72: #{tpu_custom_call.1} parent=5 // pred_fallthru
        _
      %p4920 = scmp.le.s32.totalorder 2, %s28
      // Predicated region
      $region101: #{tpu_custom_call.1} parent=5 // pred_check
        %p4921 = pneg %p4920
      $region102: #{tpu_custom_call.1} parent=5 // pred_check_branch
        %4923 = sbr.rel (%p4921) target = $region104
      $region103: #{tpu_custom_call.1} parent=5 // pred_region
        %s4924 = ssub.s32 %s28, 2
        // Predicated region
        $region105: #{tpu_custom_call.1} parent=103 // pred_check
          %p4925 = pneg %p335
        $region106: #{tpu_custom_call.1} parent=103 // pred_check_branch
          %4927 = sbr.rel (%p4925) target = $region108
        $region107: #{tpu_custom_call.1} parent=103 // pred_region
          %s4928 = sand.u32 %s320, 1
          %s4929 = scalar_lea.sflag [#allocation4], %s4928
          %s4930 = sand.u32 %s320, 1
          %s4931 = smul.addr %s4930, 128
          %s4932 = scalar_lea.vmem [#allocation13], %s4931
          %4933 = dma.done %s4929, 2048
        $region108: #{tpu_custom_call.1} parent=103 // pred_fallthru
          _
      $region104: #{tpu_custom_call.1} parent=5 // pred_fallthru
        _
    $region6: #{tpu_custom_call.1} parent=1 // loop_footer
      %s32 = sadd.s32 1, %s28
    $region7: #{tpu_custom_call.1} parent=1 // loop_footer_branch
      %27 = sbr.rel target = $region3
    $region8: #{tpu_custom_call.1} parent=1 // loop_exit
      _
    %4934 = vsyncpa [#allocation3], 1
    %s4935 = scalar_lea.sflag [#allocation3], 1
    %4936 = vsyncpa %s4935, 1
    %4937 = vsyncpa [#allocation6], 1
    %4938 = vsyncpa [#allocation9], 1
    %4939 = vsyncpa [#allocation12], 1
    %4940 = vsyncpa [#allocation4], 1
    %s4941 = scalar_lea.sflag [#allocation4], 1
    %4942 = vsyncpa %s4941, 1

</llo_original>
